<compile_context>
chip_gen: v5e
topology: v5e:2x2
jax: 0.10.0
libtpu: 0.0.40
codegen_flags: <defaults>
</compile_context>

<pallas_src>
import functools

import jax
import jax.numpy as jnp
from jax.experimental import pallas as pl
from jax.experimental.pallas import tpu as pltpu

EMBED_DIM = 32
NUM_HEADS = 8
NUM_SAMPLES = 8   # the "8" deformable sample slots per query in the PyTorch module


def _deformable_attn_kernel(x_ref, wc_ref, bc_ref, expand_ref, selk_ref, summat_ref,
                            expv_ref, wfin_ref, bo_ref, o_ref, *, seq_len, num_samples):
    f32 = jnp.float32
    T = seq_len
    S = num_samples
    two_t, three_e = x_ref.shape
    E = three_e // 3
    two_e = 2 * E

    # ---- one fused block-diagonal projection matmul ----------------------------
    # rows [0:T)  of x are [q|0|0], rows [T:2T) are [0|k|v];
    # output columns are [kp | vp | qp*scale | zeros | off_dx].
    proj = jnp.dot(x_ref[...], wc_ref[...], preferred_element_type=f32) + bc_ref[...]
    kvp = proj[T:, 0:two_e]                     # (T, 2E)  projected [k|v] of this batch
    qpz = proj[:T, two_e:2 * two_e]             # (T, 2E)  [scaled q-proj | zeros]
    off = proj[:T, 2 * two_e:2 * two_e + S]     # (T, S)   dx offsets

    # ---- deformable indices: clamp(int(t + dx), 0, T-1) ------------------------
    # (clip-then-truncate equals PyTorch's truncate-then-clamp on this range)
    t_pos = jax.lax.broadcasted_iota(jnp.int32, (T, S), 0).astype(f32)
    idx = jnp.clip(t_pos + off, 0.0, float(T - 1)).astype(jnp.int32)       # (T, S) in [0, T-1]

    # ---- lane-expand indices to the (T, S*2E) layout (exact 0/1 small-int dot) --
    idx_lanes = jnp.dot(idx.astype(f32), expand_ref[...], preferred_element_type=f32)
    idx_lanes = (idx_lanes + 0.5).astype(jnp.int32)                        # (T, S*2E)

    # ---- exact, MXU-free gather: select tree over this batch's T source rows ---
    kvp_tiled = jnp.concatenate([kvp] * S, axis=-1)                        # (T, S*2E)
    kv_g = jnp.zeros((T, S * two_e), f32)
    for t in range(T):                                                     # static unroll, T small
        kv_g = kv_g + jnp.where(idx_lanes == t, kvp_tiled[t:t + 1, :], 0.0)
    # kv_g[n, i*2E + c] = [kp|vp][idx[n, i], c]

    # ---- per-(sample, head) scores with one selector matmul --------------------
    qp_tm = jnp.concatenate([qpz] * S, axis=-1)                            # (T, S*2E)
    scores = jnp.dot(qp_tm * kv_g, selk_ref[...],
                     preferred_element_type=f32)                           # (T, S*H), col = i*H + h

    # ---- softmax over the S samples: whole-tensor ops --------------------------
    # per-row max is constant across the sample axis for every (n, h) group, so it
    # is a valid stabilizer; the per-(n,h) denominator is a 0/1 selector matmul.
    m = jnp.max(scores, axis=-1, keepdims=True)
    e = jnp.exp(scores - m)
    den = jnp.dot(e, summat_ref[...], preferred_element_type=f32)          # (T, S*H)
    p = e * pl.reciprocal(den, approx=False)

    # ---- weighted value sum fused with the output projection -------------------
    p_exp = jnp.dot(p, expv_ref[...], preferred_element_type=f32)          # probs on v-lanes, (T, S*2E)
    out = jnp.dot(p_exp * kv_g, wfin_ref[...], preferred_element_type=f32) + bo_ref[...]
    o_ref[...] = out.astype(o_ref.dtype)


def deformable_attention(q, k, v, params, *, num_heads=NUM_HEADS):
    B, T, E = q.shape
    H = num_heads
    D = E // H
    S = NUM_SAMPLES
    two_e = 2 * E
    assert E % H == 0
    assert T % 8 == 0, "sequence length must be a multiple of 8 for the row block"

    f32 = jnp.float32
    w_in = params["in_proj_weight"].astype(f32)   # (3E, E)
    b_in = params["in_proj_bias"].astype(f32)     # (3E,)
    wq, wk, wv = w_in[:E], w_in[E:2 * E], w_in[2 * E:]
    bq, bk, bv = b_in[:E], b_in[E:2 * E], b_in[2 * E:]
    w_off = params["offset_weight"][0::2, :].astype(f32)   # (S, E): only dx rows are used
    b_off = params["offset_bias"][0::2].astype(f32)        # (S,)
    wo = params["out_proj_weight"].astype(f32)             # (E, E)
    bo = params["out_proj_bias"].astype(f32)               # (E,)
    scale = 1.0 / float(D) ** 0.5

    # fused projection weight: input features [q|k|v] (3E) ->
    # output columns [kp | vp | qp*scale | zeros_E | off_dx]   (width 4E + S)
    wc = jnp.zeros((3 * E, 4 * E + S), f32)
    wc = wc.at[E:2 * E, 0:E].set(wk.T)
    wc = wc.at[2 * E:3 * E, E:two_e].set(wv.T)
    wc = wc.at[0:E, two_e:3 * E].set(wq.T * scale)
    wc = wc.at[0:E, 4 * E:].set(w_off.T)
    bc = jnp.concatenate([bk, bv, bq * scale,
                          jnp.zeros((E,), f32), b_off]).reshape(1, 4 * E + S)

    # constant selector matrices (hoisted out of the kernel body)
    cols = jnp.arange(S * two_e)
    i_col, c_col = cols // two_e, cols % two_e
    sc = jnp.arange(S * H)
    i_sc, h_sc = sc // H, sc % H
    # lane-expansion of per-sample indices: (S, S*2E), [i, i*2E + c] = 1
    expand = (jnp.arange(S)[:, None] == i_col[None, :]).astype(f32)
    # per-(sample, head) score reduce: (S*2E, S*H), [i*2E + h*D + d, i*H + h] = 1
    selk = ((i_col[:, None] == i_sc[None, :]) & (c_col[:, None] < E)
            & ((c_col[:, None] // D) == h_sc[None, :])).astype(f32)
    # broadcasted per-head softmax denominator: (S*H, S*H), [a, b] = (a%H == b%H)
    summat = ((sc[:, None] % H) == (sc[None, :] % H)).astype(f32)
    # probability expansion onto the v-lanes: (S*H, S*2E)
    expv = ((i_sc[:, None] == i_col[None, :]) & (c_col[None, :] >= E)
            & (((c_col[None, :] - E) // D) == h_sc[:, None])).astype(f32)
    # fused (sum over samples on v-lanes) @ out_proj.T : (S*2E, E)
    wfin = jnp.tile(jnp.concatenate([jnp.zeros((E, E), f32), wo.T], axis=0), (S, 1))
    bo_row = bo.reshape(1, E)

    # stacked per-batch input: rows [0:T) = [q|0|0], rows [T:2T) = [0|k|v]
    z = jnp.zeros((B, T, E), f32)
    top = jnp.concatenate([q.astype(f32), z, z], axis=-1)
    bot = jnp.concatenate([z, k.astype(f32), v.astype(f32)], axis=-1)
    xc = jnp.concatenate([top, bot], axis=1).reshape(B * 2 * T, 3 * E)

    kernel = functools.partial(_deformable_attn_kernel, seq_len=T, num_samples=S)

    def full(a):
        nd = a.ndim
        return pl.BlockSpec(a.shape, lambda b, _n=nd: (0,) * _n)

    out2 = pl.pallas_call(
        kernel,
        out_shape=jax.ShapeDtypeStruct((B * T, E), q.dtype),
        grid_spec=pltpu.PrefetchScalarGridSpec(
            num_scalar_prefetch=0,
            grid=(B,),
            in_specs=[
                pl.BlockSpec((2 * T, 3 * E), lambda b: (b, 0)),   # per-batch [q; kv] slab
                full(wc), full(bc), full(expand), full(selk),
                full(summat), full(expv), full(wfin), full(bo_row),
            ],
            out_specs=pl.BlockSpec((T, E), lambda b: (b, 0)),
        ),
        compiler_params=pltpu.CompilerParams(dimension_semantics=("parallel",)),
    )(xc, wc, bc, expand, selk, summat, expv, wfin, bo_row)
    return out2.reshape(B, T, E)


def reference_deformable_attention(q, k, v, params, *, num_heads=NUM_HEADS):
    """Pure-JAX reference mirroring the PyTorch forward (eval mode, mask=None)."""
    B, T, E = q.shape
    H = num_heads
    D = E // H
    S = NUM_SAMPLES
    w_in, b_in = params["in_proj_weight"], params["in_proj_bias"]
    wq, wk, wv = w_in[:E], w_in[E:2 * E], w_in[2 * E:]
    bq, bk, bv = b_in[:E], b_in[E:2 * E], b_in[2 * E:]
    wo, bo = params["out_proj_weight"], params["out_proj_bias"]

    offsets = q @ params["offset_weight"].T + params["offset_bias"]   # (B, T, 2S)
    off0 = offsets.reshape(B, T, S, 2)[..., 0]                        # (B, T, S)
    t_idx = jnp.arange(T, dtype=q.dtype)[None, :, None]
    idx = jnp.clip(t_idx + off0, 0.0, T - 1).astype(jnp.int32)        # (B, T, S)

    b_idx = jnp.arange(B)[:, None, None]
    sk = k[b_idx, idx]                                                # (B, T, S, E)
    sv = v[b_idx, idx]

    scale = D ** -0.5
    qp = (q @ wq.T + bq) * scale
    kp = sk @ wk.T + bk
    vp = sv @ wv.T + bv

    qh = qp.reshape(B, T, H, D)
    kh = kp.reshape(B, T, S, H, D)
    vh = vp.reshape(B, T, S, H, D)
    s = jnp.einsum("bthd,btshd->bths", qh, kh)
    p = jax.nn.softmax(s, axis=-1)
    o = jnp.einsum("bths,btshd->bthd", p, vh).reshape(B, T, E)
    return o @ wo.T + bo


def init_params(key, embed_dim):
    ks = jax.random.split(key, 6)
    scale = 1.0 / float(embed_dim) ** 0.5
    return {
        "in_proj_weight": jax.random.normal(ks[0], (3 * embed_dim, embed_dim), jnp.float32) * scale,
        "in_proj_bias": jax.random.normal(ks[1], (3 * embed_dim,), jnp.float32) * 0.1,
        "out_proj_weight": jax.random.normal(ks[2], (embed_dim, embed_dim), jnp.float32) * scale,
        "out_proj_bias": jax.random.normal(ks[3], (embed_dim,), jnp.float32) * 0.1,
        # scaled so sampled offsets span a few sequence positions (exercises the clamp)
        "offset_weight": jax.random.normal(ks[4], (2 * NUM_SAMPLES, embed_dim), jnp.float32) * (4.0 * scale),
        "offset_bias": jax.random.normal(ks[5], (2 * NUM_SAMPLES,), jnp.float32) * 0.5,
    }


if __name__ == "__main__":
    # 'highest' is only to make the correctness check tight; the kernel forces no
    # per-dot precision (gather is a precision-free select tree), so production on
    # v5e/v6e/v7x can run with default matmul precision for single-pass MXU dots.
    jax.config.update("jax_default_matmul_precision", "highest")

    B, T, E = 2, 8, EMBED_DIM
    key = jax.random.PRNGKey(0)
    kq, kk, kv, kparam = jax.random.split(key, 4)
    q = jax.random.normal(kq, (B, T, E), jnp.float32)
    k = jax.random.normal(kk, (B, T, E), jnp.float32)
    v = jax.random.normal(kv, (B, T, E), jnp.float32)
    params = init_params(kparam, E)

    out = deformable_attention(q, k, v, params)
    out = jax.block_until_ready(out)

    ref = jax.block_until_ready(reference_deformable_attention(q, k, v, params))

    assert out.shape == (B, T, E), out.shape
    if not jnp.allclose(out, ref, rtol=2e-3, atol=2e-3):
        raise AssertionError(
            f"kernel/reference mismatch, max abs err = {jnp.max(jnp.abs(out - ref))}")
    print("KERNEL_OK")
</pallas_src>

<mosaic_0001>
module attributes {stable_mosaic.version = 11 : i64} {
  func.func @_deformable_attn_kernel(%arg0: i32, %arg1: memref<16x96xf32, #tpu.memory_space<vmem>>, %arg2: memref<96x136xf32, #tpu.memory_space<vmem>>, %arg3: memref<1x136xf32, #tpu.memory_space<vmem>>, %arg4: memref<8x512xf32, #tpu.memory_space<vmem>>, %arg5: memref<512x64xf32, #tpu.memory_space<vmem>>, %arg6: memref<64x64xf32, #tpu.memory_space<vmem>>, %arg7: memref<64x512xf32, #tpu.memory_space<vmem>>, %arg8: memref<512x32xf32, #tpu.memory_space<vmem>>, %arg9: memref<1x32xf32, #tpu.memory_space<vmem>>, %arg10: memref<8x32xf32, #tpu.memory_space<vmem>>) attributes {dimension_semantics = [#tpu.dimension_semantics<parallel>], iteration_bounds = array<i64: 2>, scalar_prefetch = 0 : i64, scratch_operands = 0 : i64, tpu.core_type = #tpu.core_type<tc>, window_params = [{transform_indices = @transform_0, window_bounds = array<i64: 16, 96>}, {pipeline_mode = #tpu.pipeline_mode<synchronous>, transform_indices = @transform_1, window_bounds = array<i64: 96, 136>}, {pipeline_mode = #tpu.pipeline_mode<synchronous>, transform_indices = @transform_2, window_bounds = array<i64: 1, 136>}, {pipeline_mode = #tpu.pipeline_mode<synchronous>, transform_indices = @transform_3, window_bounds = array<i64: 8, 512>}, {pipeline_mode = #tpu.pipeline_mode<synchronous>, transform_indices = @transform_4, window_bounds = array<i64: 512, 64>}, {pipeline_mode = #tpu.pipeline_mode<synchronous>, transform_indices = @transform_5, window_bounds = array<i64: 64, 64>}, {pipeline_mode = #tpu.pipeline_mode<synchronous>, transform_indices = @transform_6, window_bounds = array<i64: 64, 512>}, {pipeline_mode = #tpu.pipeline_mode<synchronous>, transform_indices = @transform_7, window_bounds = array<i64: 512, 32>}, {pipeline_mode = #tpu.pipeline_mode<synchronous>, transform_indices = @transform_8, window_bounds = array<i64: 1, 32>}, {transform_indices = @transform_9, window_bounds = array<i64: 8, 32>}]} {
    %c0 = arith.constant 0 : index
    %c0_0 = arith.constant 0 : index
    %0 = vector.load %arg1[%c0, %c0_0] : memref<16x96xf32, #tpu.memory_space<vmem>>, vector<16x96xf32>
    %c0_1 = arith.constant 0 : index
    %c0_2 = arith.constant 0 : index
    %1 = vector.load %arg2[%c0_1, %c0_2] : memref<96x136xf32, #tpu.memory_space<vmem>>, vector<96x136xf32>
    %cst = arith.constant dense<0.000000e+00> : vector<16x136xf32>
    %2 = tpu.matmul %0, %1, %cst {dimension_numbers = #tpu.dot_dimension_numbers<[1], [0], [0], [1], [0, 0, 1, 1], [], []>, precision = #tpu.contract_precision<fp32>} : vector<16x96xf32>, vector<96x136xf32>, vector<16x136xf32> -> vector<16x136xf32>
    %c0_3 = arith.constant 0 : index
    %c0_4 = arith.constant 0 : index
    %3 = vector.load %arg3[%c0_3, %c0_4] : memref<1x136xf32, #tpu.memory_space<vmem>>, vector<1x136xf32>
    %4 = vector.broadcast %3 : vector<1x136xf32> to vector<16x136xf32>
    %5 = arith.addf %2, %4 : vector<16x136xf32>
    %6 = vector.extract_strided_slice %5 {offsets = [8, 0], sizes = [8, 64], strides = [1, 1]} : vector<16x136xf32> to vector<8x64xf32>
    %7 = vector.extract_strided_slice %5 {offsets = [0, 64], sizes = [8, 64], strides = [1, 1]} : vector<16x136xf32> to vector<8x64xf32>
    %8 = vector.extract_strided_slice %5 {offsets = [0, 128], sizes = [8, 8], strides = [1, 1]} : vector<16x136xf32> to vector<8x8xf32>
    %9 = tpu.iota {dimensions = array<i32: 0>} : vector<8x8xi32>
    %10 = arith.sitofp %9 : vector<8x8xi32> to vector<8x8xf32>
    %11 = arith.addf %10, %8 : vector<8x8xf32>
    %cst_5 = arith.constant 0.000000e+00 : f32
    %cst_6 = arith.constant 7.000000e+00 : f32
    %12 = vector.broadcast %cst_5 : f32 to vector<8x8xf32>
    %13 = arith.maximumf %12, %11 : vector<8x8xf32>
    %14 = vector.broadcast %cst_6 : f32 to vector<8x8xf32>
    %15 = arith.minimumf %14, %13 : vector<8x8xf32>
    %16 = arith.fptosi %15 : vector<8x8xf32> to vector<8x8xi32>
    %17 = arith.sitofp %16 : vector<8x8xi32> to vector<8x8xf32>
    %c0_7 = arith.constant 0 : index
    %c0_8 = arith.constant 0 : index
    %18 = vector.load %arg4[%c0_7, %c0_8] : memref<8x512xf32, #tpu.memory_space<vmem>>, vector<8x512xf32>
    %cst_9 = arith.constant dense<0.000000e+00> : vector<8x512xf32>
    %19 = tpu.matmul %17, %18, %cst_9 {dimension_numbers = #tpu.dot_dimension_numbers<[1], [0], [0], [1], [0, 0, 1, 1], [], []>, precision = #tpu.contract_precision<fp32>} : vector<8x8xf32>, vector<8x512xf32>, vector<8x512xf32> -> vector<8x512xf32>
    %cst_10 = arith.constant 5.000000e-01 : f32
    %20 = vector.broadcast %cst_10 : f32 to vector<8x512xf32>
    %21 = arith.addf %19, %20 : vector<8x512xf32>
    %22 = arith.fptosi %21 : vector<8x512xf32> to vector<8x512xi32>
    %23 = tpu.concatenate %6, %6, %6, %6, %6, %6, %6, %6 in 1 : vector<8x64xf32>, vector<8x64xf32>, vector<8x64xf32>, vector<8x64xf32>, vector<8x64xf32>, vector<8x64xf32>, vector<8x64xf32>, vector<8x64xf32> -> vector<8x512xf32>
    %cst_11 = arith.constant 0.000000e+00 : f32
    %24 = vector.broadcast %cst_11 : f32 to vector<8x512xf32>
    %c0_i32 = arith.constant 0 : i32
    %25 = vector.broadcast %c0_i32 : i32 to vector<8x512xi32>
    %26 = arith.cmpi eq, %22, %25 : vector<8x512xi32>
    %27 = vector.extract_strided_slice %23 {offsets = [0, 0], sizes = [1, 512], strides = [1, 1]} : vector<8x512xf32> to vector<1x512xf32>
    %cst_12 = arith.constant 0.000000e+00 : f32
    %28 = vector.shape_cast %27 : vector<1x512xf32> to vector<1x512xf32>
    %29 = vector.broadcast %28 : vector<1x512xf32> to vector<8x512xf32>
    %30 = vector.broadcast %cst_12 : f32 to vector<8x512xf32>
    %31 = arith.select %26, %29, %30 : vector<8x512xi1>, vector<8x512xf32>
    %32 = arith.addf %24, %31 : vector<8x512xf32>
    %c1_i32 = arith.constant 1 : i32
    %33 = vector.broadcast %c1_i32 : i32 to vector<8x512xi32>
    %34 = arith.cmpi eq, %22, %33 : vector<8x512xi32>
    %35 = vector.extract_strided_slice %23 {offsets = [1, 0], sizes = [1, 512], strides = [1, 1]} : vector<8x512xf32> to vector<1x512xf32>
    %cst_13 = arith.constant 0.000000e+00 : f32
    %36 = vector.shape_cast %35 : vector<1x512xf32> to vector<1x512xf32>
    %37 = vector.broadcast %36 : vector<1x512xf32> to vector<8x512xf32>
    %38 = vector.broadcast %cst_13 : f32 to vector<8x512xf32>
    %39 = arith.select %34, %37, %38 : vector<8x512xi1>, vector<8x512xf32>
    %40 = arith.addf %32, %39 : vector<8x512xf32>
    %c2_i32 = arith.constant 2 : i32
    %41 = vector.broadcast %c2_i32 : i32 to vector<8x512xi32>
    %42 = arith.cmpi eq, %22, %41 : vector<8x512xi32>
    %43 = vector.extract_strided_slice %23 {offsets = [2, 0], sizes = [1, 512], strides = [1, 1]} : vector<8x512xf32> to vector<1x512xf32>
    %cst_14 = arith.constant 0.000000e+00 : f32
    %44 = vector.shape_cast %43 : vector<1x512xf32> to vector<1x512xf32>
    %45 = vector.broadcast %44 : vector<1x512xf32> to vector<8x512xf32>
    %46 = vector.broadcast %cst_14 : f32 to vector<8x512xf32>
    %47 = arith.select %42, %45, %46 : vector<8x512xi1>, vector<8x512xf32>
    %48 = arith.addf %40, %47 : vector<8x512xf32>
    %c3_i32 = arith.constant 3 : i32
    %49 = vector.broadcast %c3_i32 : i32 to vector<8x512xi32>
    %50 = arith.cmpi eq, %22, %49 : vector<8x512xi32>
    %51 = vector.extract_strided_slice %23 {offsets = [3, 0], sizes = [1, 512], strides = [1, 1]} : vector<8x512xf32> to vector<1x512xf32>
    %cst_15 = arith.constant 0.000000e+00 : f32
    %52 = vector.shape_cast %51 : vector<1x512xf32> to vector<1x512xf32>
    %53 = vector.broadcast %52 : vector<1x512xf32> to vector<8x512xf32>
    %54 = vector.broadcast %cst_15 : f32 to vector<8x512xf32>
    %55 = arith.select %50, %53, %54 : vector<8x512xi1>, vector<8x512xf32>
    %56 = arith.addf %48, %55 : vector<8x512xf32>
    %c4_i32 = arith.constant 4 : i32
    %57 = vector.broadcast %c4_i32 : i32 to vector<8x512xi32>
    %58 = arith.cmpi eq, %22, %57 : vector<8x512xi32>
    %59 = vector.extract_strided_slice %23 {offsets = [4, 0], sizes = [1, 512], strides = [1, 1]} : vector<8x512xf32> to vector<1x512xf32>
    %cst_16 = arith.constant 0.000000e+00 : f32
    %60 = vector.shape_cast %59 : vector<1x512xf32> to vector<1x512xf32>
    %61 = vector.broadcast %60 : vector<1x512xf32> to vector<8x512xf32>
    %62 = vector.broadcast %cst_16 : f32 to vector<8x512xf32>
    %63 = arith.select %58, %61, %62 : vector<8x512xi1>, vector<8x512xf32>
    %64 = arith.addf %56, %63 : vector<8x512xf32>
    %c5_i32 = arith.constant 5 : i32
    %65 = vector.broadcast %c5_i32 : i32 to vector<8x512xi32>
    %66 = arith.cmpi eq, %22, %65 : vector<8x512xi32>
    %67 = vector.extract_strided_slice %23 {offsets = [5, 0], sizes = [1, 512], strides = [1, 1]} : vector<8x512xf32> to vector<1x512xf32>
    %cst_17 = arith.constant 0.000000e+00 : f32
    %68 = vector.shape_cast %67 : vector<1x512xf32> to vector<1x512xf32>
    %69 = vector.broadcast %68 : vector<1x512xf32> to vector<8x512xf32>
    %70 = vector.broadcast %cst_17 : f32 to vector<8x512xf32>
    %71 = arith.select %66, %69, %70 : vector<8x512xi1>, vector<8x512xf32>
    %72 = arith.addf %64, %71 : vector<8x512xf32>
    %c6_i32 = arith.constant 6 : i32
    %73 = vector.broadcast %c6_i32 : i32 to vector<8x512xi32>
    %74 = arith.cmpi eq, %22, %73 : vector<8x512xi32>
    %75 = vector.extract_strided_slice %23 {offsets = [6, 0], sizes = [1, 512], strides = [1, 1]} : vector<8x512xf32> to vector<1x512xf32>
    %cst_18 = arith.constant 0.000000e+00 : f32
    %76 = vector.shape_cast %75 : vector<1x512xf32> to vector<1x512xf32>
    %77 = vector.broadcast %76 : vector<1x512xf32> to vector<8x512xf32>
    %78 = vector.broadcast %cst_18 : f32 to vector<8x512xf32>
    %79 = arith.select %74, %77, %78 : vector<8x512xi1>, vector<8x512xf32>
    %80 = arith.addf %72, %79 : vector<8x512xf32>
    %c7_i32 = arith.constant 7 : i32
    %81 = vector.broadcast %c7_i32 : i32 to vector<8x512xi32>
    %82 = arith.cmpi eq, %22, %81 : vector<8x512xi32>
    %83 = vector.extract_strided_slice %23 {offsets = [7, 0], sizes = [1, 512], strides = [1, 1]} : vector<8x512xf32> to vector<1x512xf32>
    %cst_19 = arith.constant 0.000000e+00 : f32
    %84 = vector.shape_cast %83 : vector<1x512xf32> to vector<1x512xf32>
    %85 = vector.broadcast %84 : vector<1x512xf32> to vector<8x512xf32>
    %86 = vector.broadcast %cst_19 : f32 to vector<8x512xf32>
    %87 = arith.select %82, %85, %86 : vector<8x512xi1>, vector<8x512xf32>
    %88 = arith.addf %80, %87 : vector<8x512xf32>
    %89 = tpu.concatenate %7, %7, %7, %7, %7, %7, %7, %7 in 1 : vector<8x64xf32>, vector<8x64xf32>, vector<8x64xf32>, vector<8x64xf32>, vector<8x64xf32>, vector<8x64xf32>, vector<8x64xf32>, vector<8x64xf32> -> vector<8x512xf32>
    %90 = arith.mulf %89, %88 : vector<8x512xf32>
    %c0_20 = arith.constant 0 : index
    %c0_21 = arith.constant 0 : index
    %91 = vector.load %arg5[%c0_20, %c0_21] : memref<512x64xf32, #tpu.memory_space<vmem>>, vector<512x64xf32>
    %cst_22 = arith.constant dense<0.000000e+00> : vector<8x64xf32>
    %92 = tpu.matmul %90, %91, %cst_22 {dimension_numbers = #tpu.dot_dimension_numbers<[1], [0], [0], [1], [0, 0, 1, 1], [], []>, precision = #tpu.contract_precision<fp32>} : vector<8x512xf32>, vector<512x64xf32>, vector<8x64xf32> -> vector<8x64xf32>
    %cst_23 = arith.constant dense<0xFF800000> : vector<8xf32>
    %93 = vector.multi_reduction <maximumf>, %92, %cst_23 [1] : vector<8x64xf32> to vector<8xf32>
    %94 = vector.shape_cast %93 : vector<8xf32> to vector<8x1xf32>
    %95 = vector.broadcast %94 : vector<8x1xf32> to vector<8x64xf32>
    %96 = arith.subf %92, %95 : vector<8x64xf32>
    %97 = math.exp %96 : vector<8x64xf32>
    %c0_24 = arith.constant 0 : index
    %c0_25 = arith.constant 0 : index
    %98 = vector.load %arg6[%c0_24, %c0_25] : memref<64x64xf32, #tpu.memory_space<vmem>>, vector<64x64xf32>
    %cst_26 = arith.constant dense<0.000000e+00> : vector<8x64xf32>
    %99 = tpu.matmul %97, %98, %cst_26 {dimension_numbers = #tpu.dot_dimension_numbers<[1], [0], [0], [1], [0, 0, 1, 1], [], []>, precision = #tpu.contract_precision<fp32>} : vector<8x64xf32>, vector<64x64xf32>, vector<8x64xf32> -> vector<8x64xf32>
    %100 = tpu.reciprocal %99 : vector<8x64xf32> -> vector<8x64xf32>
    %101 = arith.mulf %97, %100 : vector<8x64xf32>
    %c0_27 = arith.constant 0 : index
    %c0_28 = arith.constant 0 : index
    %102 = vector.load %arg7[%c0_27, %c0_28] : memref<64x512xf32, #tpu.memory_space<vmem>>, vector<64x512xf32>
    %cst_29 = arith.constant dense<0.000000e+00> : vector<8x512xf32>
    %103 = tpu.matmul %101, %102, %cst_29 {dimension_numbers = #tpu.dot_dimension_numbers<[1], [0], [0], [1], [0, 0, 1, 1], [], []>, precision = #tpu.contract_precision<fp32>} : vector<8x64xf32>, vector<64x512xf32>, vector<8x512xf32> -> vector<8x512xf32>
    %104 = arith.mulf %103, %88 : vector<8x512xf32>
    %c0_30 = arith.constant 0 : index
    %c0_31 = arith.constant 0 : index
    %105 = vector.load %arg8[%c0_30, %c0_31] : memref<512x32xf32, #tpu.memory_space<vmem>>, vector<512x32xf32>
    %cst_32 = arith.constant dense<0.000000e+00> : vector<8x32xf32>
    %106 = tpu.matmul %104, %105, %cst_32 {dimension_numbers = #tpu.dot_dimension_numbers<[1], [0], [0], [1], [0, 0, 1, 1], [], []>, precision = #tpu.contract_precision<fp32>} : vector<8x512xf32>, vector<512x32xf32>, vector<8x32xf32> -> vector<8x32xf32>
    %c0_33 = arith.constant 0 : index
    %c0_34 = arith.constant 0 : index
    %107 = vector.load %arg9[%c0_33, %c0_34] : memref<1x32xf32, #tpu.memory_space<vmem>>, vector<1x32xf32>
    %108 = vector.broadcast %107 : vector<1x32xf32> to vector<8x32xf32>
    %109 = arith.addf %106, %108 : vector<8x32xf32>
    %c0_35 = arith.constant 0 : index
    %c0_36 = arith.constant 0 : index
    %110 = vector.load %arg10[%c0_35, %c0_36] : memref<8x32xf32, #tpu.memory_space<vmem>>, vector<8x32xf32>
    tpu.vector_store %arg10[%c0_35, %c0_36], %109 {strides = array<i32>} : memref<8x32xf32, #tpu.memory_space<vmem>>, vector<8x32xf32>,
    return
  }
  func.func @transform_0(%arg0: i32) -> (i32, i32) {
    %c0_i32 = arith.constant 0 : i32
    %c0_i32_0 = arith.constant 0 : i32
    return %arg0, %c0_i32 : i32, i32
  }
  func.func @transform_1(%arg0: i32) -> (i32, i32) {
    %c0_i32 = arith.constant 0 : i32
    %c0_i32_0 = arith.constant 0 : i32
    %c0_i32_1 = arith.constant 0 : i32
    return %c0_i32, %c0_i32_0 : i32, i32
  }
  func.func @transform_2(%arg0: i32) -> (i32, i32) {
    %c0_i32 = arith.constant 0 : i32
    %c0_i32_0 = arith.constant 0 : i32
    %c0_i32_1 = arith.constant 0 : i32
    return %c0_i32, %c0_i32_0 : i32, i32
  }
  func.func @transform_3(%arg0: i32) -> (i32, i32) {
    %c0_i32 = arith.constant 0 : i32
    %c0_i32_0 = arith.constant 0 : i32
    %c0_i32_1 = arith.constant 0 : i32
    return %c0_i32, %c0_i32_0 : i32, i32
  }
  func.func @transform_4(%arg0: i32) -> (i32, i32) {
    %c0_i32 = arith.constant 0 : i32
    %c0_i32_0 = arith.constant 0 : i32
    %c0_i32_1 = arith.constant 0 : i32
    return %c0_i32, %c0_i32_0 : i32, i32
  }
  func.func @transform_5(%arg0: i32) -> (i32, i32) {
    %c0_i32 = arith.constant 0 : i32
    %c0_i32_0 = arith.constant 0 : i32
    %c0_i32_1 = arith.constant 0 : i32
    return %c0_i32, %c0_i32_0 : i32, i32
  }
  func.func @transform_6(%arg0: i32) -> (i32, i32) {
    %c0_i32 = arith.constant 0 : i32
    %c0_i32_0 = arith.constant 0 : i32
    %c0_i32_1 = arith.constant 0 : i32
    return %c0_i32, %c0_i32_0 : i32, i32
  }
  func.func @transform_7(%arg0: i32) -> (i32, i32) {
    %c0_i32 = arith.constant 0 : i32
    %c0_i32_0 = arith.constant 0 : i32
    %c0_i32_1 = arith.constant 0 : i32
    return %c0_i32, %c0_i32_0 : i32, i32
  }
  func.func @transform_8(%arg0: i32) -> (i32, i32) {
    %c0_i32 = arith.constant 0 : i32
    %c0_i32_0 = arith.constant 0 : i32
    %c0_i32_1 = arith.constant 0 : i32
    return %c0_i32, %c0_i32_0 : i32, i32
  }
  func.func @transform_9(%arg0: i32) -> (i32, i32) {
    %c0_i32 = arith.constant 0 : i32
    %c0_i32_0 = arith.constant 0 : i32
    return %arg0, %c0_i32 : i32, i32
  }
}

</mosaic_0001>

<llo_original>
// kernel: tpu_custom_call.1
$region0: #{tpu_custom_call.1}
  #allocation0 [shape = 'u32[]', space=smem, size = 0x4, offset = 0x4, fixed_abs, tag = 'smem constant byte address 0x4 - core index']
  #allocation1 [shape = 'u32[72,128]{1,0:T(1,128)}', space=vmem, size = 0x9000, scoped, tag = 'internal scratch']
  %s0 = inlined_call_operand.vmem [shape: f32[32,96], index: 0, kind: input, shape index: {}]
  %s1 = inlined_call_operand.vmem [shape: f32[96,136], index: 1, kind: input, shape index: {}]
  %s2 = inlined_call_operand.vmem [shape: f32[1,136], index: 2, kind: input, shape index: {}]
  %s3 = inlined_call_operand.vmem [shape: f32[8,512], index: 3, kind: input, shape index: {}]
  %s4 = inlined_call_operand.vmem [shape: f32[512,64], index: 4, kind: input, shape index: {}]
  %s5 = inlined_call_operand.vmem [shape: f32[64,64], index: 5, kind: input, shape index: {}]
  %s6 = inlined_call_operand.vmem [shape: f32[64,512], index: 6, kind: input, shape index: {}]
  %s7 = inlined_call_operand.vmem [shape: f32[512,32], index: 7, kind: input, shape index: {}]
  %s8 = inlined_call_operand.vmem [shape: f32[1,32], index: 8, kind: input, shape index: {}]
  %s9 = inlined_call_operand.hbm [shape: f32[16,32], index: 9, kind: output, shape index: {}]
  %s10 = sld [smem:[#allocation0]]
  $region69: #{tpu_custom_call.1} parent=0
    _
  %s12 = ssub.s32 1, %s10
  %s13 = scalar_select 0, %s12, %s10
  $region1: #{tpu_custom_call.1} parent=0
    #allocation2 [shape = 'u8[8192]{0}', space=vmem, size = 0x2000, scoped, tag = 'output window, operand 0']
    #allocation3 [shape = 's32[2]{0}', space=sflag, size = 0x8, scoped, tag = 'scoped memory for tpu_custom_call.1']
    %14 = vsyncpa [#allocation3], 0
    %s15 = scalar_lea.sflag [#allocation3], 1
    %16 = vsyncpa %s15, 0
    loop: start=0, step=1, limit=4
    $region2: #{tpu_custom_call.1} parent=1 // loop_pre_header
      _
    $region3: #{tpu_custom_call.1} parent=1 // loop_header
      %s18 = sphi 0, %s22
      %p19 = scmp.ge.s32.totalorder %s18, 4
      %s28 = sphi 0, %s30
      %s31 = sphi 0, %s28
      %s32 = sphi 0, %s31
      %s48 = sphi 0, %s32
      %s52 = sphi 0, %s52
      %s54 = sphi 0, %s52
      %s55 = sphi 0, %s54
      %s69 = sphi 0, %s55
      %s73 = sphi 0, %s73
      %s75 = sphi 0, %s73
      %s76 = sphi 0, %s75
      %s90 = sphi 0, %s76
      %s94 = sphi 0, %s94
      %s96 = sphi 0, %s94
      %s97 = sphi 0, %s96
      %s111 = sphi 0, %s97
      %s115 = sphi 0, %s115
      %s117 = sphi 0, %s115
      %s118 = sphi 0, %s117
      %s132 = sphi 0, %s118
      %s136 = sphi 0, %s136
      %s138 = sphi 0, %s136
      %s139 = sphi 0, %s138
      %s153 = sphi 0, %s139
      %s157 = sphi 0, %s157
      %s159 = sphi 0, %s157
      %s160 = sphi 0, %s159
      %s174 = sphi 0, %s160
      %s178 = sphi 0, %s178
      %s180 = sphi 0, %s178
      %s181 = sphi 0, %s180
      %s195 = sphi 0, %s181
      %s199 = sphi 0, %s199
      %s201 = sphi 0, %s199
      %s202 = sphi 0, %s201
      %s216 = sphi 0, %s202
      %s222 = sphi 0, %s224
      %s225 = sphi 0, %s222
      %s226 = sphi 0, %s225
      %s242 = sphi 0, %s226
    $region4: #{tpu_custom_call.1} parent=1 // loop_header_branch
      %21 = sbr.rel (%p19) target = $region8
    $region5: #{tpu_custom_call.1} parent=1 // loop_body
      %s23 = ssub.s32 %s18, 1
      %s24 = ssub.s32 %s18, 2
      %s25 = sadd.s32 %s18, 1
      %s26 = ssub.s32 %s18, %s25
      %p27 = scmp.eq.s32.totalorder %s26, 0
      %s29 = sadd.s32 %s28, 1
      %s30 = scalar_select %p27, %s28, %s29
      %p33 = pneg %p27
      %p34 = scmp.eq.s32.totalorder %s18, 1
      %p35 = por %p33, %p34
      %p36 = scmp.ne.s32.totalorder %s28, %s31
      %p37 = scmp.eq.s32.totalorder %s18, 0
      %p38 = por %p36, %p37
      %p39 = scmp.ne.s32.totalorder %s28, %s31
      %p40 = scmp.eq.s32.totalorder %s23, 1
      %p41 = por %p39, %p40
      %p42 = scmp.ne.s32.totalorder %s31, %s32
      %p43 = scmp.eq.s32.totalorder %s23, 0
      %p44 = por %p42, %p43
      %p45 = scmp.ne.s32.totalorder %s31, %s32
      %p46 = scmp.eq.s32.totalorder %s24, 1
      %p47 = por %p45, %p46
      %p49 = scmp.ne.s32.totalorder %s32, %s48
      %p50 = scmp.eq.s32.totalorder %s24, 0
      %p51 = por %p49, %p50
      %s53 = sadd.s32 %s52, 1
      %p56 = scmp.eq.s32.totalorder %s18, 1
      %p57 = scmp.ne.s32.totalorder %s52, %s54
      %p58 = scmp.eq.s32.totalorder %s18, 0
      %p59 = por %p57, %p58
      %p60 = scmp.ne.s32.totalorder %s52, %s54
      %p61 = scmp.eq.s32.totalorder %s23, 1
      %p62 = por %p60, %p61
      %p63 = scmp.ne.s32.totalorder %s54, %s55
      %p64 = scmp.eq.s32.totalorder %s23, 0
      %p65 = por %p63, %p64
      %p66 = scmp.ne.s32.totalorder %s54, %s55
      %p67 = scmp.eq.s32.totalorder %s24, 1
      %p68 = por %p66, %p67
      %p70 = scmp.ne.s32.totalorder %s55, %s69
      %p71 = scmp.eq.s32.totalorder %s24, 0
      %p72 = por %p70, %p71
      %s74 = sadd.s32 %s73, 1
      %p77 = scmp.eq.s32.totalorder %s18, 1
      %p78 = scmp.ne.s32.totalorder %s73, %s75
      %p79 = scmp.eq.s32.totalorder %s18, 0
      %p80 = por %p78, %p79
      %p81 = scmp.ne.s32.totalorder %s73, %s75
      %p82 = scmp.eq.s32.totalorder %s23, 1
      %p83 = por %p81, %p82
      %p84 = scmp.ne.s32.totalorder %s75, %s76
      %p85 = scmp.eq.s32.totalorder %s23, 0
      %p86 = por %p84, %p85
      %p87 = scmp.ne.s32.totalorder %s75, %s76
      %p88 = scmp.eq.s32.totalorder %s24, 1
      %p89 = por %p87, %p88
      %p91 = scmp.ne.s32.totalorder %s76, %s90
      %p92 = scmp.eq.s32.totalorder %s24, 0
      %p93 = por %p91, %p92
      %s95 = sadd.s32 %s94, 1
      %p98 = scmp.eq.s32.totalorder %s18, 1
      %p99 = scmp.ne.s32.totalorder %s94, %s96
      %p100 = scmp.eq.s32.totalorder %s18, 0
      %p101 = por %p99, %p100
      %p102 = scmp.ne.s32.totalorder %s94, %s96
      %p103 = scmp.eq.s32.totalorder %s23, 1
      %p104 = por %p102, %p103
      %p105 = scmp.ne.s32.totalorder %s96, %s97
      %p106 = scmp.eq.s32.totalorder %s23, 0
      %p107 = por %p105, %p106
      %p108 = scmp.ne.s32.totalorder %s96, %s97
      %p109 = scmp.eq.s32.totalorder %s24, 1
      %p110 = por %p108, %p109
      %p112 = scmp.ne.s32.totalorder %s97, %s111
      %p113 = scmp.eq.s32.totalorder %s24, 0
      %p114 = por %p112, %p113
      %s116 = sadd.s32 %s115, 1
      %p119 = scmp.eq.s32.totalorder %s18, 1
      %p120 = scmp.ne.s32.totalorder %s115, %s117
      %p121 = scmp.eq.s32.totalorder %s18, 0
      %p122 = por %p120, %p121
      %p123 = scmp.ne.s32.totalorder %s115, %s117
      %p124 = scmp.eq.s32.totalorder %s23, 1
      %p125 = por %p123, %p124
      %p126 = scmp.ne.s32.totalorder %s117, %s118
      %p127 = scmp.eq.s32.totalorder %s23, 0
      %p128 = por %p126, %p127
      %p129 = scmp.ne.s32.totalorder %s117, %s118
      %p130 = scmp.eq.s32.totalorder %s24, 1
      %p131 = por %p129, %p130
      %p133 = scmp.ne.s32.totalorder %s118, %s132
      %p134 = scmp.eq.s32.totalorder %s24, 0
      %p135 = por %p133, %p134
      %s137 = sadd.s32 %s136, 1
      %p140 = scmp.eq.s32.totalorder %s18, 1
      %p141 = scmp.ne.s32.totalorder %s136, %s138
      %p142 = scmp.eq.s32.totalorder %s18, 0
      %p143 = por %p141, %p142
      %p144 = scmp.ne.s32.totalorder %s136, %s138
      %p145 = scmp.eq.s32.totalorder %s23, 1
      %p146 = por %p144, %p145
      %p147 = scmp.ne.s32.totalorder %s138, %s139
      %p148 = scmp.eq.s32.totalorder %s23, 0
      %p149 = por %p147, %p148
      %p150 = scmp.ne.s32.totalorder %s138, %s139
      %p151 = scmp.eq.s32.totalorder %s24, 1
      %p152 = por %p150, %p151
      %p154 = scmp.ne.s32.totalorder %s139, %s153
      %p155 = scmp.eq.s32.totalorder %s24, 0
      %p156 = por %p154, %p155
      %s158 = sadd.s32 %s157, 1
      %p161 = scmp.eq.s32.totalorder %s18, 1
      %p162 = scmp.ne.s32.totalorder %s157, %s159
      %p163 = scmp.eq.s32.totalorder %s18, 0
      %p164 = por %p162, %p163
      %p165 = scmp.ne.s32.totalorder %s157, %s159
      %p166 = scmp.eq.s32.totalorder %s23, 1
      %p167 = por %p165, %p166
      %p168 = scmp.ne.s32.totalorder %s159, %s160
      %p169 = scmp.eq.s32.totalorder %s23, 0
      %p170 = por %p168, %p169
      %p171 = scmp.ne.s32.totalorder %s159, %s160
      %p172 = scmp.eq.s32.totalorder %s24, 1
      %p173 = por %p171, %p172
      %p175 = scmp.ne.s32.totalorder %s160, %s174
      %p176 = scmp.eq.s32.totalorder %s24, 0
      %p177 = por %p175, %p176
      %s179 = sadd.s32 %s178, 1
      %p182 = scmp.eq.s32.totalorder %s18, 1
      %p183 = scmp.ne.s32.totalorder %s178, %s180
      %p184 = scmp.eq.s32.totalorder %s18, 0
      %p185 = por %p183, %p184
      %p186 = scmp.ne.s32.totalorder %s178, %s180
      %p187 = scmp.eq.s32.totalorder %s23, 1
      %p188 = por %p186, %p187
      %p189 = scmp.ne.s32.totalorder %s180, %s181
      %p190 = scmp.eq.s32.totalorder %s23, 0
      %p191 = por %p189, %p190
      %p192 = scmp.ne.s32.totalorder %s180, %s181
      %p193 = scmp.eq.s32.totalorder %s24, 1
      %p194 = por %p192, %p193
      %p196 = scmp.ne.s32.totalorder %s181, %s195
      %p197 = scmp.eq.s32.totalorder %s24, 0
      %p198 = por %p196, %p197
      %s200 = sadd.s32 %s199, 1
      %p203 = scmp.eq.s32.totalorder %s18, 1
      %p204 = scmp.ne.s32.totalorder %s199, %s201
      %p205 = scmp.eq.s32.totalorder %s18, 0
      %p206 = por %p204, %p205
      %p207 = scmp.ne.s32.totalorder %s199, %s201
      %p208 = scmp.eq.s32.totalorder %s23, 1
      %p209 = por %p207, %p208
      %p210 = scmp.ne.s32.totalorder %s201, %s202
      %p211 = scmp.eq.s32.totalorder %s23, 0
      %p212 = por %p210, %p211
      %p213 = scmp.ne.s32.totalorder %s201, %s202
      %p214 = scmp.eq.s32.totalorder %s24, 1
      %p215 = por %p213, %p214
      %p217 = scmp.ne.s32.totalorder %s202, %s216
      %p218 = scmp.eq.s32.totalorder %s24, 0
      %p219 = por %p217, %p218
      %s220 = ssub.s32 %s18, %s25
      %p221 = scmp.eq.s32.totalorder %s220, 0
      %s223 = sadd.s32 %s222, 1
      %s224 = scalar_select %p221, %s222, %s223
      %p227 = pneg %p221
      %p228 = scmp.eq.s32.totalorder %s18, 1
      %p229 = por %p227, %p228
      %p230 = scmp.ne.s32.totalorder %s222, %s225
      %p231 = scmp.eq.s32.totalorder %s18, 0
      %p232 = por %p230, %p231
      %p233 = scmp.ne.s32.totalorder %s222, %s225
      %p234 = scmp.eq.s32.totalorder %s23, 1
      %p235 = por %p233, %p234
      %p236 = scmp.ne.s32.totalorder %s225, %s226
      %p237 = scmp.eq.s32.totalorder %s23, 0
      %p238 = por %p236, %p237
      %p239 = scmp.ne.s32.totalorder %s225, %s226
      %p240 = scmp.eq.s32.totalorder %s24, 1
      %p241 = por %p239, %p240
      %p243 = scmp.ne.s32.totalorder %s226, %s242
      %p244 = scmp.eq.s32.totalorder %s24, 0
      %p245 = por %p243, %p244
      %p246 = scmp.le.s32.totalorder 1, %s18
      %p247 = scmp.lt.s32.totalorder %s18, 3
      %p248 = pnand %p246, %p247
      %p249 = pneg %p248
      // Predicated region
      $region9: #{tpu_custom_call.1} parent=5 // pred_check
        _
      $region10: #{tpu_custom_call.1} parent=5 // pred_check_branch
        %251 = sbr.rel (%p248) target = $region12
      $region11: #{tpu_custom_call.1} parent=5 // pred_region
        %s252 = ssub.s32 %s18, 1
        // Predicated region
        $region13: #{tpu_custom_call.1} parent=11 // pred_check
          %p253 = pneg %p65
        $region14: #{tpu_custom_call.1} parent=11 // pred_check_branch
          %255 = sbr.rel (%p253) target = $region16
        $region15: #{tpu_custom_call.1} parent=11 // pred_region
          _
        $region16: #{tpu_custom_call.1} parent=11 // pred_fallthru
          _
        // Predicated region
        $region17: #{tpu_custom_call.1} parent=11 // pred_check
          %p256 = pneg %p86
        $region18: #{tpu_custom_call.1} parent=11 // pred_check_branch
          %258 = sbr.rel (%p256) target = $region20
        $region19: #{tpu_custom_call.1} parent=11 // pred_region
          _
        $region20: #{tpu_custom_call.1} parent=11 // pred_fallthru
          _
        // Predicated region
        $region21: #{tpu_custom_call.1} parent=11 // pred_check
          %p259 = pneg %p107
        $region22: #{tpu_custom_call.1} parent=11 // pred_check_branch
          %261 = sbr.rel (%p259) target = $region24
        $region23: #{tpu_custom_call.1} parent=11 // pred_region
          _
        $region24: #{tpu_custom_call.1} parent=11 // pred_fallthru
          _
        // Predicated region
        $region25: #{tpu_custom_call.1} parent=11 // pred_check
          %p262 = pneg %p128
        $region26: #{tpu_custom_call.1} parent=11 // pred_check_branch
          %264 = sbr.rel (%p262) target = $region28
        $region27: #{tpu_custom_call.1} parent=11 // pred_region
          _
        $region28: #{tpu_custom_call.1} parent=11 // pred_fallthru
          _
        // Predicated region
        $region29: #{tpu_custom_call.1} parent=11 // pred_check
          %p265 = pneg %p149
        $region30: #{tpu_custom_call.1} parent=11 // pred_check_branch
          %267 = sbr.rel (%p265) target = $region32
        $region31: #{tpu_custom_call.1} parent=11 // pred_region
          _
        $region32: #{tpu_custom_call.1} parent=11 // pred_fallthru
          _
        // Predicated region
        $region33: #{tpu_custom_call.1} parent=11 // pred_check
          %p268 = pneg %p170
        $region34: #{tpu_custom_call.1} parent=11 // pred_check_branch
          %270 = sbr.rel (%p268) target = $region36
        $region35: #{tpu_custom_call.1} parent=11 // pred_region
          _
        $region36: #{tpu_custom_call.1} parent=11 // pred_fallthru
          _
        // Predicated region
        $region37: #{tpu_custom_call.1} parent=11 // pred_check
          %p271 = pneg %p191
        $region38: #{tpu_custom_call.1} parent=11 // pred_check_branch
          %273 = sbr.rel (%p271) target = $region40
        $region39: #{tpu_custom_call.1} parent=11 // pred_region
          _
        $region40: #{tpu_custom_call.1} parent=11 // pred_fallthru
          _
        // Predicated region
        $region41: #{tpu_custom_call.1} parent=11 // pred_check
          %p274 = pneg %p212
        $region42: #{tpu_custom_call.1} parent=11 // pred_check_branch
          %276 = sbr.rel (%p274) target = $region44
        $region43: #{tpu_custom_call.1} parent=11 // pred_region
          _
        $region44: #{tpu_custom_call.1} parent=11 // pred_fallthru
          _
      $region12: #{tpu_custom_call.1} parent=5 // pred_fallthru
        _
      %p277 = scmp.lt.s32.totalorder %s18, 2
      // Predicated region
      $region45: #{tpu_custom_call.1} parent=5 // pred_check
        %p278 = pneg %p277
      $region46: #{tpu_custom_call.1} parent=5 // pred_check_branch
        %280 = sbr.rel (%p278) target = $region48
      $region47: #{tpu_custom_call.1} parent=5 // pred_region
        // Predicated region
        $region49: #{tpu_custom_call.1} parent=47 // pred_check
          %p281 = pneg %p38
        $region50: #{tpu_custom_call.1} parent=47 // pred_check_branch
          %283 = sbr.rel (%p281) target = $region52
        $region51: #{tpu_custom_call.1} parent=47 // pred_region
          %s284 = smul.u32 2, %s18
          %p285 = scmp.lt.s32.totalorder %s284, 3
          %s286 = scalar_select %p285, %s284, 3
          %s287 = smul.addr %s286, 8
          %s288 = scalar_lea.vmem %s0, %s287
          %s289 = smul.u32 2, %s18
        $region52: #{tpu_custom_call.1} parent=47 // pred_fallthru
          _
      $region48: #{tpu_custom_call.1} parent=5 // pred_fallthru
        _
      %p290 = scmp.le.s32.totalorder 1, %s18
      %p291 = scmp.lt.s32.totalorder %s18, 3
      %p292 = pnand %p290, %p291
      %p293 = pneg %p292
      // Predicated region
      $region53: #{tpu_custom_call.1} parent=5 // pred_check
        _
      $region54: #{tpu_custom_call.1} parent=5 // pred_check_branch
        %295 = sbr.rel (%p292) target = $region56
      $region55: #{tpu_custom_call.1} parent=5 // pred_region
        %s296 = ssub.s32 %s18, 1
        %s297 = smul.u32 2, %s23
        %p298 = scmp.lt.s32.totalorder %s297, 3
        %s299 = scalar_select %p298, %s297, 3
        %s300 = smul.addr %s299, 8
        %s301 = scalar_lea.vmem %s0, %s300
        %p302 = pneg %p44
        %p303 = pneg %p41
        %p304 = pneg %p65
        %p305 = pneg %p62
        %p306 = pneg %p86
        %p307 = pneg %p83
        %p308 = pneg %p107
        %p309 = pneg %p104
        %p310 = pneg %p128
        %p311 = pneg %p125
        %p312 = pneg %p149
        %p313 = pneg %p146
        %p314 = pneg %p170
        %p315 = pneg %p167
        %p316 = pneg %p191
        %p317 = pneg %p188
        %p318 = pneg %p212
        %p319 = pneg %p209
        %p320 = pneg %p238
        %p321 = pneg %p235
        %s322 = sand.u32 %s225, 1
        %s323 = scalar_lea.sflag [#allocation3], %s322
        %s324 = sand.u32 %s225, 1
        %s325 = smul.addr %s324, 8
        %s326 = scalar_lea.vmem [#allocation2], %s325
        %s327 = smul.u32 2, %s23
        %p328 = scmp.lt.s32.totalorder %s327, 3
        %s329 = scalar_select %p328, %s327, 3
        %s330 = smul.addr %s329, 8
        %s331 = scalar_lea.vmem %s0, %s330
        %s332 = smul.u32 2, %s23
        %v333 = vld [vmem:[%s331] sm:$0xff]
        %v334 = vld [vmem:[%s331 + $0x8] sm:$0xff]
        %v335 = vld [vmem:[%s1] sm:$0xff]
        %v336 = vld [vmem:[%s1 + $0x8] sm:$0xff]
        %v337 = vld [vmem:[%s1 + $0x10] sm:$0xff]
        %v338 = vld [vmem:[%s1 + $0x18] sm:$0xff]
        %v339 = vld [vmem:[%s1 + $0x20] sm:$0xff]
        %v340 = vld [vmem:[%s1 + $0x28] sm:$0xff]
        %v341 = vld [vmem:[%s1 + $0x30] sm:$0xff]
        %v342 = vld [vmem:[%s1 + $0x38] sm:$0xff]
        %v343 = vld [vmem:[%s1 + $0x40] sm:$0xff]
        %v344 = vld [vmem:[%s1 + $0x48] sm:$0xff]
        %v345 = vld [vmem:[%s1 + $0x50] sm:$0xff]
        %v346 = vld [vmem:[%s1 + $0x58] sm:$0xff]
        %v347 = vld [vmem:[%s1 + $0x60] sm:$0xff]
        %v348 = vld [vmem:[%s1 + $0x68] sm:$0xff]
        %v349 = vld [vmem:[%s1 + $0x70] sm:$0xff]
        %v350 = vld [vmem:[%s1 + $0x78] sm:$0xff]
        %v351 = vld [vmem:[%s1 + $0x80] sm:$0xff]
        %v352 = vld [vmem:[%s1 + $0x88] sm:$0xff]
        %v353 = vld [vmem:[%s1 + $0x90] sm:$0xff]
        %v354 = vld [vmem:[%s1 + $0x98] sm:$0xff]
        %v355 = vld [vmem:[%s1 + $0xa0] sm:$0xff]
        %v356 = vld [vmem:[%s1 + $0xa8] sm:$0xff]
        %v357 = vld [vmem:[%s1 + $0xb0] sm:$0xff]
        %v358 = vld [vmem:[%s1 + $0xb8] sm:$0xff]
        %v359 = vld [vmem:[%s2] sm:$0x3]
        %v361 = vperm.slane %v359, 0
        %v362 = vperm.slane %v359, 1
        %vm365 = vcmask 785408
        %v367 = vsel %vm365, %v333, 0
        %v370 = vsel %vm365, %v334, 0
        %372 = vmatpush.msra.mxu0 0.0
        %373 = vmatpush.msra.mxu0 0.0
        %374 = vmatpush.msra.mxu0 0.0
        %375 = vmatpush.msra.mxu0 0.0
        %v376 = vand.u32 %v357, 4294901760
        %377 = vmatpush.msra.mxu0 %v376
        %v378 = vand.u32 %v355, 4294901760
        %379 = vmatpush.msra.mxu0 %v378
        %v380 = vand.u32 %v353, 4294901760
        %381 = vmatpush.msra.mxu0 %v380
        %v382 = vand.u32 %v351, 4294901760
        %383 = vmatpush.msra.mxu0 %v382
        %v384 = vand.u32 %v349, 4294901760
        %385 = vmatpush.msra.mxu0 %v384
        %v386 = vand.u32 %v347, 4294901760
        %387 = vmatpush.msra.mxu0 %v386
        %v388 = vand.u32 %v345, 4294901760
        %389 = vmatpush.msra.mxu0 %v388
        %v390 = vand.u32 %v343, 4294901760
        %391 = vmatpush.msra.mxu0 %v390
        %v392 = vand.u32 %v341, 4294901760
        %393 = vmatpush.msra.mxu0 %v392
        %v394 = vand.u32 %v339, 4294901760
        %395 = vmatpush.msra.mxu0 %v394
        %v396 = vand.u32 %v337, 4294901760
        %397 = vmatpush.msra.mxu0 %v396
        %v398 = vand.u32 %v335, 4294901760
        %399 = vmatpush.msra.mxu0 %v398
        %v400 = vand.u32 %v367, 4294901760
        %v401 = vsub.f32 %v367, %v400
        %v402 = vand.u32 %v401, 4294901760
        %v403 = vsub.f32 %v401, %v402
        %v404 = vand.u32 %v403, 4294901760
        %405 = vmatmul.f32.gmra.mxu0 %v404
        %v406 = vpop.f32.mrf.mxu0
        %v407 = vadd.f32 %v361, %v406
        %v408 = vand.u32 %v370, 4294901760
        %v409 = vsub.f32 %v370, %v408
        %v410 = vand.u32 %v409, 4294901760
        %v411 = vsub.f32 %v409, %v410
        %v412 = vand.u32 %v411, 4294901760
        %413 = vmatmul.f32.gmra.mxu0 %v412
        %v414 = vpop.f32.mrf.mxu0
        %v415 = vadd.f32 %v361, %v414
        %416 = vdwg.mxu0
        %417 = vmatpush.msra.mxu0 0.0
        %418 = vmatpush.msra.mxu0 0.0
        %419 = vmatpush.msra.mxu0 0.0
        %420 = vmatpush.msra.mxu0 0.0
        %v421 = vand.u32 %v357, 4294901760
        %v422 = vsub.f32 %v357, %v421
        %v423 = vand.u32 %v422, 4294901760
        %v424 = vsub.f32 %v422, %v423
        %v425 = vand.u32 %v424, 4294901760
        %426 = vmatpush.msra.mxu0 %v425
        %v427 = vand.u32 %v355, 4294901760
        %v428 = vsub.f32 %v355, %v427
        %v429 = vand.u32 %v428, 4294901760
        %v430 = vsub.f32 %v428, %v429
        %v431 = vand.u32 %v430, 4294901760
        %432 = vmatpush.msra.mxu0 %v431
        %v433 = vand.u32 %v353, 4294901760
        %v434 = vsub.f32 %v353, %v433
        %v435 = vand.u32 %v434, 4294901760
        %v436 = vsub.f32 %v434, %v435
        %v437 = vand.u32 %v436, 4294901760
        %438 = vmatpush.msra.mxu0 %v437
        %v439 = vand.u32 %v351, 4294901760
        %v440 = vsub.f32 %v351, %v439
        %v441 = vand.u32 %v440, 4294901760
        %v442 = vsub.f32 %v440, %v441
        %v443 = vand.u32 %v442, 4294901760
        %444 = vmatpush.msra.mxu0 %v443
        %v445 = vand.u32 %v349, 4294901760
        %v446 = vsub.f32 %v349, %v445
        %v447 = vand.u32 %v446, 4294901760
        %v448 = vsub.f32 %v446, %v447
        %v449 = vand.u32 %v448, 4294901760
        %450 = vmatpush.msra.mxu0 %v449
        %v451 = vand.u32 %v347, 4294901760
        %v452 = vsub.f32 %v347, %v451
        %v453 = vand.u32 %v452, 4294901760
        %v454 = vsub.f32 %v452, %v453
        %v455 = vand.u32 %v454, 4294901760
        %456 = vmatpush.msra.mxu0 %v455
        %v457 = vand.u32 %v345, 4294901760
        %v458 = vsub.f32 %v345, %v457
        %v459 = vand.u32 %v458, 4294901760
        %v460 = vsub.f32 %v458, %v459
        %v461 = vand.u32 %v460, 4294901760
        %462 = vmatpush.msra.mxu0 %v461
        %v463 = vand.u32 %v343, 4294901760
        %v464 = vsub.f32 %v343, %v463
        %v465 = vand.u32 %v464, 4294901760
        %v466 = vsub.f32 %v464, %v465
        %v467 = vand.u32 %v466, 4294901760
        %468 = vmatpush.msra.mxu0 %v467
        %v469 = vand.u32 %v341, 4294901760
        %v470 = vsub.f32 %v341, %v469
        %v471 = vand.u32 %v470, 4294901760
        %v472 = vsub.f32 %v470, %v471
        %v473 = vand.u32 %v472, 4294901760
        %474 = vmatpush.msra.mxu0 %v473
        %v475 = vand.u32 %v339, 4294901760
        %v476 = vsub.f32 %v339, %v475
        %v477 = vand.u32 %v476, 4294901760
        %v478 = vsub.f32 %v476, %v477
        %v479 = vand.u32 %v478, 4294901760
        %480 = vmatpush.msra.mxu0 %v479
        %v481 = vand.u32 %v337, 4294901760
        %v482 = vsub.f32 %v337, %v481
        %v483 = vand.u32 %v482, 4294901760
        %v484 = vsub.f32 %v482, %v483
        %v485 = vand.u32 %v484, 4294901760
        %486 = vmatpush.msra.mxu0 %v485
        %v487 = vand.u32 %v335, 4294901760
        %v488 = vsub.f32 %v335, %v487
        %v489 = vand.u32 %v488, 4294901760
        %v490 = vsub.f32 %v488, %v489
        %v491 = vand.u32 %v490, 4294901760
        %492 = vmatpush.msra.mxu0 %v491
        %v493 = vand.u32 %v367, 4294901760
        %494 = vmatmul.f32.gmra.mxu0 %v493
        %v495 = vpop.f32.mrf.mxu0
        %v496 = vadd.f32 %v407, %v495
        %v497 = vand.u32 %v370, 4294901760
        %498 = vmatmul.f32.gmra.mxu0 %v497
        %v499 = vpop.f32.mrf.mxu0
        %v500 = vadd.f32 %v415, %v499
        %501 = vdwg.mxu0
        %502 = vmatpush.msra.mxu0 0.0
        %503 = vmatpush.msra.mxu0 0.0
        %504 = vmatpush.msra.mxu0 0.0
        %505 = vmatpush.msra.mxu0 0.0
        %v506 = vand.u32 %v357, 4294901760
        %v507 = vsub.f32 %v357, %v506
        %508 = vmatpush.msra.mxu0 %v507
        %v509 = vand.u32 %v355, 4294901760
        %v510 = vsub.f32 %v355, %v509
        %511 = vmatpush.msra.mxu0 %v510
        %v512 = vand.u32 %v353, 4294901760
        %v513 = vsub.f32 %v353, %v512
        %514 = vmatpush.msra.mxu0 %v513
        %v515 = vand.u32 %v351, 4294901760
        %v516 = vsub.f32 %v351, %v515
        %517 = vmatpush.msra.mxu0 %v516
        %v518 = vand.u32 %v349, 4294901760
        %v519 = vsub.f32 %v349, %v518
        %520 = vmatpush.msra.mxu0 %v519
        %v521 = vand.u32 %v347, 4294901760
        %v522 = vsub.f32 %v347, %v521
        %523 = vmatpush.msra.mxu0 %v522
        %v524 = vand.u32 %v345, 4294901760
        %v525 = vsub.f32 %v345, %v524
        %526 = vmatpush.msra.mxu0 %v525
        %v527 = vand.u32 %v343, 4294901760
        %v528 = vsub.f32 %v343, %v527
        %529 = vmatpush.msra.mxu0 %v528
        %v530 = vand.u32 %v341, 4294901760
        %v531 = vsub.f32 %v341, %v530
        %532 = vmatpush.msra.mxu0 %v531
        %v533 = vand.u32 %v339, 4294901760
        %v534 = vsub.f32 %v339, %v533
        %535 = vmatpush.msra.mxu0 %v534
        %v536 = vand.u32 %v337, 4294901760
        %v537 = vsub.f32 %v337, %v536
        %538 = vmatpush.msra.mxu0 %v537
        %v539 = vand.u32 %v335, 4294901760
        %v540 = vsub.f32 %v335, %v539
        %541 = vmatpush.msra.mxu0 %v540
        %v542 = vand.u32 %v367, 4294901760
        %v543 = vsub.f32 %v367, %v542
        %544 = vmatmul.f32.gmra.mxu0 %v543
        %v545 = vpop.f32.mrf.mxu0
        %v546 = vadd.f32 %v496, %v545
        %v547 = vand.u32 %v370, 4294901760
        %v548 = vsub.f32 %v370, %v547
        %549 = vmatmul.f32.gmra.mxu0 %v548
        %v550 = vpop.f32.mrf.mxu0
        %v551 = vadd.f32 %v500, %v550
        %552 = vdwg.mxu0
        %553 = vmatpush.msra.mxu0 0.0
        %554 = vmatpush.msra.mxu0 0.0
        %555 = vmatpush.msra.mxu0 0.0
        %556 = vmatpush.msra.mxu0 0.0
        %v557 = vand.u32 %v357, 4294901760
        %558 = vmatpush.msra.mxu0 %v557
        %v559 = vand.u32 %v355, 4294901760
        %560 = vmatpush.msra.mxu0 %v559
        %v561 = vand.u32 %v353, 4294901760
        %562 = vmatpush.msra.mxu0 %v561
        %v563 = vand.u32 %v351, 4294901760
        %564 = vmatpush.msra.mxu0 %v563
        %v565 = vand.u32 %v349, 4294901760
        %566 = vmatpush.msra.mxu0 %v565
        %v567 = vand.u32 %v347, 4294901760
        %568 = vmatpush.msra.mxu0 %v567
        %v569 = vand.u32 %v345, 4294901760
        %570 = vmatpush.msra.mxu0 %v569
        %v571 = vand.u32 %v343, 4294901760
        %572 = vmatpush.msra.mxu0 %v571
        %v573 = vand.u32 %v341, 4294901760
        %574 = vmatpush.msra.mxu0 %v573
        %v575 = vand.u32 %v339, 4294901760
        %576 = vmatpush.msra.mxu0 %v575
        %v577 = vand.u32 %v337, 4294901760
        %578 = vmatpush.msra.mxu0 %v577
        %v579 = vand.u32 %v335, 4294901760
        %580 = vmatpush.msra.mxu0 %v579
        %v581 = vand.u32 %v367, 4294901760
        %v582 = vsub.f32 %v367, %v581
        %v583 = vand.u32 %v582, 4294901760
        %584 = vmatmul.f32.gmra.mxu0 %v583
        %v585 = vpop.f32.mrf.mxu0
        %v586 = vadd.f32 %v546, %v585
        %v587 = vand.u32 %v370, 4294901760
        %v588 = vsub.f32 %v370, %v587
        %v589 = vand.u32 %v588, 4294901760
        %590 = vmatmul.f32.gmra.mxu0 %v589
        %v591 = vpop.f32.mrf.mxu0
        %v592 = vadd.f32 %v551, %v591
        %593 = vdwg.mxu0
        %594 = vmatpush.msra.mxu0 0.0
        %595 = vmatpush.msra.mxu0 0.0
        %596 = vmatpush.msra.mxu0 0.0
        %597 = vmatpush.msra.mxu0 0.0
        %v598 = vand.u32 %v357, 4294901760
        %v599 = vsub.f32 %v357, %v598
        %v600 = vand.u32 %v599, 4294901760
        %601 = vmatpush.msra.mxu0 %v600
        %v602 = vand.u32 %v355, 4294901760
        %v603 = vsub.f32 %v355, %v602
        %v604 = vand.u32 %v603, 4294901760
        %605 = vmatpush.msra.mxu0 %v604
        %v606 = vand.u32 %v353, 4294901760
        %v607 = vsub.f32 %v353, %v606
        %v608 = vand.u32 %v607, 4294901760
        %609 = vmatpush.msra.mxu0 %v608
        %v610 = vand.u32 %v351, 4294901760
        %v611 = vsub.f32 %v351, %v610
        %v612 = vand.u32 %v611, 4294901760
        %613 = vmatpush.msra.mxu0 %v612
        %v614 = vand.u32 %v349, 4294901760
        %v615 = vsub.f32 %v349, %v614
        %v616 = vand.u32 %v615, 4294901760
        %617 = vmatpush.msra.mxu0 %v616
        %v618 = vand.u32 %v347, 4294901760
        %v619 = vsub.f32 %v347, %v618
        %v620 = vand.u32 %v619, 4294901760
        %621 = vmatpush.msra.mxu0 %v620
        %v622 = vand.u32 %v345, 4294901760
        %v623 = vsub.f32 %v345, %v622
        %v624 = vand.u32 %v623, 4294901760
        %625 = vmatpush.msra.mxu0 %v624
        %v626 = vand.u32 %v343, 4294901760
        %v627 = vsub.f32 %v343, %v626
        %v628 = vand.u32 %v627, 4294901760
        %629 = vmatpush.msra.mxu0 %v628
        %v630 = vand.u32 %v341, 4294901760
        %v631 = vsub.f32 %v341, %v630
        %v632 = vand.u32 %v631, 4294901760
        %633 = vmatpush.msra.mxu0 %v632
        %v634 = vand.u32 %v339, 4294901760
        %v635 = vsub.f32 %v339, %v634
        %v636 = vand.u32 %v635, 4294901760
        %637 = vmatpush.msra.mxu0 %v636
        %v638 = vand.u32 %v337, 4294901760
        %v639 = vsub.f32 %v337, %v638
        %v640 = vand.u32 %v639, 4294901760
        %641 = vmatpush.msra.mxu0 %v640
        %v642 = vand.u32 %v335, 4294901760
        %v643 = vsub.f32 %v335, %v642
        %v644 = vand.u32 %v643, 4294901760
        %645 = vmatpush.msra.mxu0 %v644
        %v646 = vand.u32 %v367, 4294901760
        %647 = vmatmul.f32.gmra.mxu0 %v646
        %v648 = vpop.f32.mrf.mxu0
        %v649 = vadd.f32 %v586, %v648
        %v650 = vand.u32 %v370, 4294901760
        %651 = vmatmul.f32.gmra.mxu0 %v650
        %v652 = vpop.f32.mrf.mxu0
        %v653 = vadd.f32 %v592, %v652
        %654 = vdwg.mxu0
        %655 = vmatpush.msra.mxu0 0.0
        %656 = vmatpush.msra.mxu0 0.0
        %657 = vmatpush.msra.mxu0 0.0
        %658 = vmatpush.msra.mxu0 0.0
        %v659 = vand.u32 %v357, 4294901760
        %660 = vmatpush.msra.mxu0 %v659
        %v661 = vand.u32 %v355, 4294901760
        %662 = vmatpush.msra.mxu0 %v661
        %v663 = vand.u32 %v353, 4294901760
        %664 = vmatpush.msra.mxu0 %v663
        %v665 = vand.u32 %v351, 4294901760
        %666 = vmatpush.msra.mxu0 %v665
        %v667 = vand.u32 %v349, 4294901760
        %668 = vmatpush.msra.mxu0 %v667
        %v669 = vand.u32 %v347, 4294901760
        %670 = vmatpush.msra.mxu0 %v669
        %v671 = vand.u32 %v345, 4294901760
        %672 = vmatpush.msra.mxu0 %v671
        %v673 = vand.u32 %v343, 4294901760
        %674 = vmatpush.msra.mxu0 %v673
        %v675 = vand.u32 %v341, 4294901760
        %676 = vmatpush.msra.mxu0 %v675
        %v677 = vand.u32 %v339, 4294901760
        %678 = vmatpush.msra.mxu0 %v677
        %v679 = vand.u32 %v337, 4294901760
        %680 = vmatpush.msra.mxu0 %v679
        %v681 = vand.u32 %v335, 4294901760
        %682 = vmatpush.msra.mxu0 %v681
        %v683 = vand.u32 %v367, 4294901760
        %684 = vmatmul.f32.gmra.mxu0 %v683
        %v685 = vpop.f32.mrf.mxu0
        %v686 = vadd.f32 %v649, %v685
        %v687 = vand.u32 %v370, 4294901760
        %688 = vmatmul.f32.gmra.mxu0 %v687
        %v689 = vpop.f32.mrf.mxu0
        %v690 = vadd.f32 %v653, %v689
        %691 = vdwg.mxu0
        %692 = vmatpush.msra.mxu0 0.0
        %693 = vmatpush.msra.mxu0 0.0
        %694 = vmatpush.msra.mxu0 0.0
        %695 = vmatpush.msra.mxu0 0.0
        %v696 = vand.u32 %v358, 4294901760
        %697 = vmatpush.msra.mxu0 %v696
        %v698 = vand.u32 %v356, 4294901760
        %699 = vmatpush.msra.mxu0 %v698
        %v700 = vand.u32 %v354, 4294901760
        %701 = vmatpush.msra.mxu0 %v700
        %v702 = vand.u32 %v352, 4294901760
        %703 = vmatpush.msra.mxu0 %v702
        %v704 = vand.u32 %v350, 4294901760
        %705 = vmatpush.msra.mxu0 %v704
        %v706 = vand.u32 %v348, 4294901760
        %707 = vmatpush.msra.mxu0 %v706
        %v708 = vand.u32 %v346, 4294901760
        %709 = vmatpush.msra.mxu0 %v708
        %v710 = vand.u32 %v344, 4294901760
        %711 = vmatpush.msra.mxu0 %v710
        %v712 = vand.u32 %v342, 4294901760
        %713 = vmatpush.msra.mxu0 %v712
        %v714 = vand.u32 %v340, 4294901760
        %715 = vmatpush.msra.mxu0 %v714
        %v716 = vand.u32 %v338, 4294901760
        %717 = vmatpush.msra.mxu0 %v716
        %v718 = vand.u32 %v336, 4294901760
        %719 = vmatpush.msra.mxu0 %v718
        %v720 = vand.u32 %v367, 4294901760
        %v721 = vsub.f32 %v367, %v720
        %v722 = vand.u32 %v721, 4294901760
        %v723 = vsub.f32 %v721, %v722
        %v724 = vand.u32 %v723, 4294901760
        %725 = vmatmul.f32.gmra.mxu0 %v724
        %v726 = vpop.f32.mrf.mxu0
        %v727 = vadd.f32 %v362, %v726
        %v728 = vand.u32 %v370, 4294901760
        %v729 = vsub.f32 %v370, %v728
        %v730 = vand.u32 %v729, 4294901760
        %v731 = vsub.f32 %v729, %v730
        %v732 = vand.u32 %v731, 4294901760
        %733 = vmatmul.f32.gmra.mxu0 %v732
        %v734 = vpop.f32.mrf.mxu0
        %735 = vdwg.mxu0
        %736 = vmatpush.msra.mxu0 0.0
        %737 = vmatpush.msra.mxu0 0.0
        %738 = vmatpush.msra.mxu0 0.0
        %739 = vmatpush.msra.mxu0 0.0
        %v740 = vand.u32 %v358, 4294901760
        %v741 = vsub.f32 %v358, %v740
        %v742 = vand.u32 %v741, 4294901760
        %v743 = vsub.f32 %v741, %v742
        %v744 = vand.u32 %v743, 4294901760
        %745 = vmatpush.msra.mxu0 %v744
        %v746 = vand.u32 %v356, 4294901760
        %v747 = vsub.f32 %v356, %v746
        %v748 = vand.u32 %v747, 4294901760
        %v749 = vsub.f32 %v747, %v748
        %v750 = vand.u32 %v749, 4294901760
        %751 = vmatpush.msra.mxu0 %v750
        %v752 = vand.u32 %v354, 4294901760
        %v753 = vsub.f32 %v354, %v752
        %v754 = vand.u32 %v753, 4294901760
        %v755 = vsub.f32 %v753, %v754
        %v756 = vand.u32 %v755, 4294901760
        %757 = vmatpush.msra.mxu0 %v756
        %v758 = vand.u32 %v352, 4294901760
        %v759 = vsub.f32 %v352, %v758
        %v760 = vand.u32 %v759, 4294901760
        %v761 = vsub.f32 %v759, %v760
        %v762 = vand.u32 %v761, 4294901760
        %763 = vmatpush.msra.mxu0 %v762
        %v764 = vand.u32 %v350, 4294901760
        %v765 = vsub.f32 %v350, %v764
        %v766 = vand.u32 %v765, 4294901760
        %v767 = vsub.f32 %v765, %v766
        %v768 = vand.u32 %v767, 4294901760
        %769 = vmatpush.msra.mxu0 %v768
        %v770 = vand.u32 %v348, 4294901760
        %v771 = vsub.f32 %v348, %v770
        %v772 = vand.u32 %v771, 4294901760
        %v773 = vsub.f32 %v771, %v772
        %v774 = vand.u32 %v773, 4294901760
        %775 = vmatpush.msra.mxu0 %v774
        %v776 = vand.u32 %v346, 4294901760
        %v777 = vsub.f32 %v346, %v776
        %v778 = vand.u32 %v777, 4294901760
        %v779 = vsub.f32 %v777, %v778
        %v780 = vand.u32 %v779, 4294901760
        %781 = vmatpush.msra.mxu0 %v780
        %v782 = vand.u32 %v344, 4294901760
        %v783 = vsub.f32 %v344, %v782
        %v784 = vand.u32 %v783, 4294901760
        %v785 = vsub.f32 %v783, %v784
        %v786 = vand.u32 %v785, 4294901760
        %787 = vmatpush.msra.mxu0 %v786
        %v788 = vand.u32 %v342, 4294901760
        %v789 = vsub.f32 %v342, %v788
        %v790 = vand.u32 %v789, 4294901760
        %v791 = vsub.f32 %v789, %v790
        %v792 = vand.u32 %v791, 4294901760
        %793 = vmatpush.msra.mxu0 %v792
        %v794 = vand.u32 %v340, 4294901760
        %v795 = vsub.f32 %v340, %v794
        %v796 = vand.u32 %v795, 4294901760
        %v797 = vsub.f32 %v795, %v796
        %v798 = vand.u32 %v797, 4294901760
        %799 = vmatpush.msra.mxu0 %v798
        %v800 = vand.u32 %v338, 4294901760
        %v801 = vsub.f32 %v338, %v800
        %v802 = vand.u32 %v801, 4294901760
        %v803 = vsub.f32 %v801, %v802
        %v804 = vand.u32 %v803, 4294901760
        %805 = vmatpush.msra.mxu0 %v804
        %v806 = vand.u32 %v336, 4294901760
        %v807 = vsub.f32 %v336, %v806
        %v808 = vand.u32 %v807, 4294901760
        %v809 = vsub.f32 %v807, %v808
        %v810 = vand.u32 %v809, 4294901760
        %811 = vmatpush.msra.mxu0 %v810
        %v812 = vand.u32 %v367, 4294901760
        %813 = vmatmul.f32.gmra.mxu0 %v812
        %v814 = vpop.f32.mrf.mxu0
        %v815 = vadd.f32 %v727, %v814
        %v816 = vand.u32 %v370, 4294901760
        %817 = vmatmul.f32.gmra.mxu0 %v816
        %v818 = vpop.f32.mrf.mxu0
        %819 = vdwg.mxu0
        %820 = vmatpush.msra.mxu0 0.0
        %821 = vmatpush.msra.mxu0 0.0
        %822 = vmatpush.msra.mxu0 0.0
        %823 = vmatpush.msra.mxu0 0.0
        %v824 = vand.u32 %v358, 4294901760
        %v825 = vsub.f32 %v358, %v824
        %826 = vmatpush.msra.mxu0 %v825
        %v827 = vand.u32 %v356, 4294901760
        %v828 = vsub.f32 %v356, %v827
        %829 = vmatpush.msra.mxu0 %v828
        %v830 = vand.u32 %v354, 4294901760
        %v831 = vsub.f32 %v354, %v830
        %832 = vmatpush.msra.mxu0 %v831
        %v833 = vand.u32 %v352, 4294901760
        %v834 = vsub.f32 %v352, %v833
        %835 = vmatpush.msra.mxu0 %v834
        %v836 = vand.u32 %v350, 4294901760
        %v837 = vsub.f32 %v350, %v836
        %838 = vmatpush.msra.mxu0 %v837
        %v839 = vand.u32 %v348, 4294901760
        %v840 = vsub.f32 %v348, %v839
        %841 = vmatpush.msra.mxu0 %v840
        %v842 = vand.u32 %v346, 4294901760
        %v843 = vsub.f32 %v346, %v842
        %844 = vmatpush.msra.mxu0 %v843
        %v845 = vand.u32 %v344, 4294901760
        %v846 = vsub.f32 %v344, %v845
        %847 = vmatpush.msra.mxu0 %v846
        %v848 = vand.u32 %v342, 4294901760
        %v849 = vsub.f32 %v342, %v848
        %850 = vmatpush.msra.mxu0 %v849
        %v851 = vand.u32 %v340, 4294901760
        %v852 = vsub.f32 %v340, %v851
        %853 = vmatpush.msra.mxu0 %v852
        %v854 = vand.u32 %v338, 4294901760
        %v855 = vsub.f32 %v338, %v854
        %856 = vmatpush.msra.mxu0 %v855
        %v857 = vand.u32 %v336, 4294901760
        %v858 = vsub.f32 %v336, %v857
        %859 = vmatpush.msra.mxu0 %v858
        %v860 = vand.u32 %v367, 4294901760
        %v861 = vsub.f32 %v367, %v860
        %862 = vmatmul.f32.gmra.mxu0 %v861
        %v863 = vpop.f32.mrf.mxu0
        %v864 = vadd.f32 %v815, %v863
        %v865 = vand.u32 %v370, 4294901760
        %v866 = vsub.f32 %v370, %v865
        %867 = vmatmul.f32.gmra.mxu0 %v866
        %v868 = vpop.f32.mrf.mxu0
        %869 = vdwg.mxu0
        %870 = vmatpush.msra.mxu0 0.0
        %871 = vmatpush.msra.mxu0 0.0
        %872 = vmatpush.msra.mxu0 0.0
        %873 = vmatpush.msra.mxu0 0.0
        %v874 = vand.u32 %v358, 4294901760
        %875 = vmatpush.msra.mxu0 %v874
        %v876 = vand.u32 %v356, 4294901760
        %877 = vmatpush.msra.mxu0 %v876
        %v878 = vand.u32 %v354, 4294901760
        %879 = vmatpush.msra.mxu0 %v878
        %v880 = vand.u32 %v352, 4294901760
        %881 = vmatpush.msra.mxu0 %v880
        %v882 = vand.u32 %v350, 4294901760
        %883 = vmatpush.msra.mxu0 %v882
        %v884 = vand.u32 %v348, 4294901760
        %885 = vmatpush.msra.mxu0 %v884
        %v886 = vand.u32 %v346, 4294901760
        %887 = vmatpush.msra.mxu0 %v886
        %v888 = vand.u32 %v344, 4294901760
        %889 = vmatpush.msra.mxu0 %v888
        %v890 = vand.u32 %v342, 4294901760
        %891 = vmatpush.msra.mxu0 %v890
        %v892 = vand.u32 %v340, 4294901760
        %893 = vmatpush.msra.mxu0 %v892
        %v894 = vand.u32 %v338, 4294901760
        %895 = vmatpush.msra.mxu0 %v894
        %v896 = vand.u32 %v336, 4294901760
        %897 = vmatpush.msra.mxu0 %v896
        %v898 = vand.u32 %v367, 4294901760
        %v899 = vsub.f32 %v367, %v898
        %v900 = vand.u32 %v899, 4294901760
        %901 = vmatmul.f32.gmra.mxu0 %v900
        %v902 = vpop.f32.mrf.mxu0
        %v903 = vadd.f32 %v864, %v902
        %v904 = vand.u32 %v370, 4294901760
        %v905 = vsub.f32 %v370, %v904
        %v906 = vand.u32 %v905, 4294901760
        %907 = vmatmul.f32.gmra.mxu0 %v906
        %v908 = vpop.f32.mrf.mxu0
        %909 = vdwg.mxu0
        %910 = vmatpush.msra.mxu0 0.0
        %911 = vmatpush.msra.mxu0 0.0
        %912 = vmatpush.msra.mxu0 0.0
        %913 = vmatpush.msra.mxu0 0.0
        %v914 = vand.u32 %v358, 4294901760
        %v915 = vsub.f32 %v358, %v914
        %v916 = vand.u32 %v915, 4294901760
        %917 = vmatpush.msra.mxu0 %v916
        %v918 = vand.u32 %v356, 4294901760
        %v919 = vsub.f32 %v356, %v918
        %v920 = vand.u32 %v919, 4294901760
        %921 = vmatpush.msra.mxu0 %v920
        %v922 = vand.u32 %v354, 4294901760
        %v923 = vsub.f32 %v354, %v922
        %v924 = vand.u32 %v923, 4294901760
        %925 = vmatpush.msra.mxu0 %v924
        %v926 = vand.u32 %v352, 4294901760
        %v927 = vsub.f32 %v352, %v926
        %v928 = vand.u32 %v927, 4294901760
        %929 = vmatpush.msra.mxu0 %v928
        %v930 = vand.u32 %v350, 4294901760
        %v931 = vsub.f32 %v350, %v930
        %v932 = vand.u32 %v931, 4294901760
        %933 = vmatpush.msra.mxu0 %v932
        %v934 = vand.u32 %v348, 4294901760
        %v935 = vsub.f32 %v348, %v934
        %v936 = vand.u32 %v935, 4294901760
        %937 = vmatpush.msra.mxu0 %v936
        %v938 = vand.u32 %v346, 4294901760
        %v939 = vsub.f32 %v346, %v938
        %v940 = vand.u32 %v939, 4294901760
        %941 = vmatpush.msra.mxu0 %v940
        %v942 = vand.u32 %v344, 4294901760
        %v943 = vsub.f32 %v344, %v942
        %v944 = vand.u32 %v943, 4294901760
        %945 = vmatpush.msra.mxu0 %v944
        %v946 = vand.u32 %v342, 4294901760
        %v947 = vsub.f32 %v342, %v946
        %v948 = vand.u32 %v947, 4294901760
        %949 = vmatpush.msra.mxu0 %v948
        %v950 = vand.u32 %v340, 4294901760
        %v951 = vsub.f32 %v340, %v950
        %v952 = vand.u32 %v951, 4294901760
        %953 = vmatpush.msra.mxu0 %v952
        %v954 = vand.u32 %v338, 4294901760
        %v955 = vsub.f32 %v338, %v954
        %v956 = vand.u32 %v955, 4294901760
        %957 = vmatpush.msra.mxu0 %v956
        %v958 = vand.u32 %v336, 4294901760
        %v959 = vsub.f32 %v336, %v958
        %v960 = vand.u32 %v959, 4294901760
        %961 = vmatpush.msra.mxu0 %v960
        %v962 = vand.u32 %v367, 4294901760
        %963 = vmatmul.f32.gmra.mxu0 %v962
        %v964 = vpop.f32.mrf.mxu0
        %v965 = vadd.f32 %v903, %v964
        %v966 = vand.u32 %v370, 4294901760
        %967 = vmatmul.f32.gmra.mxu0 %v966
        %v968 = vpop.f32.mrf.mxu0
        %969 = vdwg.mxu0
        %970 = vmatpush.msra.mxu0 0.0
        %971 = vmatpush.msra.mxu0 0.0
        %972 = vmatpush.msra.mxu0 0.0
        %973 = vmatpush.msra.mxu0 0.0
        %v974 = vand.u32 %v358, 4294901760
        %975 = vmatpush.msra.mxu0 %v974
        %v976 = vand.u32 %v356, 4294901760
        %977 = vmatpush.msra.mxu0 %v976
        %v978 = vand.u32 %v354, 4294901760
        %979 = vmatpush.msra.mxu0 %v978
        %v980 = vand.u32 %v352, 4294901760
        %981 = vmatpush.msra.mxu0 %v980
        %v982 = vand.u32 %v350, 4294901760
        %983 = vmatpush.msra.mxu0 %v982
        %v984 = vand.u32 %v348, 4294901760
        %985 = vmatpush.msra.mxu0 %v984
        %v986 = vand.u32 %v346, 4294901760
        %987 = vmatpush.msra.mxu0 %v986
        %v988 = vand.u32 %v344, 4294901760
        %989 = vmatpush.msra.mxu0 %v988
        %v990 = vand.u32 %v342, 4294901760
        %991 = vmatpush.msra.mxu0 %v990
        %v992 = vand.u32 %v340, 4294901760
        %993 = vmatpush.msra.mxu0 %v992
        %v994 = vand.u32 %v338, 4294901760
        %995 = vmatpush.msra.mxu0 %v994
        %v996 = vand.u32 %v336, 4294901760
        %997 = vmatpush.msra.mxu0 %v996
        %v998 = vand.u32 %v367, 4294901760
        %999 = vmatmul.f32.gmra.mxu0 %v998
        %v1000 = vpop.f32.mrf.mxu0
        %v1001 = vadd.f32 %v965, %v1000
        %v1002 = vand.u32 %v370, 4294901760
        %1003 = vmatmul.f32.gmra.mxu0 %v1002
        %v1004 = vpop.f32.mrf.mxu0
        %1005 = vdwg.mxu0
        %v1006 = vlaneseq
        %v1007 = vshrl.u32 %v1006, 7
        %v1008 = vcvt.s32.f32 %v1007
        %v1009 = vadd.f32 %v1008, %v1001
        %v1010 = vmax.f32 %v1009, 0.0
        %v1011 = vmin.f32 %v1010, 7.0
        %v1012 = vcvt.f32.s32.to.zero.pseudo %v1011
        %v1013 = vcvt.s32.f32 %v1012
        %v1014 = vld [vmem:[%s3] sm:$0xff]
        %v1015 = vld [vmem:[%s3 + $0x8] sm:$0xff]
        %v1016 = vld [vmem:[%s3 + $0x10] sm:$0xff]
        %v1017 = vld [vmem:[%s3 + $0x18] sm:$0xff]
        %vm1018 = vcmask 64512
        %v1020 = vsel %vm1018, %v1013, 0
        %1022 = vmatpush.msra.mxu0 0.0
        %1023 = vmatpush.msra.mxu0 0.0
        %1024 = vmatpush.msra.mxu0 0.0
        %1025 = vmatpush.msra.mxu0 0.0
        %1026 = vmatpush.msra.mxu0 0.0
        %1027 = vmatpush.msra.mxu0 0.0
        %1028 = vmatpush.msra.mxu0 0.0
        %1029 = vmatpush.msra.mxu0 0.0
        %1030 = vmatpush.msra.mxu0 0.0
        %1031 = vmatpush.msra.mxu0 0.0
        %1032 = vmatpush.msra.mxu0 0.0
        %1033 = vmatpush.msra.mxu0 0.0
        %1034 = vmatpush.msra.mxu0 0.0
        %1035 = vmatpush.msra.mxu0 0.0
        %1036 = vmatpush.msra.mxu0 0.0
        %v1037 = vand.u32 %v1014, 4294901760
        %1038 = vmatpush.msra.mxu0 %v1037
        %v1039 = vand.u32 %v1020, 4294901760
        %v1040 = vsub.f32 %v1020, %v1039
        %v1041 = vand.u32 %v1040, 4294901760
        %v1042 = vsub.f32 %v1040, %v1041
        %v1043 = vand.u32 %v1042, 4294901760
        %1044 = vmatmul.f32.gmra.mxu0 %v1043
        %v1045 = vpop.f32.mrf.mxu0
        %v1046 = vadd.f32 0.5, %v1045
        %1047 = vdwg.mxu0
        %1048 = vmatpush.msra.mxu0 0.0
        %1049 = vmatpush.msra.mxu0 0.0
        %1050 = vmatpush.msra.mxu0 0.0
        %1051 = vmatpush.msra.mxu0 0.0
        %1052 = vmatpush.msra.mxu0 0.0
        %1053 = vmatpush.msra.mxu0 0.0
        %1054 = vmatpush.msra.mxu0 0.0
        %1055 = vmatpush.msra.mxu0 0.0
        %1056 = vmatpush.msra.mxu0 0.0
        %1057 = vmatpush.msra.mxu0 0.0
        %1058 = vmatpush.msra.mxu0 0.0
        %1059 = vmatpush.msra.mxu0 0.0
        %1060 = vmatpush.msra.mxu0 0.0
        %1061 = vmatpush.msra.mxu0 0.0
        %1062 = vmatpush.msra.mxu0 0.0
        %v1063 = vand.u32 %v1014, 4294901760
        %v1064 = vsub.f32 %v1014, %v1063
        %v1065 = vand.u32 %v1064, 4294901760
        %v1066 = vsub.f32 %v1064, %v1065
        %v1067 = vand.u32 %v1066, 4294901760
        %1068 = vmatpush.msra.mxu0 %v1067
        %v1069 = vand.u32 %v1020, 4294901760
        %1070 = vmatmul.f32.gmra.mxu0 %v1069
        %v1071 = vpop.f32.mrf.mxu0
        %v1072 = vadd.f32 %v1046, %v1071
        %1073 = vdwg.mxu0
        %1074 = vmatpush.msra.mxu0 0.0
        %1075 = vmatpush.msra.mxu0 0.0
        %1076 = vmatpush.msra.mxu0 0.0
        %1077 = vmatpush.msra.mxu0 0.0
        %1078 = vmatpush.msra.mxu0 0.0
        %1079 = vmatpush.msra.mxu0 0.0
        %1080 = vmatpush.msra.mxu0 0.0
        %1081 = vmatpush.msra.mxu0 0.0
        %1082 = vmatpush.msra.mxu0 0.0
        %1083 = vmatpush.msra.mxu0 0.0
        %1084 = vmatpush.msra.mxu0 0.0
        %1085 = vmatpush.msra.mxu0 0.0
        %1086 = vmatpush.msra.mxu0 0.0
        %1087 = vmatpush.msra.mxu0 0.0
        %1088 = vmatpush.msra.mxu0 0.0
        %v1089 = vand.u32 %v1014, 4294901760
        %v1090 = vsub.f32 %v1014, %v1089
        %1091 = vmatpush.msra.mxu0 %v1090
        %v1092 = vand.u32 %v1020, 4294901760
        %v1093 = vsub.f32 %v1020, %v1092
        %1094 = vmatmul.f32.gmra.mxu0 %v1093
        %v1095 = vpop.f32.mrf.mxu0
        %v1096 = vadd.f32 %v1072, %v1095
        %1097 = vdwg.mxu0
        %1098 = vmatpush.msra.mxu0 0.0
        %1099 = vmatpush.msra.mxu0 0.0
        %1100 = vmatpush.msra.mxu0 0.0
        %1101 = vmatpush.msra.mxu0 0.0
        %1102 = vmatpush.msra.mxu0 0.0
        %1103 = vmatpush.msra.mxu0 0.0
        %1104 = vmatpush.msra.mxu0 0.0
        %1105 = vmatpush.msra.mxu0 0.0
        %1106 = vmatpush.msra.mxu0 0.0
        %1107 = vmatpush.msra.mxu0 0.0
        %1108 = vmatpush.msra.mxu0 0.0
        %1109 = vmatpush.msra.mxu0 0.0
        %1110 = vmatpush.msra.mxu0 0.0
        %1111 = vmatpush.msra.mxu0 0.0
        %1112 = vmatpush.msra.mxu0 0.0
        %v1113 = vand.u32 %v1014, 4294901760
        %1114 = vmatpush.msra.mxu0 %v1113
        %v1115 = vand.u32 %v1020, 4294901760
        %v1116 = vsub.f32 %v1020, %v1115
        %v1117 = vand.u32 %v1116, 4294901760
        %1118 = vmatmul.f32.gmra.mxu0 %v1117
        %v1119 = vpop.f32.mrf.mxu0
        %v1120 = vadd.f32 %v1096, %v1119
        %1121 = vdwg.mxu0
        %1122 = vmatpush.msra.mxu0 0.0
        %1123 = vmatpush.msra.mxu0 0.0
        %1124 = vmatpush.msra.mxu0 0.0
        %1125 = vmatpush.msra.mxu0 0.0
        %1126 = vmatpush.msra.mxu0 0.0
        %1127 = vmatpush.msra.mxu0 0.0
        %1128 = vmatpush.msra.mxu0 0.0
        %1129 = vmatpush.msra.mxu0 0.0
        %1130 = vmatpush.msra.mxu0 0.0
        %1131 = vmatpush.msra.mxu0 0.0
        %1132 = vmatpush.msra.mxu0 0.0
        %1133 = vmatpush.msra.mxu0 0.0
        %1134 = vmatpush.msra.mxu0 0.0
        %1135 = vmatpush.msra.mxu0 0.0
        %1136 = vmatpush.msra.mxu0 0.0
        %v1137 = vand.u32 %v1014, 4294901760
        %v1138 = vsub.f32 %v1014, %v1137
        %v1139 = vand.u32 %v1138, 4294901760
        %1140 = vmatpush.msra.mxu0 %v1139
        %v1141 = vand.u32 %v1020, 4294901760
        %1142 = vmatmul.f32.gmra.mxu0 %v1141
        %v1143 = vpop.f32.mrf.mxu0
        %v1144 = vadd.f32 %v1120, %v1143
        %1145 = vdwg.mxu0
        %1146 = vmatpush.msra.mxu0 0.0
        %1147 = vmatpush.msra.mxu0 0.0
        %1148 = vmatpush.msra.mxu0 0.0
        %1149 = vmatpush.msra.mxu0 0.0
        %1150 = vmatpush.msra.mxu0 0.0
        %1151 = vmatpush.msra.mxu0 0.0
        %1152 = vmatpush.msra.mxu0 0.0
        %1153 = vmatpush.msra.mxu0 0.0
        %1154 = vmatpush.msra.mxu0 0.0
        %1155 = vmatpush.msra.mxu0 0.0
        %1156 = vmatpush.msra.mxu0 0.0
        %1157 = vmatpush.msra.mxu0 0.0
        %1158 = vmatpush.msra.mxu0 0.0
        %1159 = vmatpush.msra.mxu0 0.0
        %1160 = vmatpush.msra.mxu0 0.0
        %v1161 = vand.u32 %v1014, 4294901760
        %1162 = vmatpush.msra.mxu0 %v1161
        %v1163 = vand.u32 %v1020, 4294901760
        %1164 = vmatmul.f32.gmra.mxu0 %v1163
        %v1165 = vpop.f32.mrf.mxu0
        %v1166 = vadd.f32 %v1144, %v1165
        %1167 = vdwg.mxu0
        %1168 = vmatpush.msra.mxu0 0.0
        %1169 = vmatpush.msra.mxu0 0.0
        %1170 = vmatpush.msra.mxu0 0.0
        %1171 = vmatpush.msra.mxu0 0.0
        %1172 = vmatpush.msra.mxu0 0.0
        %1173 = vmatpush.msra.mxu0 0.0
        %1174 = vmatpush.msra.mxu0 0.0
        %1175 = vmatpush.msra.mxu0 0.0
        %1176 = vmatpush.msra.mxu0 0.0
        %1177 = vmatpush.msra.mxu0 0.0
        %1178 = vmatpush.msra.mxu0 0.0
        %1179 = vmatpush.msra.mxu0 0.0
        %1180 = vmatpush.msra.mxu0 0.0
        %1181 = vmatpush.msra.mxu0 0.0
        %1182 = vmatpush.msra.mxu0 0.0
        %v1183 = vand.u32 %v1015, 4294901760
        %1184 = vmatpush.msra.mxu0 %v1183
        %v1185 = vand.u32 %v1020, 4294901760
        %v1186 = vsub.f32 %v1020, %v1185
        %v1187 = vand.u32 %v1186, 4294901760
        %v1188 = vsub.f32 %v1186, %v1187
        %v1189 = vand.u32 %v1188, 4294901760
        %1190 = vmatmul.f32.gmra.mxu0 %v1189
        %v1191 = vpop.f32.mrf.mxu0
        %v1192 = vadd.f32 0.5, %v1191
        %1193 = vdwg.mxu0
        %1194 = vmatpush.msra.mxu0 0.0
        %1195 = vmatpush.msra.mxu0 0.0
        %1196 = vmatpush.msra.mxu0 0.0
        %1197 = vmatpush.msra.mxu0 0.0
        %1198 = vmatpush.msra.mxu0 0.0
        %1199 = vmatpush.msra.mxu0 0.0
        %1200 = vmatpush.msra.mxu0 0.0
        %1201 = vmatpush.msra.mxu0 0.0
        %1202 = vmatpush.msra.mxu0 0.0
        %1203 = vmatpush.msra.mxu0 0.0
        %1204 = vmatpush.msra.mxu0 0.0
        %1205 = vmatpush.msra.mxu0 0.0
        %1206 = vmatpush.msra.mxu0 0.0
        %1207 = vmatpush.msra.mxu0 0.0
        %1208 = vmatpush.msra.mxu0 0.0
        %v1209 = vand.u32 %v1015, 4294901760
        %v1210 = vsub.f32 %v1015, %v1209
        %v1211 = vand.u32 %v1210, 4294901760
        %v1212 = vsub.f32 %v1210, %v1211
        %v1213 = vand.u32 %v1212, 4294901760
        %1214 = vmatpush.msra.mxu0 %v1213
        %v1215 = vand.u32 %v1020, 4294901760
        %1216 = vmatmul.f32.gmra.mxu0 %v1215
        %v1217 = vpop.f32.mrf.mxu0
        %v1218 = vadd.f32 %v1192, %v1217
        %1219 = vdwg.mxu0
        %1220 = vmatpush.msra.mxu0 0.0
        %1221 = vmatpush.msra.mxu0 0.0
        %1222 = vmatpush.msra.mxu0 0.0
        %1223 = vmatpush.msra.mxu0 0.0
        %1224 = vmatpush.msra.mxu0 0.0
        %1225 = vmatpush.msra.mxu0 0.0
        %1226 = vmatpush.msra.mxu0 0.0
        %1227 = vmatpush.msra.mxu0 0.0
        %1228 = vmatpush.msra.mxu0 0.0
        %1229 = vmatpush.msra.mxu0 0.0
        %1230 = vmatpush.msra.mxu0 0.0
        %1231 = vmatpush.msra.mxu0 0.0
        %1232 = vmatpush.msra.mxu0 0.0
        %1233 = vmatpush.msra.mxu0 0.0
        %1234 = vmatpush.msra.mxu0 0.0
        %v1235 = vand.u32 %v1015, 4294901760
        %v1236 = vsub.f32 %v1015, %v1235
        %1237 = vmatpush.msra.mxu0 %v1236
        %v1238 = vand.u32 %v1020, 4294901760
        %v1239 = vsub.f32 %v1020, %v1238
        %1240 = vmatmul.f32.gmra.mxu0 %v1239
        %v1241 = vpop.f32.mrf.mxu0
        %v1242 = vadd.f32 %v1218, %v1241
        %1243 = vdwg.mxu0
        %1244 = vmatpush.msra.mxu0 0.0
        %1245 = vmatpush.msra.mxu0 0.0
        %1246 = vmatpush.msra.mxu0 0.0
        %1247 = vmatpush.msra.mxu0 0.0
        %1248 = vmatpush.msra.mxu0 0.0
        %1249 = vmatpush.msra.mxu0 0.0
        %1250 = vmatpush.msra.mxu0 0.0
        %1251 = vmatpush.msra.mxu0 0.0
        %1252 = vmatpush.msra.mxu0 0.0
        %1253 = vmatpush.msra.mxu0 0.0
        %1254 = vmatpush.msra.mxu0 0.0
        %1255 = vmatpush.msra.mxu0 0.0
        %1256 = vmatpush.msra.mxu0 0.0
        %1257 = vmatpush.msra.mxu0 0.0
        %1258 = vmatpush.msra.mxu0 0.0
        %v1259 = vand.u32 %v1015, 4294901760
        %1260 = vmatpush.msra.mxu0 %v1259
        %v1261 = vand.u32 %v1020, 4294901760
        %v1262 = vsub.f32 %v1020, %v1261
        %v1263 = vand.u32 %v1262, 4294901760
        %1264 = vmatmul.f32.gmra.mxu0 %v1263
        %v1265 = vpop.f32.mrf.mxu0
        %v1266 = vadd.f32 %v1242, %v1265
        %1267 = vdwg.mxu0
        %1268 = vmatpush.msra.mxu0 0.0
        %1269 = vmatpush.msra.mxu0 0.0
        %1270 = vmatpush.msra.mxu0 0.0
        %1271 = vmatpush.msra.mxu0 0.0
        %1272 = vmatpush.msra.mxu0 0.0
        %1273 = vmatpush.msra.mxu0 0.0
        %1274 = vmatpush.msra.mxu0 0.0
        %1275 = vmatpush.msra.mxu0 0.0
        %1276 = vmatpush.msra.mxu0 0.0
        %1277 = vmatpush.msra.mxu0 0.0
        %1278 = vmatpush.msra.mxu0 0.0
        %1279 = vmatpush.msra.mxu0 0.0
        %1280 = vmatpush.msra.mxu0 0.0
        %1281 = vmatpush.msra.mxu0 0.0
        %1282 = vmatpush.msra.mxu0 0.0
        %v1283 = vand.u32 %v1015, 4294901760
        %v1284 = vsub.f32 %v1015, %v1283
        %v1285 = vand.u32 %v1284, 4294901760
        %1286 = vmatpush.msra.mxu0 %v1285
        %v1287 = vand.u32 %v1020, 4294901760
        %1288 = vmatmul.f32.gmra.mxu0 %v1287
        %v1289 = vpop.f32.mrf.mxu0
        %v1290 = vadd.f32 %v1266, %v1289
        %1291 = vdwg.mxu0
        %1292 = vmatpush.msra.mxu0 0.0
        %1293 = vmatpush.msra.mxu0 0.0
        %1294 = vmatpush.msra.mxu0 0.0
        %1295 = vmatpush.msra.mxu0 0.0
        %1296 = vmatpush.msra.mxu0 0.0
        %1297 = vmatpush.msra.mxu0 0.0
        %1298 = vmatpush.msra.mxu0 0.0
        %1299 = vmatpush.msra.mxu0 0.0
        %1300 = vmatpush.msra.mxu0 0.0
        %1301 = vmatpush.msra.mxu0 0.0
        %1302 = vmatpush.msra.mxu0 0.0
        %1303 = vmatpush.msra.mxu0 0.0
        %1304 = vmatpush.msra.mxu0 0.0
        %1305 = vmatpush.msra.mxu0 0.0
        %1306 = vmatpush.msra.mxu0 0.0
        %v1307 = vand.u32 %v1015, 4294901760
        %1308 = vmatpush.msra.mxu0 %v1307
        %v1309 = vand.u32 %v1020, 4294901760
        %1310 = vmatmul.f32.gmra.mxu0 %v1309
        %v1311 = vpop.f32.mrf.mxu0
        %v1312 = vadd.f32 %v1290, %v1311
        %1313 = vdwg.mxu0
        %1314 = vmatpush.msra.mxu0 0.0
        %1315 = vmatpush.msra.mxu0 0.0
        %1316 = vmatpush.msra.mxu0 0.0
        %1317 = vmatpush.msra.mxu0 0.0
        %1318 = vmatpush.msra.mxu0 0.0
        %1319 = vmatpush.msra.mxu0 0.0
        %1320 = vmatpush.msra.mxu0 0.0
        %1321 = vmatpush.msra.mxu0 0.0
        %1322 = vmatpush.msra.mxu0 0.0
        %1323 = vmatpush.msra.mxu0 0.0
        %1324 = vmatpush.msra.mxu0 0.0
        %1325 = vmatpush.msra.mxu0 0.0
        %1326 = vmatpush.msra.mxu0 0.0
        %1327 = vmatpush.msra.mxu0 0.0
        %1328 = vmatpush.msra.mxu0 0.0
        %v1329 = vand.u32 %v1016, 4294901760
        %1330 = vmatpush.msra.mxu0 %v1329
        %v1331 = vand.u32 %v1020, 4294901760
        %v1332 = vsub.f32 %v1020, %v1331
        %v1333 = vand.u32 %v1332, 4294901760
        %v1334 = vsub.f32 %v1332, %v1333
        %v1335 = vand.u32 %v1334, 4294901760
        %1336 = vmatmul.f32.gmra.mxu0 %v1335
        %v1337 = vpop.f32.mrf.mxu0
        %v1338 = vadd.f32 0.5, %v1337
        %1339 = vdwg.mxu0
        %1340 = vmatpush.msra.mxu0 0.0
        %1341 = vmatpush.msra.mxu0 0.0
        %1342 = vmatpush.msra.mxu0 0.0
        %1343 = vmatpush.msra.mxu0 0.0
        %1344 = vmatpush.msra.mxu0 0.0
        %1345 = vmatpush.msra.mxu0 0.0
        %1346 = vmatpush.msra.mxu0 0.0
        %1347 = vmatpush.msra.mxu0 0.0
        %1348 = vmatpush.msra.mxu0 0.0
        %1349 = vmatpush.msra.mxu0 0.0
        %1350 = vmatpush.msra.mxu0 0.0
        %1351 = vmatpush.msra.mxu0 0.0
        %1352 = vmatpush.msra.mxu0 0.0
        %1353 = vmatpush.msra.mxu0 0.0
        %1354 = vmatpush.msra.mxu0 0.0
        %v1355 = vand.u32 %v1016, 4294901760
        %v1356 = vsub.f32 %v1016, %v1355
        %v1357 = vand.u32 %v1356, 4294901760
        %v1358 = vsub.f32 %v1356, %v1357
        %v1359 = vand.u32 %v1358, 4294901760
        %1360 = vmatpush.msra.mxu0 %v1359
        %v1361 = vand.u32 %v1020, 4294901760
        %1362 = vmatmul.f32.gmra.mxu0 %v1361
        %v1363 = vpop.f32.mrf.mxu0
        %v1364 = vadd.f32 %v1338, %v1363
        %1365 = vdwg.mxu0
        %1366 = vmatpush.msra.mxu0 0.0
        %1367 = vmatpush.msra.mxu0 0.0
        %1368 = vmatpush.msra.mxu0 0.0
        %1369 = vmatpush.msra.mxu0 0.0
        %1370 = vmatpush.msra.mxu0 0.0
        %1371 = vmatpush.msra.mxu0 0.0
        %1372 = vmatpush.msra.mxu0 0.0
        %1373 = vmatpush.msra.mxu0 0.0
        %1374 = vmatpush.msra.mxu0 0.0
        %1375 = vmatpush.msra.mxu0 0.0
        %1376 = vmatpush.msra.mxu0 0.0
        %1377 = vmatpush.msra.mxu0 0.0
        %1378 = vmatpush.msra.mxu0 0.0
        %1379 = vmatpush.msra.mxu0 0.0
        %1380 = vmatpush.msra.mxu0 0.0
        %v1381 = vand.u32 %v1016, 4294901760
        %v1382 = vsub.f32 %v1016, %v1381
        %1383 = vmatpush.msra.mxu0 %v1382
        %v1384 = vand.u32 %v1020, 4294901760
        %v1385 = vsub.f32 %v1020, %v1384
        %1386 = vmatmul.f32.gmra.mxu0 %v1385
        %v1387 = vpop.f32.mrf.mxu0
        %v1388 = vadd.f32 %v1364, %v1387
        %1389 = vdwg.mxu0
        %1390 = vmatpush.msra.mxu0 0.0
        %1391 = vmatpush.msra.mxu0 0.0
        %1392 = vmatpush.msra.mxu0 0.0
        %1393 = vmatpush.msra.mxu0 0.0
        %1394 = vmatpush.msra.mxu0 0.0
        %1395 = vmatpush.msra.mxu0 0.0
        %1396 = vmatpush.msra.mxu0 0.0
        %1397 = vmatpush.msra.mxu0 0.0
        %1398 = vmatpush.msra.mxu0 0.0
        %1399 = vmatpush.msra.mxu0 0.0
        %1400 = vmatpush.msra.mxu0 0.0
        %1401 = vmatpush.msra.mxu0 0.0
        %1402 = vmatpush.msra.mxu0 0.0
        %1403 = vmatpush.msra.mxu0 0.0
        %1404 = vmatpush.msra.mxu0 0.0
        %v1405 = vand.u32 %v1016, 4294901760
        %1406 = vmatpush.msra.mxu0 %v1405
        %v1407 = vand.u32 %v1020, 4294901760
        %v1408 = vsub.f32 %v1020, %v1407
        %v1409 = vand.u32 %v1408, 4294901760
        %1410 = vmatmul.f32.gmra.mxu0 %v1409
        %v1411 = vpop.f32.mrf.mxu0
        %v1412 = vadd.f32 %v1388, %v1411
        %1413 = vdwg.mxu0
        %1414 = vmatpush.msra.mxu0 0.0
        %1415 = vmatpush.msra.mxu0 0.0
        %1416 = vmatpush.msra.mxu0 0.0
        %1417 = vmatpush.msra.mxu0 0.0
        %1418 = vmatpush.msra.mxu0 0.0
        %1419 = vmatpush.msra.mxu0 0.0
        %1420 = vmatpush.msra.mxu0 0.0
        %1421 = vmatpush.msra.mxu0 0.0
        %1422 = vmatpush.msra.mxu0 0.0
        %1423 = vmatpush.msra.mxu0 0.0
        %1424 = vmatpush.msra.mxu0 0.0
        %1425 = vmatpush.msra.mxu0 0.0
        %1426 = vmatpush.msra.mxu0 0.0
        %1427 = vmatpush.msra.mxu0 0.0
        %1428 = vmatpush.msra.mxu0 0.0
        %v1429 = vand.u32 %v1016, 4294901760
        %v1430 = vsub.f32 %v1016, %v1429
        %v1431 = vand.u32 %v1430, 4294901760
        %1432 = vmatpush.msra.mxu0 %v1431
        %v1433 = vand.u32 %v1020, 4294901760
        %1434 = vmatmul.f32.gmra.mxu0 %v1433
        %v1435 = vpop.f32.mrf.mxu0
        %v1436 = vadd.f32 %v1412, %v1435
        %1437 = vdwg.mxu0
        %1438 = vmatpush.msra.mxu0 0.0
        %1439 = vmatpush.msra.mxu0 0.0
        %1440 = vmatpush.msra.mxu0 0.0
        %1441 = vmatpush.msra.mxu0 0.0
        %1442 = vmatpush.msra.mxu0 0.0
        %1443 = vmatpush.msra.mxu0 0.0
        %1444 = vmatpush.msra.mxu0 0.0
        %1445 = vmatpush.msra.mxu0 0.0
        %1446 = vmatpush.msra.mxu0 0.0
        %1447 = vmatpush.msra.mxu0 0.0
        %1448 = vmatpush.msra.mxu0 0.0
        %1449 = vmatpush.msra.mxu0 0.0
        %1450 = vmatpush.msra.mxu0 0.0
        %1451 = vmatpush.msra.mxu0 0.0
        %1452 = vmatpush.msra.mxu0 0.0
        %v1453 = vand.u32 %v1016, 4294901760
        %1454 = vmatpush.msra.mxu0 %v1453
        %v1455 = vand.u32 %v1020, 4294901760
        %1456 = vmatmul.f32.gmra.mxu0 %v1455
        %v1457 = vpop.f32.mrf.mxu0
        %v1458 = vadd.f32 %v1436, %v1457
        %1459 = vdwg.mxu0
        %1460 = vmatpush.msra.mxu0 0.0
        %1461 = vmatpush.msra.mxu0 0.0
        %1462 = vmatpush.msra.mxu0 0.0
        %1463 = vmatpush.msra.mxu0 0.0
        %1464 = vmatpush.msra.mxu0 0.0
        %1465 = vmatpush.msra.mxu0 0.0
        %1466 = vmatpush.msra.mxu0 0.0
        %1467 = vmatpush.msra.mxu0 0.0
        %1468 = vmatpush.msra.mxu0 0.0
        %1469 = vmatpush.msra.mxu0 0.0
        %1470 = vmatpush.msra.mxu0 0.0
        %1471 = vmatpush.msra.mxu0 0.0
        %1472 = vmatpush.msra.mxu0 0.0
        %1473 = vmatpush.msra.mxu0 0.0
        %1474 = vmatpush.msra.mxu0 0.0
        %v1475 = vand.u32 %v1017, 4294901760
        %1476 = vmatpush.msra.mxu0 %v1475
        %v1477 = vand.u32 %v1020, 4294901760
        %v1478 = vsub.f32 %v1020, %v1477
        %v1479 = vand.u32 %v1478, 4294901760
        %v1480 = vsub.f32 %v1478, %v1479
        %v1481 = vand.u32 %v1480, 4294901760
        %1482 = vmatmul.f32.gmra.mxu0 %v1481
        %v1483 = vpop.f32.mrf.mxu0
        %v1484 = vadd.f32 0.5, %v1483
        %1485 = vdwg.mxu0
        %1486 = vmatpush.msra.mxu0 0.0
        %1487 = vmatpush.msra.mxu0 0.0
        %1488 = vmatpush.msra.mxu0 0.0
        %1489 = vmatpush.msra.mxu0 0.0
        %1490 = vmatpush.msra.mxu0 0.0
        %1491 = vmatpush.msra.mxu0 0.0
        %1492 = vmatpush.msra.mxu0 0.0
        %1493 = vmatpush.msra.mxu0 0.0
        %1494 = vmatpush.msra.mxu0 0.0
        %1495 = vmatpush.msra.mxu0 0.0
        %1496 = vmatpush.msra.mxu0 0.0
        %1497 = vmatpush.msra.mxu0 0.0
        %1498 = vmatpush.msra.mxu0 0.0
        %1499 = vmatpush.msra.mxu0 0.0
        %1500 = vmatpush.msra.mxu0 0.0
        %v1501 = vand.u32 %v1017, 4294901760
        %v1502 = vsub.f32 %v1017, %v1501
        %v1503 = vand.u32 %v1502, 4294901760
        %v1504 = vsub.f32 %v1502, %v1503
        %v1505 = vand.u32 %v1504, 4294901760
        %1506 = vmatpush.msra.mxu0 %v1505
        %v1507 = vand.u32 %v1020, 4294901760
        %1508 = vmatmul.f32.gmra.mxu0 %v1507
        %v1509 = vpop.f32.mrf.mxu0
        %v1510 = vadd.f32 %v1484, %v1509
        %1511 = vdwg.mxu0
        %1512 = vmatpush.msra.mxu0 0.0
        %1513 = vmatpush.msra.mxu0 0.0
        %1514 = vmatpush.msra.mxu0 0.0
        %1515 = vmatpush.msra.mxu0 0.0
        %1516 = vmatpush.msra.mxu0 0.0
        %1517 = vmatpush.msra.mxu0 0.0
        %1518 = vmatpush.msra.mxu0 0.0
        %1519 = vmatpush.msra.mxu0 0.0
        %1520 = vmatpush.msra.mxu0 0.0
        %1521 = vmatpush.msra.mxu0 0.0
        %1522 = vmatpush.msra.mxu0 0.0
        %1523 = vmatpush.msra.mxu0 0.0
        %1524 = vmatpush.msra.mxu0 0.0
        %1525 = vmatpush.msra.mxu0 0.0
        %1526 = vmatpush.msra.mxu0 0.0
        %v1527 = vand.u32 %v1017, 4294901760
        %v1528 = vsub.f32 %v1017, %v1527
        %1529 = vmatpush.msra.mxu0 %v1528
        %v1530 = vand.u32 %v1020, 4294901760
        %v1531 = vsub.f32 %v1020, %v1530
        %1532 = vmatmul.f32.gmra.mxu0 %v1531
        %v1533 = vpop.f32.mrf.mxu0
        %v1534 = vadd.f32 %v1510, %v1533
        %1535 = vdwg.mxu0
        %1536 = vmatpush.msra.mxu0 0.0
        %1537 = vmatpush.msra.mxu0 0.0
        %1538 = vmatpush.msra.mxu0 0.0
        %1539 = vmatpush.msra.mxu0 0.0
        %1540 = vmatpush.msra.mxu0 0.0
        %1541 = vmatpush.msra.mxu0 0.0
        %1542 = vmatpush.msra.mxu0 0.0
        %1543 = vmatpush.msra.mxu0 0.0
        %1544 = vmatpush.msra.mxu0 0.0
        %1545 = vmatpush.msra.mxu0 0.0
        %1546 = vmatpush.msra.mxu0 0.0
        %1547 = vmatpush.msra.mxu0 0.0
        %1548 = vmatpush.msra.mxu0 0.0
        %1549 = vmatpush.msra.mxu0 0.0
        %1550 = vmatpush.msra.mxu0 0.0
        %v1551 = vand.u32 %v1017, 4294901760
        %1552 = vmatpush.msra.mxu0 %v1551
        %v1553 = vand.u32 %v1020, 4294901760
        %v1554 = vsub.f32 %v1020, %v1553
        %v1555 = vand.u32 %v1554, 4294901760
        %1556 = vmatmul.f32.gmra.mxu0 %v1555
        %v1557 = vpop.f32.mrf.mxu0
        %v1558 = vadd.f32 %v1534, %v1557
        %1559 = vdwg.mxu0
        %1560 = vmatpush.msra.mxu0 0.0
        %1561 = vmatpush.msra.mxu0 0.0
        %1562 = vmatpush.msra.mxu0 0.0
        %1563 = vmatpush.msra.mxu0 0.0
        %1564 = vmatpush.msra.mxu0 0.0
        %1565 = vmatpush.msra.mxu0 0.0
        %1566 = vmatpush.msra.mxu0 0.0
        %1567 = vmatpush.msra.mxu0 0.0
        %1568 = vmatpush.msra.mxu0 0.0
        %1569 = vmatpush.msra.mxu0 0.0
        %1570 = vmatpush.msra.mxu0 0.0
        %1571 = vmatpush.msra.mxu0 0.0
        %1572 = vmatpush.msra.mxu0 0.0
        %1573 = vmatpush.msra.mxu0 0.0
        %1574 = vmatpush.msra.mxu0 0.0
        %v1575 = vand.u32 %v1017, 4294901760
        %v1576 = vsub.f32 %v1017, %v1575
        %v1577 = vand.u32 %v1576, 4294901760
        %1578 = vmatpush.msra.mxu0 %v1577
        %v1579 = vand.u32 %v1020, 4294901760
        %1580 = vmatmul.f32.gmra.mxu0 %v1579
        %v1581 = vpop.f32.mrf.mxu0
        %v1582 = vadd.f32 %v1558, %v1581
        %1583 = vdwg.mxu0
        %1584 = vmatpush.msra.mxu0 0.0
        %1585 = vmatpush.msra.mxu0 0.0
        %1586 = vmatpush.msra.mxu0 0.0
        %1587 = vmatpush.msra.mxu0 0.0
        %1588 = vmatpush.msra.mxu0 0.0
        %1589 = vmatpush.msra.mxu0 0.0
        %1590 = vmatpush.msra.mxu0 0.0
        %1591 = vmatpush.msra.mxu0 0.0
        %1592 = vmatpush.msra.mxu0 0.0
        %1593 = vmatpush.msra.mxu0 0.0
        %1594 = vmatpush.msra.mxu0 0.0
        %1595 = vmatpush.msra.mxu0 0.0
        %1596 = vmatpush.msra.mxu0 0.0
        %1597 = vmatpush.msra.mxu0 0.0
        %1598 = vmatpush.msra.mxu0 0.0
        %v1599 = vand.u32 %v1017, 4294901760
        %1600 = vmatpush.msra.mxu0 %v1599
        %v1601 = vand.u32 %v1020, 4294901760
        %1602 = vmatmul.f32.gmra.mxu0 %v1601
        %v1603 = vpop.f32.mrf.mxu0
        %v1604 = vadd.f32 %v1582, %v1603
        %1605 = vdwg.mxu0
        %v1606 = vcvt.f32.s32.to.zero.pseudo %v1166
        %v1607 = vcvt.f32.s32.to.zero.pseudo %v1312
        %v1608 = vcvt.f32.s32.to.zero.pseudo %v1458
        %v1609 = vcvt.f32.s32.to.zero.pseudo %v1604
        %1611 = vrot.lane.b32.xlu0 %v690, 64
        %v1612 = vpop.permute.xlu0 %1611
        %vm1614 = vcmask 523264
        %v1615 = vsel %vm1614, %v690, %v1612
        %vm1616 = vcmp.eq.s32.totalorder %v1606, 0
        %vm1617 = vcmp.eq.s32.totalorder %v1607, 0
        %vm1618 = vcmp.eq.s32.totalorder %v1608, 0
        %vm1619 = vcmp.eq.s32.totalorder %v1609, 0
        %v1620 = vperm.slane %v1615, 0
        %v1621 = vsel %vm1616, %v1620, 0.0
        %v1622 = vsel %vm1617, %v1620, 0.0
        %v1623 = vsel %vm1618, %v1620, 0.0
        %v1624 = vsel %vm1619, %v1620, 0.0
        %v1625 = vadd.f32 %v1621, 0.0
        %v1626 = vadd.f32 %v1622, 0.0
        %v1627 = vadd.f32 %v1623, 0.0
        %v1628 = vadd.f32 %v1624, 0.0
        %vm1629 = vcmp.eq.s32.totalorder %v1606, 1
        %vm1630 = vcmp.eq.s32.totalorder %v1607, 1
        %vm1631 = vcmp.eq.s32.totalorder %v1608, 1
        %vm1632 = vcmp.eq.s32.totalorder %v1609, 1
        %v1633 = vperm.slane %v1615, 1
        %v1634 = vsel %vm1629, %v1633, 0.0
        %v1635 = vsel %vm1630, %v1633, 0.0
        %v1636 = vsel %vm1631, %v1633, 0.0
        %v1637 = vsel %vm1632, %v1633, 0.0
        %v1638 = vadd.f32 %v1625, %v1634
        %v1639 = vadd.f32 %v1626, %v1635
        %v1640 = vadd.f32 %v1627, %v1636
        %v1641 = vadd.f32 %v1628, %v1637
        %vm1642 = vcmp.eq.s32.totalorder %v1606, 2
        %vm1643 = vcmp.eq.s32.totalorder %v1607, 2
        %vm1644 = vcmp.eq.s32.totalorder %v1608, 2
        %vm1645 = vcmp.eq.s32.totalorder %v1609, 2
        %v1646 = vperm.slane %v1615, 2
        %v1647 = vsel %vm1642, %v1646, 0.0
        %v1648 = vsel %vm1643, %v1646, 0.0
        %v1649 = vsel %vm1644, %v1646, 0.0
        %v1650 = vsel %vm1645, %v1646, 0.0
        %v1651 = vadd.f32 %v1638, %v1647
        %v1652 = vadd.f32 %v1639, %v1648
        %v1653 = vadd.f32 %v1640, %v1649
        %v1654 = vadd.f32 %v1641, %v1650
        %vm1655 = vcmp.eq.s32.totalorder %v1606, 3
        %vm1656 = vcmp.eq.s32.totalorder %v1607, 3
        %vm1657 = vcmp.eq.s32.totalorder %v1608, 3
        %vm1658 = vcmp.eq.s32.totalorder %v1609, 3
        %v1659 = vperm.slane %v1615, 3
        %v1660 = vsel %vm1655, %v1659, 0.0
        %v1661 = vsel %vm1656, %v1659, 0.0
        %v1662 = vsel %vm1657, %v1659, 0.0
        %v1663 = vsel %vm1658, %v1659, 0.0
        %v1664 = vadd.f32 %v1651, %v1660
        %v1665 = vadd.f32 %v1652, %v1661
        %v1666 = vadd.f32 %v1653, %v1662
        %v1667 = vadd.f32 %v1654, %v1663
        %vm1668 = vcmp.eq.s32.totalorder %v1606, 4
        %vm1669 = vcmp.eq.s32.totalorder %v1607, 4
        %vm1670 = vcmp.eq.s32.totalorder %v1608, 4
        %vm1671 = vcmp.eq.s32.totalorder %v1609, 4
        %v1672 = vperm.slane %v1615, 4
        %v1673 = vsel %vm1668, %v1672, 0.0
        %v1674 = vsel %vm1669, %v1672, 0.0
        %v1675 = vsel %vm1670, %v1672, 0.0
        %v1676 = vsel %vm1671, %v1672, 0.0
        %v1677 = vadd.f32 %v1664, %v1673
        %v1678 = vadd.f32 %v1665, %v1674
        %v1679 = vadd.f32 %v1666, %v1675
        %v1680 = vadd.f32 %v1667, %v1676
        %vm1681 = vcmp.eq.s32.totalorder %v1606, 5
        %vm1682 = vcmp.eq.s32.totalorder %v1607, 5
        %vm1683 = vcmp.eq.s32.totalorder %v1608, 5
        %vm1684 = vcmp.eq.s32.totalorder %v1609, 5
        %v1685 = vperm.slane %v1615, 5
        %v1686 = vsel %vm1681, %v1685, 0.0
        %v1687 = vsel %vm1682, %v1685, 0.0
        %v1688 = vsel %vm1683, %v1685, 0.0
        %v1689 = vsel %vm1684, %v1685, 0.0
        %v1690 = vadd.f32 %v1677, %v1686
        %v1691 = vadd.f32 %v1678, %v1687
        %v1692 = vadd.f32 %v1679, %v1688
        %v1693 = vadd.f32 %v1680, %v1689
        %vm1694 = vcmp.eq.s32.totalorder %v1606, 6
        %vm1695 = vcmp.eq.s32.totalorder %v1607, 6
        %vm1696 = vcmp.eq.s32.totalorder %v1608, 6
        %vm1697 = vcmp.eq.s32.totalorder %v1609, 6
        %v1698 = vperm.slane %v1615, 6
        %v1699 = vsel %vm1694, %v1698, 0.0
        %v1700 = vsel %vm1695, %v1698, 0.0
        %v1701 = vsel %vm1696, %v1698, 0.0
        %v1702 = vsel %vm1697, %v1698, 0.0
        %v1703 = vadd.f32 %v1690, %v1699
        %v1704 = vadd.f32 %v1691, %v1700
        %v1705 = vadd.f32 %v1692, %v1701
        %v1706 = vadd.f32 %v1693, %v1702
        %vm1707 = vcmp.eq.s32.totalorder %v1606, 7
        %vm1708 = vcmp.eq.s32.totalorder %v1607, 7
        %vm1709 = vcmp.eq.s32.totalorder %v1608, 7
        %vm1710 = vcmp.eq.s32.totalorder %v1609, 7
        %v1711 = vperm.slane %v1615, 7
        %v1712 = vsel %vm1707, %v1711, 0.0
        %v1713 = vsel %vm1708, %v1711, 0.0
        %v1714 = vsel %vm1709, %v1711, 0.0
        %v1715 = vsel %vm1710, %v1711, 0.0
        %v1716 = vadd.f32 %v1703, %v1712
        %v1717 = vadd.f32 %v1704, %v1713
        %v1718 = vadd.f32 %v1705, %v1714
        %v1719 = vadd.f32 %v1706, %v1715
        %1721 = vrot.lane.b32.xlu0 %v686, 64
        %v1722 = vpop.permute.xlu0 %1721
        %v1724 = vsel %vm1614, %v1722, %v686
        %v1725 = vmul.f32 %v1724, %v1716
        %v1726 = vmul.f32 %v1724, %v1717
        %v1727 = vmul.f32 %v1724, %v1718
        %v1728 = vmul.f32 %v1724, %v1719
        %v1729 = vld [vmem:[%s4] sm:$0xff]
        %v1730 = vld [vmem:[%s4 + $0x8] sm:$0xff]
        %v1731 = vld [vmem:[%s4 + $0x10] sm:$0xff]
        %v1732 = vld [vmem:[%s4 + $0x18] sm:$0xff]
        %v1733 = vld [vmem:[%s4 + $0x20] sm:$0xff]
        %v1734 = vld [vmem:[%s4 + $0x28] sm:$0xff]
        %v1735 = vld [vmem:[%s4 + $0x30] sm:$0xff]
        %v1736 = vld [vmem:[%s4 + $0x38] sm:$0xff]
        %v1737 = vld [vmem:[%s4 + $0x40] sm:$0xff]
        %v1738 = vld [vmem:[%s4 + $0x48] sm:$0xff]
        %v1739 = vld [vmem:[%s4 + $0x50] sm:$0xff]
        %v1740 = vld [vmem:[%s4 + $0x58] sm:$0xff]
        %v1741 = vld [vmem:[%s4 + $0x60] sm:$0xff]
        %v1742 = vld [vmem:[%s4 + $0x68] sm:$0xff]
        %v1743 = vld [vmem:[%s4 + $0x70] sm:$0xff]
        %v1744 = vld [vmem:[%s4 + $0x78] sm:$0xff]
        %v1745 = vld [vmem:[%s4 + $0x80] sm:$0xff]
        %v1746 = vld [vmem:[%s4 + $0x88] sm:$0xff]
        %v1747 = vld [vmem:[%s4 + $0x90] sm:$0xff]
        %v1748 = vld [vmem:[%s4 + $0x98] sm:$0xff]
        %v1749 = vld [vmem:[%s4 + $0xa0] sm:$0xff]
        %v1750 = vld [vmem:[%s4 + $0xa8] sm:$0xff]
        %v1751 = vld [vmem:[%s4 + $0xb0] sm:$0xff]
        %v1752 = vld [vmem:[%s4 + $0xb8] sm:$0xff]
        %v1753 = vld [vmem:[%s4 + $0xc0] sm:$0xff]
        %v1754 = vld [vmem:[%s4 + $0xc8] sm:$0xff]
        %v1755 = vld [vmem:[%s4 + $0xd0] sm:$0xff]
        %v1756 = vld [vmem:[%s4 + $0xd8] sm:$0xff]
        %v1757 = vld [vmem:[%s4 + $0xe0] sm:$0xff]
        %v1758 = vld [vmem:[%s4 + $0xe8] sm:$0xff]
        %v1759 = vld [vmem:[%s4 + $0xf0] sm:$0xff]
        %v1760 = vld [vmem:[%s4 + $0xf8] sm:$0xff]
        %v1761 = vld [vmem:[%s4 + $0x100] sm:$0xff]
        %v1762 = vld [vmem:[%s4 + $0x108] sm:$0xff]
        %v1763 = vld [vmem:[%s4 + $0x110] sm:$0xff]
        %v1764 = vld [vmem:[%s4 + $0x118] sm:$0xff]
        %v1765 = vld [vmem:[%s4 + $0x120] sm:$0xff]
        %v1766 = vld [vmem:[%s4 + $0x128] sm:$0xff]
        %v1767 = vld [vmem:[%s4 + $0x130] sm:$0xff]
        %v1768 = vld [vmem:[%s4 + $0x138] sm:$0xff]
        %v1769 = vld [vmem:[%s4 + $0x140] sm:$0xff]
        %v1770 = vld [vmem:[%s4 + $0x148] sm:$0xff]
        %v1771 = vld [vmem:[%s4 + $0x150] sm:$0xff]
        %v1772 = vld [vmem:[%s4 + $0x158] sm:$0xff]
        %v1773 = vld [vmem:[%s4 + $0x160] sm:$0xff]
        %v1774 = vld [vmem:[%s4 + $0x168] sm:$0xff]
        %v1775 = vld [vmem:[%s4 + $0x170] sm:$0xff]
        %v1776 = vld [vmem:[%s4 + $0x178] sm:$0xff]
        %v1777 = vld [vmem:[%s4 + $0x180] sm:$0xff]
        %v1778 = vld [vmem:[%s4 + $0x188] sm:$0xff]
        %v1779 = vld [vmem:[%s4 + $0x190] sm:$0xff]
        %v1780 = vld [vmem:[%s4 + $0x198] sm:$0xff]
        %v1781 = vld [vmem:[%s4 + $0x1a0] sm:$0xff]
        %v1782 = vld [vmem:[%s4 + $0x1a8] sm:$0xff]
        %v1783 = vld [vmem:[%s4 + $0x1b0] sm:$0xff]
        %v1784 = vld [vmem:[%s4 + $0x1b8] sm:$0xff]
        %v1785 = vld [vmem:[%s4 + $0x1c0] sm:$0xff]
        %v1786 = vld [vmem:[%s4 + $0x1c8] sm:$0xff]
        %v1787 = vld [vmem:[%s4 + $0x1d0] sm:$0xff]
        %v1788 = vld [vmem:[%s4 + $0x1d8] sm:$0xff]
        %v1789 = vld [vmem:[%s4 + $0x1e0] sm:$0xff]
        %v1790 = vld [vmem:[%s4 + $0x1e8] sm:$0xff]
        %v1791 = vld [vmem:[%s4 + $0x1f0] sm:$0xff]
        %v1792 = vld [vmem:[%s4 + $0x1f8] sm:$0xff]
        %v1793 = vand.u32 %v1744, 4294901760
        %1794 = vmatpush.msra.mxu0 %v1793
        %v1795 = vand.u32 %v1743, 4294901760
        %1796 = vmatpush.msra.mxu0 %v1795
        %v1797 = vand.u32 %v1742, 4294901760
        %1798 = vmatpush.msra.mxu0 %v1797
        %v1799 = vand.u32 %v1741, 4294901760
        %1800 = vmatpush.msra.mxu0 %v1799
        %v1801 = vand.u32 %v1740, 4294901760
        %1802 = vmatpush.msra.mxu0 %v1801
        %v1803 = vand.u32 %v1739, 4294901760
        %1804 = vmatpush.msra.mxu0 %v1803
        %v1805 = vand.u32 %v1738, 4294901760
        %1806 = vmatpush.msra.mxu0 %v1805
        %v1807 = vand.u32 %v1737, 4294901760
        %1808 = vmatpush.msra.mxu0 %v1807
        %v1809 = vand.u32 %v1736, 4294901760
        %1810 = vmatpush.msra.mxu0 %v1809
        %v1811 = vand.u32 %v1735, 4294901760
        %1812 = vmatpush.msra.mxu0 %v1811
        %v1813 = vand.u32 %v1734, 4294901760
        %1814 = vmatpush.msra.mxu0 %v1813
        %v1815 = vand.u32 %v1733, 4294901760
        %1816 = vmatpush.msra.mxu0 %v1815
        %v1817 = vand.u32 %v1732, 4294901760
        %1818 = vmatpush.msra.mxu0 %v1817
        %v1819 = vand.u32 %v1731, 4294901760
        %1820 = vmatpush.msra.mxu0 %v1819
        %v1821 = vand.u32 %v1730, 4294901760
        %1822 = vmatpush.msra.mxu0 %v1821
        %v1823 = vand.u32 %v1729, 4294901760
        %1824 = vmatpush.msra.mxu0 %v1823
        %v1825 = vand.u32 %v1725, 4294901760
        %v1826 = vsub.f32 %v1725, %v1825
        %v1827 = vand.u32 %v1826, 4294901760
        %v1828 = vsub.f32 %v1826, %v1827
        %v1829 = vand.u32 %v1828, 4294901760
        %1830 = vmatmul.f32.gmra.mxu0 %v1829
        %v1831 = vpop.f32.mrf.mxu0
        %v1832 = vadd.f32 0.0, %v1831
        %1833 = vdwg.mxu0
        %v1834 = vand.u32 %v1744, 4294901760
        %v1835 = vsub.f32 %v1744, %v1834
        %v1836 = vand.u32 %v1835, 4294901760
        %v1837 = vsub.f32 %v1835, %v1836
        %v1838 = vand.u32 %v1837, 4294901760
        %1839 = vmatpush.msra.mxu0 %v1838
        %v1840 = vand.u32 %v1743, 4294901760
        %v1841 = vsub.f32 %v1743, %v1840
        %v1842 = vand.u32 %v1841, 4294901760
        %v1843 = vsub.f32 %v1841, %v1842
        %v1844 = vand.u32 %v1843, 4294901760
        %1845 = vmatpush.msra.mxu0 %v1844
        %v1846 = vand.u32 %v1742, 4294901760
        %v1847 = vsub.f32 %v1742, %v1846
        %v1848 = vand.u32 %v1847, 4294901760
        %v1849 = vsub.f32 %v1847, %v1848
        %v1850 = vand.u32 %v1849, 4294901760
        %1851 = vmatpush.msra.mxu0 %v1850
        %v1852 = vand.u32 %v1741, 4294901760
        %v1853 = vsub.f32 %v1741, %v1852
        %v1854 = vand.u32 %v1853, 4294901760
        %v1855 = vsub.f32 %v1853, %v1854
        %v1856 = vand.u32 %v1855, 4294901760
        %1857 = vmatpush.msra.mxu0 %v1856
        %v1858 = vand.u32 %v1740, 4294901760
        %v1859 = vsub.f32 %v1740, %v1858
        %v1860 = vand.u32 %v1859, 4294901760
        %v1861 = vsub.f32 %v1859, %v1860
        %v1862 = vand.u32 %v1861, 4294901760
        %1863 = vmatpush.msra.mxu0 %v1862
        %v1864 = vand.u32 %v1739, 4294901760
        %v1865 = vsub.f32 %v1739, %v1864
        %v1866 = vand.u32 %v1865, 4294901760
        %v1867 = vsub.f32 %v1865, %v1866
        %v1868 = vand.u32 %v1867, 4294901760
        %1869 = vmatpush.msra.mxu0 %v1868
        %v1870 = vand.u32 %v1738, 4294901760
        %v1871 = vsub.f32 %v1738, %v1870
        %v1872 = vand.u32 %v1871, 4294901760
        %v1873 = vsub.f32 %v1871, %v1872
        %v1874 = vand.u32 %v1873, 4294901760
        %1875 = vmatpush.msra.mxu0 %v1874
        %v1876 = vand.u32 %v1737, 4294901760
        %v1877 = vsub.f32 %v1737, %v1876
        %v1878 = vand.u32 %v1877, 4294901760
        %v1879 = vsub.f32 %v1877, %v1878
        %v1880 = vand.u32 %v1879, 4294901760
        %1881 = vmatpush.msra.mxu0 %v1880
        %v1882 = vand.u32 %v1736, 4294901760
        %v1883 = vsub.f32 %v1736, %v1882
        %v1884 = vand.u32 %v1883, 4294901760
        %v1885 = vsub.f32 %v1883, %v1884
        %v1886 = vand.u32 %v1885, 4294901760
        %1887 = vmatpush.msra.mxu0 %v1886
        %v1888 = vand.u32 %v1735, 4294901760
        %v1889 = vsub.f32 %v1735, %v1888
        %v1890 = vand.u32 %v1889, 4294901760
        %v1891 = vsub.f32 %v1889, %v1890
        %v1892 = vand.u32 %v1891, 4294901760
        %1893 = vmatpush.msra.mxu0 %v1892
        %v1894 = vand.u32 %v1734, 4294901760
        %v1895 = vsub.f32 %v1734, %v1894
        %v1896 = vand.u32 %v1895, 4294901760
        %v1897 = vsub.f32 %v1895, %v1896
        %v1898 = vand.u32 %v1897, 4294901760
        %1899 = vmatpush.msra.mxu0 %v1898
        %v1900 = vand.u32 %v1733, 4294901760
        %v1901 = vsub.f32 %v1733, %v1900
        %v1902 = vand.u32 %v1901, 4294901760
        %v1903 = vsub.f32 %v1901, %v1902
        %v1904 = vand.u32 %v1903, 4294901760
        %1905 = vmatpush.msra.mxu0 %v1904
        %v1906 = vand.u32 %v1732, 4294901760
        %v1907 = vsub.f32 %v1732, %v1906
        %v1908 = vand.u32 %v1907, 4294901760
        %v1909 = vsub.f32 %v1907, %v1908
        %v1910 = vand.u32 %v1909, 4294901760
        %1911 = vmatpush.msra.mxu0 %v1910
        %v1912 = vand.u32 %v1731, 4294901760
        %v1913 = vsub.f32 %v1731, %v1912
        %v1914 = vand.u32 %v1913, 4294901760
        %v1915 = vsub.f32 %v1913, %v1914
        %v1916 = vand.u32 %v1915, 4294901760
        %1917 = vmatpush.msra.mxu0 %v1916
        %v1918 = vand.u32 %v1730, 4294901760
        %v1919 = vsub.f32 %v1730, %v1918
        %v1920 = vand.u32 %v1919, 4294901760
        %v1921 = vsub.f32 %v1919, %v1920
        %v1922 = vand.u32 %v1921, 4294901760
        %1923 = vmatpush.msra.mxu0 %v1922
        %v1924 = vand.u32 %v1729, 4294901760
        %v1925 = vsub.f32 %v1729, %v1924
        %v1926 = vand.u32 %v1925, 4294901760
        %v1927 = vsub.f32 %v1925, %v1926
        %v1928 = vand.u32 %v1927, 4294901760
        %1929 = vmatpush.msra.mxu0 %v1928
        %v1930 = vand.u32 %v1725, 4294901760
        %1931 = vmatmul.f32.gmra.mxu0 %v1930
        %v1932 = vpop.f32.mrf.mxu0
        %v1933 = vadd.f32 %v1832, %v1932
        %1934 = vdwg.mxu0
        %v1935 = vand.u32 %v1744, 4294901760
        %v1936 = vsub.f32 %v1744, %v1935
        %1937 = vmatpush.msra.mxu0 %v1936
        %v1938 = vand.u32 %v1743, 4294901760
        %v1939 = vsub.f32 %v1743, %v1938
        %1940 = vmatpush.msra.mxu0 %v1939
        %v1941 = vand.u32 %v1742, 4294901760
        %v1942 = vsub.f32 %v1742, %v1941
        %1943 = vmatpush.msra.mxu0 %v1942
        %v1944 = vand.u32 %v1741, 4294901760
        %v1945 = vsub.f32 %v1741, %v1944
        %1946 = vmatpush.msra.mxu0 %v1945
        %v1947 = vand.u32 %v1740, 4294901760
        %v1948 = vsub.f32 %v1740, %v1947
        %1949 = vmatpush.msra.mxu0 %v1948
        %v1950 = vand.u32 %v1739, 4294901760
        %v1951 = vsub.f32 %v1739, %v1950
        %1952 = vmatpush.msra.mxu0 %v1951
        %v1953 = vand.u32 %v1738, 4294901760
        %v1954 = vsub.f32 %v1738, %v1953
        %1955 = vmatpush.msra.mxu0 %v1954
        %v1956 = vand.u32 %v1737, 4294901760
        %v1957 = vsub.f32 %v1737, %v1956
        %1958 = vmatpush.msra.mxu0 %v1957
        %v1959 = vand.u32 %v1736, 4294901760
        %v1960 = vsub.f32 %v1736, %v1959
        %1961 = vmatpush.msra.mxu0 %v1960
        %v1962 = vand.u32 %v1735, 4294901760
        %v1963 = vsub.f32 %v1735, %v1962
        %1964 = vmatpush.msra.mxu0 %v1963
        %v1965 = vand.u32 %v1734, 4294901760
        %v1966 = vsub.f32 %v1734, %v1965
        %1967 = vmatpush.msra.mxu0 %v1966
        %v1968 = vand.u32 %v1733, 4294901760
        %v1969 = vsub.f32 %v1733, %v1968
        %1970 = vmatpush.msra.mxu0 %v1969
        %v1971 = vand.u32 %v1732, 4294901760
        %v1972 = vsub.f32 %v1732, %v1971
        %1973 = vmatpush.msra.mxu0 %v1972
        %v1974 = vand.u32 %v1731, 4294901760
        %v1975 = vsub.f32 %v1731, %v1974
        %1976 = vmatpush.msra.mxu0 %v1975
        %v1977 = vand.u32 %v1730, 4294901760
        %v1978 = vsub.f32 %v1730, %v1977
        %1979 = vmatpush.msra.mxu0 %v1978
        %v1980 = vand.u32 %v1729, 4294901760
        %v1981 = vsub.f32 %v1729, %v1980
        %1982 = vmatpush.msra.mxu0 %v1981
        %v1983 = vand.u32 %v1725, 4294901760
        %v1984 = vsub.f32 %v1725, %v1983
        %1985 = vmatmul.f32.gmra.mxu0 %v1984
        %v1986 = vpop.f32.mrf.mxu0
        %v1987 = vadd.f32 %v1933, %v1986
        %1988 = vdwg.mxu0
        %v1989 = vand.u32 %v1744, 4294901760
        %1990 = vmatpush.msra.mxu0 %v1989
        %v1991 = vand.u32 %v1743, 4294901760
        %1992 = vmatpush.msra.mxu0 %v1991
        %v1993 = vand.u32 %v1742, 4294901760
        %1994 = vmatpush.msra.mxu0 %v1993
        %v1995 = vand.u32 %v1741, 4294901760
        %1996 = vmatpush.msra.mxu0 %v1995
        %v1997 = vand.u32 %v1740, 4294901760
        %1998 = vmatpush.msra.mxu0 %v1997
        %v1999 = vand.u32 %v1739, 4294901760
        %2000 = vmatpush.msra.mxu0 %v1999
        %v2001 = vand.u32 %v1738, 4294901760
        %2002 = vmatpush.msra.mxu0 %v2001
        %v2003 = vand.u32 %v1737, 4294901760
        %2004 = vmatpush.msra.mxu0 %v2003
        %v2005 = vand.u32 %v1736, 4294901760
        %2006 = vmatpush.msra.mxu0 %v2005
        %v2007 = vand.u32 %v1735, 4294901760
        %2008 = vmatpush.msra.mxu0 %v2007
        %v2009 = vand.u32 %v1734, 4294901760
        %2010 = vmatpush.msra.mxu0 %v2009
        %v2011 = vand.u32 %v1733, 4294901760
        %2012 = vmatpush.msra.mxu0 %v2011
        %v2013 = vand.u32 %v1732, 4294901760
        %2014 = vmatpush.msra.mxu0 %v2013
        %v2015 = vand.u32 %v1731, 4294901760
        %2016 = vmatpush.msra.mxu0 %v2015
        %v2017 = vand.u32 %v1730, 4294901760
        %2018 = vmatpush.msra.mxu0 %v2017
        %v2019 = vand.u32 %v1729, 4294901760
        %2020 = vmatpush.msra.mxu0 %v2019
        %v2021 = vand.u32 %v1725, 4294901760
        %v2022 = vsub.f32 %v1725, %v2021
        %v2023 = vand.u32 %v2022, 4294901760
        %2024 = vmatmul.f32.gmra.mxu0 %v2023
        %v2025 = vpop.f32.mrf.mxu0
        %v2026 = vadd.f32 %v1987, %v2025
        %2027 = vdwg.mxu0
        %v2028 = vand.u32 %v1744, 4294901760
        %v2029 = vsub.f32 %v1744, %v2028
        %v2030 = vand.u32 %v2029, 4294901760
        %2031 = vmatpush.msra.mxu0 %v2030
        %v2032 = vand.u32 %v1743, 4294901760
        %v2033 = vsub.f32 %v1743, %v2032
        %v2034 = vand.u32 %v2033, 4294901760
        %2035 = vmatpush.msra.mxu0 %v2034
        %v2036 = vand.u32 %v1742, 4294901760
        %v2037 = vsub.f32 %v1742, %v2036
        %v2038 = vand.u32 %v2037, 4294901760
        %2039 = vmatpush.msra.mxu0 %v2038
        %v2040 = vand.u32 %v1741, 4294901760
        %v2041 = vsub.f32 %v1741, %v2040
        %v2042 = vand.u32 %v2041, 4294901760
        %2043 = vmatpush.msra.mxu0 %v2042
        %v2044 = vand.u32 %v1740, 4294901760
        %v2045 = vsub.f32 %v1740, %v2044
        %v2046 = vand.u32 %v2045, 4294901760
        %2047 = vmatpush.msra.mxu0 %v2046
        %v2048 = vand.u32 %v1739, 4294901760
        %v2049 = vsub.f32 %v1739, %v2048
        %v2050 = vand.u32 %v2049, 4294901760
        %2051 = vmatpush.msra.mxu0 %v2050
        %v2052 = vand.u32 %v1738, 4294901760
        %v2053 = vsub.f32 %v1738, %v2052
        %v2054 = vand.u32 %v2053, 4294901760
        %2055 = vmatpush.msra.mxu0 %v2054
        %v2056 = vand.u32 %v1737, 4294901760
        %v2057 = vsub.f32 %v1737, %v2056
        %v2058 = vand.u32 %v2057, 4294901760
        %2059 = vmatpush.msra.mxu0 %v2058
        %v2060 = vand.u32 %v1736, 4294901760
        %v2061 = vsub.f32 %v1736, %v2060
        %v2062 = vand.u32 %v2061, 4294901760
        %2063 = vmatpush.msra.mxu0 %v2062
        %v2064 = vand.u32 %v1735, 4294901760
        %v2065 = vsub.f32 %v1735, %v2064
        %v2066 = vand.u32 %v2065, 4294901760
        %2067 = vmatpush.msra.mxu0 %v2066
        %v2068 = vand.u32 %v1734, 4294901760
        %v2069 = vsub.f32 %v1734, %v2068
        %v2070 = vand.u32 %v2069, 4294901760
        %2071 = vmatpush.msra.mxu0 %v2070
        %v2072 = vand.u32 %v1733, 4294901760
        %v2073 = vsub.f32 %v1733, %v2072
        %v2074 = vand.u32 %v2073, 4294901760
        %2075 = vmatpush.msra.mxu0 %v2074
        %v2076 = vand.u32 %v1732, 4294901760
        %v2077 = vsub.f32 %v1732, %v2076
        %v2078 = vand.u32 %v2077, 4294901760
        %2079 = vmatpush.msra.mxu0 %v2078
        %v2080 = vand.u32 %v1731, 4294901760
        %v2081 = vsub.f32 %v1731, %v2080
        %v2082 = vand.u32 %v2081, 4294901760
        %2083 = vmatpush.msra.mxu0 %v2082
        %v2084 = vand.u32 %v1730, 4294901760
        %v2085 = vsub.f32 %v1730, %v2084
        %v2086 = vand.u32 %v2085, 4294901760
        %2087 = vmatpush.msra.mxu0 %v2086
        %v2088 = vand.u32 %v1729, 4294901760
        %v2089 = vsub.f32 %v1729, %v2088
        %v2090 = vand.u32 %v2089, 4294901760
        %2091 = vmatpush.msra.mxu0 %v2090
        %v2092 = vand.u32 %v1725, 4294901760
        %2093 = vmatmul.f32.gmra.mxu0 %v2092
        %v2094 = vpop.f32.mrf.mxu0
        %v2095 = vadd.f32 %v2026, %v2094
        %2096 = vdwg.mxu0
        %v2097 = vand.u32 %v1744, 4294901760
        %2098 = vmatpush.msra.mxu0 %v2097
        %v2099 = vand.u32 %v1743, 4294901760
        %2100 = vmatpush.msra.mxu0 %v2099
        %v2101 = vand.u32 %v1742, 4294901760
        %2102 = vmatpush.msra.mxu0 %v2101
        %v2103 = vand.u32 %v1741, 4294901760
        %2104 = vmatpush.msra.mxu0 %v2103
        %v2105 = vand.u32 %v1740, 4294901760
        %2106 = vmatpush.msra.mxu0 %v2105
        %v2107 = vand.u32 %v1739, 4294901760
        %2108 = vmatpush.msra.mxu0 %v2107
        %v2109 = vand.u32 %v1738, 4294901760
        %2110 = vmatpush.msra.mxu0 %v2109
        %v2111 = vand.u32 %v1737, 4294901760
        %2112 = vmatpush.msra.mxu0 %v2111
        %v2113 = vand.u32 %v1736, 4294901760
        %2114 = vmatpush.msra.mxu0 %v2113
        %v2115 = vand.u32 %v1735, 4294901760
        %2116 = vmatpush.msra.mxu0 %v2115
        %v2117 = vand.u32 %v1734, 4294901760
        %2118 = vmatpush.msra.mxu0 %v2117
        %v2119 = vand.u32 %v1733, 4294901760
        %2120 = vmatpush.msra.mxu0 %v2119
        %v2121 = vand.u32 %v1732, 4294901760
        %2122 = vmatpush.msra.mxu0 %v2121
        %v2123 = vand.u32 %v1731, 4294901760
        %2124 = vmatpush.msra.mxu0 %v2123
        %v2125 = vand.u32 %v1730, 4294901760
        %2126 = vmatpush.msra.mxu0 %v2125
        %v2127 = vand.u32 %v1729, 4294901760
        %2128 = vmatpush.msra.mxu0 %v2127
        %v2129 = vand.u32 %v1725, 4294901760
        %2130 = vmatmul.f32.gmra.mxu0 %v2129
        %v2131 = vpop.f32.mrf.mxu0
        %v2132 = vadd.f32 %v2095, %v2131
        %2133 = vdwg.mxu0
        %v2134 = vand.u32 %v1760, 4294901760
        %2135 = vmatpush.msra.mxu0 %v2134
        %v2136 = vand.u32 %v1759, 4294901760
        %2137 = vmatpush.msra.mxu0 %v2136
        %v2138 = vand.u32 %v1758, 4294901760
        %2139 = vmatpush.msra.mxu0 %v2138
        %v2140 = vand.u32 %v1757, 4294901760
        %2141 = vmatpush.msra.mxu0 %v2140
        %v2142 = vand.u32 %v1756, 4294901760
        %2143 = vmatpush.msra.mxu0 %v2142
        %v2144 = vand.u32 %v1755, 4294901760
        %2145 = vmatpush.msra.mxu0 %v2144
        %v2146 = vand.u32 %v1754, 4294901760
        %2147 = vmatpush.msra.mxu0 %v2146
        %v2148 = vand.u32 %v1753, 4294901760
        %2149 = vmatpush.msra.mxu0 %v2148
        %v2150 = vand.u32 %v1752, 4294901760
        %2151 = vmatpush.msra.mxu0 %v2150
        %v2152 = vand.u32 %v1751, 4294901760
        %2153 = vmatpush.msra.mxu0 %v2152
        %v2154 = vand.u32 %v1750, 4294901760
        %2155 = vmatpush.msra.mxu0 %v2154
        %v2156 = vand.u32 %v1749, 4294901760
        %2157 = vmatpush.msra.mxu0 %v2156
        %v2158 = vand.u32 %v1748, 4294901760
        %2159 = vmatpush.msra.mxu0 %v2158
        %v2160 = vand.u32 %v1747, 4294901760
        %2161 = vmatpush.msra.mxu0 %v2160
        %v2162 = vand.u32 %v1746, 4294901760
        %2163 = vmatpush.msra.mxu0 %v2162
        %v2164 = vand.u32 %v1745, 4294901760
        %2165 = vmatpush.msra.mxu0 %v2164
        %v2166 = vand.u32 %v1726, 4294901760
        %v2167 = vsub.f32 %v1726, %v2166
        %v2168 = vand.u32 %v2167, 4294901760
        %v2169 = vsub.f32 %v2167, %v2168
        %v2170 = vand.u32 %v2169, 4294901760
        %2171 = vmatmul.f32.gmra.mxu0 %v2170
        %v2172 = vpop.f32.mrf.mxu0
        %v2173 = vadd.f32 %v2132, %v2172
        %2174 = vdwg.mxu0
        %v2175 = vand.u32 %v1760, 4294901760
        %v2176 = vsub.f32 %v1760, %v2175
        %v2177 = vand.u32 %v2176, 4294901760
        %v2178 = vsub.f32 %v2176, %v2177
        %v2179 = vand.u32 %v2178, 4294901760
        %2180 = vmatpush.msra.mxu0 %v2179
        %v2181 = vand.u32 %v1759, 4294901760
        %v2182 = vsub.f32 %v1759, %v2181
        %v2183 = vand.u32 %v2182, 4294901760
        %v2184 = vsub.f32 %v2182, %v2183
        %v2185 = vand.u32 %v2184, 4294901760
        %2186 = vmatpush.msra.mxu0 %v2185
        %v2187 = vand.u32 %v1758, 4294901760
        %v2188 = vsub.f32 %v1758, %v2187
        %v2189 = vand.u32 %v2188, 4294901760
        %v2190 = vsub.f32 %v2188, %v2189
        %v2191 = vand.u32 %v2190, 4294901760
        %2192 = vmatpush.msra.mxu0 %v2191
        %v2193 = vand.u32 %v1757, 4294901760
        %v2194 = vsub.f32 %v1757, %v2193
        %v2195 = vand.u32 %v2194, 4294901760
        %v2196 = vsub.f32 %v2194, %v2195
        %v2197 = vand.u32 %v2196, 4294901760
        %2198 = vmatpush.msra.mxu0 %v2197
        %v2199 = vand.u32 %v1756, 4294901760
        %v2200 = vsub.f32 %v1756, %v2199
        %v2201 = vand.u32 %v2200, 4294901760
        %v2202 = vsub.f32 %v2200, %v2201
        %v2203 = vand.u32 %v2202, 4294901760
        %2204 = vmatpush.msra.mxu0 %v2203
        %v2205 = vand.u32 %v1755, 4294901760
        %v2206 = vsub.f32 %v1755, %v2205
        %v2207 = vand.u32 %v2206, 4294901760
        %v2208 = vsub.f32 %v2206, %v2207
        %v2209 = vand.u32 %v2208, 4294901760
        %2210 = vmatpush.msra.mxu0 %v2209
        %v2211 = vand.u32 %v1754, 4294901760
        %v2212 = vsub.f32 %v1754, %v2211
        %v2213 = vand.u32 %v2212, 4294901760
        %v2214 = vsub.f32 %v2212, %v2213
        %v2215 = vand.u32 %v2214, 4294901760
        %2216 = vmatpush.msra.mxu0 %v2215
        %v2217 = vand.u32 %v1753, 4294901760
        %v2218 = vsub.f32 %v1753, %v2217
        %v2219 = vand.u32 %v2218, 4294901760
        %v2220 = vsub.f32 %v2218, %v2219
        %v2221 = vand.u32 %v2220, 4294901760
        %2222 = vmatpush.msra.mxu0 %v2221
        %v2223 = vand.u32 %v1752, 4294901760
        %v2224 = vsub.f32 %v1752, %v2223
        %v2225 = vand.u32 %v2224, 4294901760
        %v2226 = vsub.f32 %v2224, %v2225
        %v2227 = vand.u32 %v2226, 4294901760
        %2228 = vmatpush.msra.mxu0 %v2227
        %v2229 = vand.u32 %v1751, 4294901760
        %v2230 = vsub.f32 %v1751, %v2229
        %v2231 = vand.u32 %v2230, 4294901760
        %v2232 = vsub.f32 %v2230, %v2231
        %v2233 = vand.u32 %v2232, 4294901760
        %2234 = vmatpush.msra.mxu0 %v2233
        %v2235 = vand.u32 %v1750, 4294901760
        %v2236 = vsub.f32 %v1750, %v2235
        %v2237 = vand.u32 %v2236, 4294901760
        %v2238 = vsub.f32 %v2236, %v2237
        %v2239 = vand.u32 %v2238, 4294901760
        %2240 = vmatpush.msra.mxu0 %v2239
        %v2241 = vand.u32 %v1749, 4294901760
        %v2242 = vsub.f32 %v1749, %v2241
        %v2243 = vand.u32 %v2242, 4294901760
        %v2244 = vsub.f32 %v2242, %v2243
        %v2245 = vand.u32 %v2244, 4294901760
        %2246 = vmatpush.msra.mxu0 %v2245
        %v2247 = vand.u32 %v1748, 4294901760
        %v2248 = vsub.f32 %v1748, %v2247
        %v2249 = vand.u32 %v2248, 4294901760
        %v2250 = vsub.f32 %v2248, %v2249
        %v2251 = vand.u32 %v2250, 4294901760
        %2252 = vmatpush.msra.mxu0 %v2251
        %v2253 = vand.u32 %v1747, 4294901760
        %v2254 = vsub.f32 %v1747, %v2253
        %v2255 = vand.u32 %v2254, 4294901760
        %v2256 = vsub.f32 %v2254, %v2255
        %v2257 = vand.u32 %v2256, 4294901760
        %2258 = vmatpush.msra.mxu0 %v2257
        %v2259 = vand.u32 %v1746, 4294901760
        %v2260 = vsub.f32 %v1746, %v2259
        %v2261 = vand.u32 %v2260, 4294901760
        %v2262 = vsub.f32 %v2260, %v2261
        %v2263 = vand.u32 %v2262, 4294901760
        %2264 = vmatpush.msra.mxu0 %v2263
        %v2265 = vand.u32 %v1745, 4294901760
        %v2266 = vsub.f32 %v1745, %v2265
        %v2267 = vand.u32 %v2266, 4294901760
        %v2268 = vsub.f32 %v2266, %v2267
        %v2269 = vand.u32 %v2268, 4294901760
        %2270 = vmatpush.msra.mxu0 %v2269
        %v2271 = vand.u32 %v1726, 4294901760
        %2272 = vmatmul.f32.gmra.mxu0 %v2271
        %v2273 = vpop.f32.mrf.mxu0
        %v2274 = vadd.f32 %v2173, %v2273
        %2275 = vdwg.mxu0
        %v2276 = vand.u32 %v1760, 4294901760
        %v2277 = vsub.f32 %v1760, %v2276
        %2278 = vmatpush.msra.mxu0 %v2277
        %v2279 = vand.u32 %v1759, 4294901760
        %v2280 = vsub.f32 %v1759, %v2279
        %2281 = vmatpush.msra.mxu0 %v2280
        %v2282 = vand.u32 %v1758, 4294901760
        %v2283 = vsub.f32 %v1758, %v2282
        %2284 = vmatpush.msra.mxu0 %v2283
        %v2285 = vand.u32 %v1757, 4294901760
        %v2286 = vsub.f32 %v1757, %v2285
        %2287 = vmatpush.msra.mxu0 %v2286
        %v2288 = vand.u32 %v1756, 4294901760
        %v2289 = vsub.f32 %v1756, %v2288
        %2290 = vmatpush.msra.mxu0 %v2289
        %v2291 = vand.u32 %v1755, 4294901760
        %v2292 = vsub.f32 %v1755, %v2291
        %2293 = vmatpush.msra.mxu0 %v2292
        %v2294 = vand.u32 %v1754, 4294901760
        %v2295 = vsub.f32 %v1754, %v2294
        %2296 = vmatpush.msra.mxu0 %v2295
        %v2297 = vand.u32 %v1753, 4294901760
        %v2298 = vsub.f32 %v1753, %v2297
        %2299 = vmatpush.msra.mxu0 %v2298
        %v2300 = vand.u32 %v1752, 4294901760
        %v2301 = vsub.f32 %v1752, %v2300
        %2302 = vmatpush.msra.mxu0 %v2301
        %v2303 = vand.u32 %v1751, 4294901760
        %v2304 = vsub.f32 %v1751, %v2303
        %2305 = vmatpush.msra.mxu0 %v2304
        %v2306 = vand.u32 %v1750, 4294901760
        %v2307 = vsub.f32 %v1750, %v2306
        %2308 = vmatpush.msra.mxu0 %v2307
        %v2309 = vand.u32 %v1749, 4294901760
        %v2310 = vsub.f32 %v1749, %v2309
        %2311 = vmatpush.msra.mxu0 %v2310
        %v2312 = vand.u32 %v1748, 4294901760
        %v2313 = vsub.f32 %v1748, %v2312
        %2314 = vmatpush.msra.mxu0 %v2313
        %v2315 = vand.u32 %v1747, 4294901760
        %v2316 = vsub.f32 %v1747, %v2315
        %2317 = vmatpush.msra.mxu0 %v2316
        %v2318 = vand.u32 %v1746, 4294901760
        %v2319 = vsub.f32 %v1746, %v2318
        %2320 = vmatpush.msra.mxu0 %v2319
        %v2321 = vand.u32 %v1745, 4294901760
        %v2322 = vsub.f32 %v1745, %v2321
        %2323 = vmatpush.msra.mxu0 %v2322
        %v2324 = vand.u32 %v1726, 4294901760
        %v2325 = vsub.f32 %v1726, %v2324
        %2326 = vmatmul.f32.gmra.mxu0 %v2325
        %v2327 = vpop.f32.mrf.mxu0
        %v2328 = vadd.f32 %v2274, %v2327
        %2329 = vdwg.mxu0
        %v2330 = vand.u32 %v1760, 4294901760
        %2331 = vmatpush.msra.mxu0 %v2330
        %v2332 = vand.u32 %v1759, 4294901760
        %2333 = vmatpush.msra.mxu0 %v2332
        %v2334 = vand.u32 %v1758, 4294901760
        %2335 = vmatpush.msra.mxu0 %v2334
        %v2336 = vand.u32 %v1757, 4294901760
        %2337 = vmatpush.msra.mxu0 %v2336
        %v2338 = vand.u32 %v1756, 4294901760
        %2339 = vmatpush.msra.mxu0 %v2338
        %v2340 = vand.u32 %v1755, 4294901760
        %2341 = vmatpush.msra.mxu0 %v2340
        %v2342 = vand.u32 %v1754, 4294901760
        %2343 = vmatpush.msra.mxu0 %v2342
        %v2344 = vand.u32 %v1753, 4294901760
        %2345 = vmatpush.msra.mxu0 %v2344
        %v2346 = vand.u32 %v1752, 4294901760
        %2347 = vmatpush.msra.mxu0 %v2346
        %v2348 = vand.u32 %v1751, 4294901760
        %2349 = vmatpush.msra.mxu0 %v2348
        %v2350 = vand.u32 %v1750, 4294901760
        %2351 = vmatpush.msra.mxu0 %v2350
        %v2352 = vand.u32 %v1749, 4294901760
        %2353 = vmatpush.msra.mxu0 %v2352
        %v2354 = vand.u32 %v1748, 4294901760
        %2355 = vmatpush.msra.mxu0 %v2354
        %v2356 = vand.u32 %v1747, 4294901760
        %2357 = vmatpush.msra.mxu0 %v2356
        %v2358 = vand.u32 %v1746, 4294901760
        %2359 = vmatpush.msra.mxu0 %v2358
        %v2360 = vand.u32 %v1745, 4294901760
        %2361 = vmatpush.msra.mxu0 %v2360
        %v2362 = vand.u32 %v1726, 4294901760
        %v2363 = vsub.f32 %v1726, %v2362
        %v2364 = vand.u32 %v2363, 4294901760
        %2365 = vmatmul.f32.gmra.mxu0 %v2364
        %v2366 = vpop.f32.mrf.mxu0
        %v2367 = vadd.f32 %v2328, %v2366
        %2368 = vdwg.mxu0
        %v2369 = vand.u32 %v1760, 4294901760
        %v2370 = vsub.f32 %v1760, %v2369
        %v2371 = vand.u32 %v2370, 4294901760
        %2372 = vmatpush.msra.mxu0 %v2371
        %v2373 = vand.u32 %v1759, 4294901760
        %v2374 = vsub.f32 %v1759, %v2373
        %v2375 = vand.u32 %v2374, 4294901760
        %2376 = vmatpush.msra.mxu0 %v2375
        %v2377 = vand.u32 %v1758, 4294901760
        %v2378 = vsub.f32 %v1758, %v2377
        %v2379 = vand.u32 %v2378, 4294901760
        %2380 = vmatpush.msra.mxu0 %v2379
        %v2381 = vand.u32 %v1757, 4294901760
        %v2382 = vsub.f32 %v1757, %v2381
        %v2383 = vand.u32 %v2382, 4294901760
        %2384 = vmatpush.msra.mxu0 %v2383
        %v2385 = vand.u32 %v1756, 4294901760
        %v2386 = vsub.f32 %v1756, %v2385
        %v2387 = vand.u32 %v2386, 4294901760
        %2388 = vmatpush.msra.mxu0 %v2387
        %v2389 = vand.u32 %v1755, 4294901760
        %v2390 = vsub.f32 %v1755, %v2389
        %v2391 = vand.u32 %v2390, 4294901760
        %2392 = vmatpush.msra.mxu0 %v2391
        %v2393 = vand.u32 %v1754, 4294901760
        %v2394 = vsub.f32 %v1754, %v2393
        %v2395 = vand.u32 %v2394, 4294901760
        %2396 = vmatpush.msra.mxu0 %v2395
        %v2397 = vand.u32 %v1753, 4294901760
        %v2398 = vsub.f32 %v1753, %v2397
        %v2399 = vand.u32 %v2398, 4294901760
        %2400 = vmatpush.msra.mxu0 %v2399
        %v2401 = vand.u32 %v1752, 4294901760
        %v2402 = vsub.f32 %v1752, %v2401
        %v2403 = vand.u32 %v2402, 4294901760
        %2404 = vmatpush.msra.mxu0 %v2403
        %v2405 = vand.u32 %v1751, 4294901760
        %v2406 = vsub.f32 %v1751, %v2405
        %v2407 = vand.u32 %v2406, 4294901760
        %2408 = vmatpush.msra.mxu0 %v2407
        %v2409 = vand.u32 %v1750, 4294901760
        %v2410 = vsub.f32 %v1750, %v2409
        %v2411 = vand.u32 %v2410, 4294901760
        %2412 = vmatpush.msra.mxu0 %v2411
        %v2413 = vand.u32 %v1749, 4294901760
        %v2414 = vsub.f32 %v1749, %v2413
        %v2415 = vand.u32 %v2414, 4294901760
        %2416 = vmatpush.msra.mxu0 %v2415
        %v2417 = vand.u32 %v1748, 4294901760
        %v2418 = vsub.f32 %v1748, %v2417
        %v2419 = vand.u32 %v2418, 4294901760
        %2420 = vmatpush.msra.mxu0 %v2419
        %v2421 = vand.u32 %v1747, 4294901760
        %v2422 = vsub.f32 %v1747, %v2421
        %v2423 = vand.u32 %v2422, 4294901760
        %2424 = vmatpush.msra.mxu0 %v2423
        %v2425 = vand.u32 %v1746, 4294901760
        %v2426 = vsub.f32 %v1746, %v2425
        %v2427 = vand.u32 %v2426, 4294901760
        %2428 = vmatpush.msra.mxu0 %v2427
        %v2429 = vand.u32 %v1745, 4294901760
        %v2430 = vsub.f32 %v1745, %v2429
        %v2431 = vand.u32 %v2430, 4294901760
        %2432 = vmatpush.msra.mxu0 %v2431
        %v2433 = vand.u32 %v1726, 4294901760
        %2434 = vmatmul.f32.gmra.mxu0 %v2433
        %v2435 = vpop.f32.mrf.mxu0
        %v2436 = vadd.f32 %v2367, %v2435
        %2437 = vdwg.mxu0
        %v2438 = vand.u32 %v1760, 4294901760
        %2439 = vmatpush.msra.mxu0 %v2438
        %v2440 = vand.u32 %v1759, 4294901760
        %2441 = vmatpush.msra.mxu0 %v2440
        %v2442 = vand.u32 %v1758, 4294901760
        %2443 = vmatpush.msra.mxu0 %v2442
        %v2444 = vand.u32 %v1757, 4294901760
        %2445 = vmatpush.msra.mxu0 %v2444
        %v2446 = vand.u32 %v1756, 4294901760
        %2447 = vmatpush.msra.mxu0 %v2446
        %v2448 = vand.u32 %v1755, 4294901760
        %2449 = vmatpush.msra.mxu0 %v2448
        %v2450 = vand.u32 %v1754, 4294901760
        %2451 = vmatpush.msra.mxu0 %v2450
        %v2452 = vand.u32 %v1753, 4294901760
        %2453 = vmatpush.msra.mxu0 %v2452
        %v2454 = vand.u32 %v1752, 4294901760
        %2455 = vmatpush.msra.mxu0 %v2454
        %v2456 = vand.u32 %v1751, 4294901760
        %2457 = vmatpush.msra.mxu0 %v2456
        %v2458 = vand.u32 %v1750, 4294901760
        %2459 = vmatpush.msra.mxu0 %v2458
        %v2460 = vand.u32 %v1749, 4294901760
        %2461 = vmatpush.msra.mxu0 %v2460
        %v2462 = vand.u32 %v1748, 4294901760
        %2463 = vmatpush.msra.mxu0 %v2462
        %v2464 = vand.u32 %v1747, 4294901760
        %2465 = vmatpush.msra.mxu0 %v2464
        %v2466 = vand.u32 %v1746, 4294901760
        %2467 = vmatpush.msra.mxu0 %v2466
        %v2468 = vand.u32 %v1745, 4294901760
        %2469 = vmatpush.msra.mxu0 %v2468
        %v2470 = vand.u32 %v1726, 4294901760
        %2471 = vmatmul.f32.gmra.mxu0 %v2470
        %v2472 = vpop.f32.mrf.mxu0
        %v2473 = vadd.f32 %v2436, %v2472
        %2474 = vdwg.mxu0
        %v2475 = vand.u32 %v1776, 4294901760
        %2476 = vmatpush.msra.mxu0 %v2475
        %v2477 = vand.u32 %v1775, 4294901760
        %2478 = vmatpush.msra.mxu0 %v2477
        %v2479 = vand.u32 %v1774, 4294901760
        %2480 = vmatpush.msra.mxu0 %v2479
        %v2481 = vand.u32 %v1773, 4294901760
        %2482 = vmatpush.msra.mxu0 %v2481
        %v2483 = vand.u32 %v1772, 4294901760
        %2484 = vmatpush.msra.mxu0 %v2483
        %v2485 = vand.u32 %v1771, 4294901760
        %2486 = vmatpush.msra.mxu0 %v2485
        %v2487 = vand.u32 %v1770, 4294901760
        %2488 = vmatpush.msra.mxu0 %v2487
        %v2489 = vand.u32 %v1769, 4294901760
        %2490 = vmatpush.msra.mxu0 %v2489
        %v2491 = vand.u32 %v1768, 4294901760
        %2492 = vmatpush.msra.mxu0 %v2491
        %v2493 = vand.u32 %v1767, 4294901760
        %2494 = vmatpush.msra.mxu0 %v2493
        %v2495 = vand.u32 %v1766, 4294901760
        %2496 = vmatpush.msra.mxu0 %v2495
        %v2497 = vand.u32 %v1765, 4294901760
        %2498 = vmatpush.msra.mxu0 %v2497
        %v2499 = vand.u32 %v1764, 4294901760
        %2500 = vmatpush.msra.mxu0 %v2499
        %v2501 = vand.u32 %v1763, 4294901760
        %2502 = vmatpush.msra.mxu0 %v2501
        %v2503 = vand.u32 %v1762, 4294901760
        %2504 = vmatpush.msra.mxu0 %v2503
        %v2505 = vand.u32 %v1761, 4294901760
        %2506 = vmatpush.msra.mxu0 %v2505
        %v2507 = vand.u32 %v1727, 4294901760
        %v2508 = vsub.f32 %v1727, %v2507
        %v2509 = vand.u32 %v2508, 4294901760
        %v2510 = vsub.f32 %v2508, %v2509
        %v2511 = vand.u32 %v2510, 4294901760
        %2512 = vmatmul.f32.gmra.mxu0 %v2511
        %v2513 = vpop.f32.mrf.mxu0
        %v2514 = vadd.f32 %v2473, %v2513
        %2515 = vdwg.mxu0
        %v2516 = vand.u32 %v1776, 4294901760
        %v2517 = vsub.f32 %v1776, %v2516
        %v2518 = vand.u32 %v2517, 4294901760
        %v2519 = vsub.f32 %v2517, %v2518
        %v2520 = vand.u32 %v2519, 4294901760
        %2521 = vmatpush.msra.mxu0 %v2520
        %v2522 = vand.u32 %v1775, 4294901760
        %v2523 = vsub.f32 %v1775, %v2522
        %v2524 = vand.u32 %v2523, 4294901760
        %v2525 = vsub.f32 %v2523, %v2524
        %v2526 = vand.u32 %v2525, 4294901760
        %2527 = vmatpush.msra.mxu0 %v2526
        %v2528 = vand.u32 %v1774, 4294901760
        %v2529 = vsub.f32 %v1774, %v2528
        %v2530 = vand.u32 %v2529, 4294901760
        %v2531 = vsub.f32 %v2529, %v2530
        %v2532 = vand.u32 %v2531, 4294901760
        %2533 = vmatpush.msra.mxu0 %v2532
        %v2534 = vand.u32 %v1773, 4294901760
        %v2535 = vsub.f32 %v1773, %v2534
        %v2536 = vand.u32 %v2535, 4294901760
        %v2537 = vsub.f32 %v2535, %v2536
        %v2538 = vand.u32 %v2537, 4294901760
        %2539 = vmatpush.msra.mxu0 %v2538
        %v2540 = vand.u32 %v1772, 4294901760
        %v2541 = vsub.f32 %v1772, %v2540
        %v2542 = vand.u32 %v2541, 4294901760
        %v2543 = vsub.f32 %v2541, %v2542
        %v2544 = vand.u32 %v2543, 4294901760
        %2545 = vmatpush.msra.mxu0 %v2544
        %v2546 = vand.u32 %v1771, 4294901760
        %v2547 = vsub.f32 %v1771, %v2546
        %v2548 = vand.u32 %v2547, 4294901760
        %v2549 = vsub.f32 %v2547, %v2548
        %v2550 = vand.u32 %v2549, 4294901760
        %2551 = vmatpush.msra.mxu0 %v2550
        %v2552 = vand.u32 %v1770, 4294901760
        %v2553 = vsub.f32 %v1770, %v2552
        %v2554 = vand.u32 %v2553, 4294901760
        %v2555 = vsub.f32 %v2553, %v2554
        %v2556 = vand.u32 %v2555, 4294901760
        %2557 = vmatpush.msra.mxu0 %v2556
        %v2558 = vand.u32 %v1769, 4294901760
        %v2559 = vsub.f32 %v1769, %v2558
        %v2560 = vand.u32 %v2559, 4294901760
        %v2561 = vsub.f32 %v2559, %v2560
        %v2562 = vand.u32 %v2561, 4294901760
        %2563 = vmatpush.msra.mxu0 %v2562
        %v2564 = vand.u32 %v1768, 4294901760
        %v2565 = vsub.f32 %v1768, %v2564
        %v2566 = vand.u32 %v2565, 4294901760
        %v2567 = vsub.f32 %v2565, %v2566
        %v2568 = vand.u32 %v2567, 4294901760
        %2569 = vmatpush.msra.mxu0 %v2568
        %v2570 = vand.u32 %v1767, 4294901760
        %v2571 = vsub.f32 %v1767, %v2570
        %v2572 = vand.u32 %v2571, 4294901760
        %v2573 = vsub.f32 %v2571, %v2572
        %v2574 = vand.u32 %v2573, 4294901760
        %2575 = vmatpush.msra.mxu0 %v2574
        %v2576 = vand.u32 %v1766, 4294901760
        %v2577 = vsub.f32 %v1766, %v2576
        %v2578 = vand.u32 %v2577, 4294901760
        %v2579 = vsub.f32 %v2577, %v2578
        %v2580 = vand.u32 %v2579, 4294901760
        %2581 = vmatpush.msra.mxu0 %v2580
        %v2582 = vand.u32 %v1765, 4294901760
        %v2583 = vsub.f32 %v1765, %v2582
        %v2584 = vand.u32 %v2583, 4294901760
        %v2585 = vsub.f32 %v2583, %v2584
        %v2586 = vand.u32 %v2585, 4294901760
        %2587 = vmatpush.msra.mxu0 %v2586
        %v2588 = vand.u32 %v1764, 4294901760
        %v2589 = vsub.f32 %v1764, %v2588
        %v2590 = vand.u32 %v2589, 4294901760
        %v2591 = vsub.f32 %v2589, %v2590
        %v2592 = vand.u32 %v2591, 4294901760
        %2593 = vmatpush.msra.mxu0 %v2592
        %v2594 = vand.u32 %v1763, 4294901760
        %v2595 = vsub.f32 %v1763, %v2594
        %v2596 = vand.u32 %v2595, 4294901760
        %v2597 = vsub.f32 %v2595, %v2596
        %v2598 = vand.u32 %v2597, 4294901760
        %2599 = vmatpush.msra.mxu0 %v2598
        %v2600 = vand.u32 %v1762, 4294901760
        %v2601 = vsub.f32 %v1762, %v2600
        %v2602 = vand.u32 %v2601, 4294901760
        %v2603 = vsub.f32 %v2601, %v2602
        %v2604 = vand.u32 %v2603, 4294901760
        %2605 = vmatpush.msra.mxu0 %v2604
        %v2606 = vand.u32 %v1761, 4294901760
        %v2607 = vsub.f32 %v1761, %v2606
        %v2608 = vand.u32 %v2607, 4294901760
        %v2609 = vsub.f32 %v2607, %v2608
        %v2610 = vand.u32 %v2609, 4294901760
        %2611 = vmatpush.msra.mxu0 %v2610
        %v2612 = vand.u32 %v1727, 4294901760
        %2613 = vmatmul.f32.gmra.mxu0 %v2612
        %v2614 = vpop.f32.mrf.mxu0
        %v2615 = vadd.f32 %v2514, %v2614
        %2616 = vdwg.mxu0
        %v2617 = vand.u32 %v1776, 4294901760
        %v2618 = vsub.f32 %v1776, %v2617
        %2619 = vmatpush.msra.mxu0 %v2618
        %v2620 = vand.u32 %v1775, 4294901760
        %v2621 = vsub.f32 %v1775, %v2620
        %2622 = vmatpush.msra.mxu0 %v2621
        %v2623 = vand.u32 %v1774, 4294901760
        %v2624 = vsub.f32 %v1774, %v2623
        %2625 = vmatpush.msra.mxu0 %v2624
        %v2626 = vand.u32 %v1773, 4294901760
        %v2627 = vsub.f32 %v1773, %v2626
        %2628 = vmatpush.msra.mxu0 %v2627
        %v2629 = vand.u32 %v1772, 4294901760
        %v2630 = vsub.f32 %v1772, %v2629
        %2631 = vmatpush.msra.mxu0 %v2630
        %v2632 = vand.u32 %v1771, 4294901760
        %v2633 = vsub.f32 %v1771, %v2632
        %2634 = vmatpush.msra.mxu0 %v2633
        %v2635 = vand.u32 %v1770, 4294901760
        %v2636 = vsub.f32 %v1770, %v2635
        %2637 = vmatpush.msra.mxu0 %v2636
        %v2638 = vand.u32 %v1769, 4294901760
        %v2639 = vsub.f32 %v1769, %v2638
        %2640 = vmatpush.msra.mxu0 %v2639
        %v2641 = vand.u32 %v1768, 4294901760
        %v2642 = vsub.f32 %v1768, %v2641
        %2643 = vmatpush.msra.mxu0 %v2642
        %v2644 = vand.u32 %v1767, 4294901760
        %v2645 = vsub.f32 %v1767, %v2644
        %2646 = vmatpush.msra.mxu0 %v2645
        %v2647 = vand.u32 %v1766, 4294901760
        %v2648 = vsub.f32 %v1766, %v2647
        %2649 = vmatpush.msra.mxu0 %v2648
        %v2650 = vand.u32 %v1765, 4294901760
        %v2651 = vsub.f32 %v1765, %v2650
        %2652 = vmatpush.msra.mxu0 %v2651
        %v2653 = vand.u32 %v1764, 4294901760
        %v2654 = vsub.f32 %v1764, %v2653
        %2655 = vmatpush.msra.mxu0 %v2654
        %v2656 = vand.u32 %v1763, 4294901760
        %v2657 = vsub.f32 %v1763, %v2656
        %2658 = vmatpush.msra.mxu0 %v2657
        %v2659 = vand.u32 %v1762, 4294901760
        %v2660 = vsub.f32 %v1762, %v2659
        %2661 = vmatpush.msra.mxu0 %v2660
        %v2662 = vand.u32 %v1761, 4294901760
        %v2663 = vsub.f32 %v1761, %v2662
        %2664 = vmatpush.msra.mxu0 %v2663
        %v2665 = vand.u32 %v1727, 4294901760
        %v2666 = vsub.f32 %v1727, %v2665
        %2667 = vmatmul.f32.gmra.mxu0 %v2666
        %v2668 = vpop.f32.mrf.mxu0
        %v2669 = vadd.f32 %v2615, %v2668
        %2670 = vdwg.mxu0
        %v2671 = vand.u32 %v1776, 4294901760
        %2672 = vmatpush.msra.mxu0 %v2671
        %v2673 = vand.u32 %v1775, 4294901760
        %2674 = vmatpush.msra.mxu0 %v2673
        %v2675 = vand.u32 %v1774, 4294901760
        %2676 = vmatpush.msra.mxu0 %v2675
        %v2677 = vand.u32 %v1773, 4294901760
        %2678 = vmatpush.msra.mxu0 %v2677
        %v2679 = vand.u32 %v1772, 4294901760
        %2680 = vmatpush.msra.mxu0 %v2679
        %v2681 = vand.u32 %v1771, 4294901760
        %2682 = vmatpush.msra.mxu0 %v2681
        %v2683 = vand.u32 %v1770, 4294901760
        %2684 = vmatpush.msra.mxu0 %v2683
        %v2685 = vand.u32 %v1769, 4294901760
        %2686 = vmatpush.msra.mxu0 %v2685
        %v2687 = vand.u32 %v1768, 4294901760
        %2688 = vmatpush.msra.mxu0 %v2687
        %v2689 = vand.u32 %v1767, 4294901760
        %2690 = vmatpush.msra.mxu0 %v2689
        %v2691 = vand.u32 %v1766, 4294901760
        %2692 = vmatpush.msra.mxu0 %v2691
        %v2693 = vand.u32 %v1765, 4294901760
        %2694 = vmatpush.msra.mxu0 %v2693
        %v2695 = vand.u32 %v1764, 4294901760
        %2696 = vmatpush.msra.mxu0 %v2695
        %v2697 = vand.u32 %v1763, 4294901760
        %2698 = vmatpush.msra.mxu0 %v2697
        %v2699 = vand.u32 %v1762, 4294901760
        %2700 = vmatpush.msra.mxu0 %v2699
        %v2701 = vand.u32 %v1761, 4294901760
        %2702 = vmatpush.msra.mxu0 %v2701
        %v2703 = vand.u32 %v1727, 4294901760
        %v2704 = vsub.f32 %v1727, %v2703
        %v2705 = vand.u32 %v2704, 4294901760
        %2706 = vmatmul.f32.gmra.mxu0 %v2705
        %v2707 = vpop.f32.mrf.mxu0
        %v2708 = vadd.f32 %v2669, %v2707
        %2709 = vdwg.mxu0
        %v2710 = vand.u32 %v1776, 4294901760
        %v2711 = vsub.f32 %v1776, %v2710
        %v2712 = vand.u32 %v2711, 4294901760
        %2713 = vmatpush.msra.mxu0 %v2712
        %v2714 = vand.u32 %v1775, 4294901760
        %v2715 = vsub.f32 %v1775, %v2714
        %v2716 = vand.u32 %v2715, 4294901760
        %2717 = vmatpush.msra.mxu0 %v2716
        %v2718 = vand.u32 %v1774, 4294901760
        %v2719 = vsub.f32 %v1774, %v2718
        %v2720 = vand.u32 %v2719, 4294901760
        %2721 = vmatpush.msra.mxu0 %v2720
        %v2722 = vand.u32 %v1773, 4294901760
        %v2723 = vsub.f32 %v1773, %v2722
        %v2724 = vand.u32 %v2723, 4294901760
        %2725 = vmatpush.msra.mxu0 %v2724
        %v2726 = vand.u32 %v1772, 4294901760
        %v2727 = vsub.f32 %v1772, %v2726
        %v2728 = vand.u32 %v2727, 4294901760
        %2729 = vmatpush.msra.mxu0 %v2728
        %v2730 = vand.u32 %v1771, 4294901760
        %v2731 = vsub.f32 %v1771, %v2730
        %v2732 = vand.u32 %v2731, 4294901760
        %2733 = vmatpush.msra.mxu0 %v2732
        %v2734 = vand.u32 %v1770, 4294901760
        %v2735 = vsub.f32 %v1770, %v2734
        %v2736 = vand.u32 %v2735, 4294901760
        %2737 = vmatpush.msra.mxu0 %v2736
        %v2738 = vand.u32 %v1769, 4294901760
        %v2739 = vsub.f32 %v1769, %v2738
        %v2740 = vand.u32 %v2739, 4294901760
        %2741 = vmatpush.msra.mxu0 %v2740
        %v2742 = vand.u32 %v1768, 4294901760
        %v2743 = vsub.f32 %v1768, %v2742
        %v2744 = vand.u32 %v2743, 4294901760
        %2745 = vmatpush.msra.mxu0 %v2744
        %v2746 = vand.u32 %v1767, 4294901760
        %v2747 = vsub.f32 %v1767, %v2746
        %v2748 = vand.u32 %v2747, 4294901760
        %2749 = vmatpush.msra.mxu0 %v2748
        %v2750 = vand.u32 %v1766, 4294901760
        %v2751 = vsub.f32 %v1766, %v2750
        %v2752 = vand.u32 %v2751, 4294901760
        %2753 = vmatpush.msra.mxu0 %v2752
        %v2754 = vand.u32 %v1765, 4294901760
        %v2755 = vsub.f32 %v1765, %v2754
        %v2756 = vand.u32 %v2755, 4294901760
        %2757 = vmatpush.msra.mxu0 %v2756
        %v2758 = vand.u32 %v1764, 4294901760
        %v2759 = vsub.f32 %v1764, %v2758
        %v2760 = vand.u32 %v2759, 4294901760
        %2761 = vmatpush.msra.mxu0 %v2760
        %v2762 = vand.u32 %v1763, 4294901760
        %v2763 = vsub.f32 %v1763, %v2762
        %v2764 = vand.u32 %v2763, 4294901760
        %2765 = vmatpush.msra.mxu0 %v2764
        %v2766 = vand.u32 %v1762, 4294901760
        %v2767 = vsub.f32 %v1762, %v2766
        %v2768 = vand.u32 %v2767, 4294901760
        %2769 = vmatpush.msra.mxu0 %v2768
        %v2770 = vand.u32 %v1761, 4294901760
        %v2771 = vsub.f32 %v1761, %v2770
        %v2772 = vand.u32 %v2771, 4294901760
        %2773 = vmatpush.msra.mxu0 %v2772
        %v2774 = vand.u32 %v1727, 4294901760
        %2775 = vmatmul.f32.gmra.mxu0 %v2774
        %v2776 = vpop.f32.mrf.mxu0
        %v2777 = vadd.f32 %v2708, %v2776
        %2778 = vdwg.mxu0
        %v2779 = vand.u32 %v1776, 4294901760
        %2780 = vmatpush.msra.mxu0 %v2779
        %v2781 = vand.u32 %v1775, 4294901760
        %2782 = vmatpush.msra.mxu0 %v2781
        %v2783 = vand.u32 %v1774, 4294901760
        %2784 = vmatpush.msra.mxu0 %v2783
        %v2785 = vand.u32 %v1773, 4294901760
        %2786 = vmatpush.msra.mxu0 %v2785
        %v2787 = vand.u32 %v1772, 4294901760
        %2788 = vmatpush.msra.mxu0 %v2787
        %v2789 = vand.u32 %v1771, 4294901760
        %2790 = vmatpush.msra.mxu0 %v2789
        %v2791 = vand.u32 %v1770, 4294901760
        %2792 = vmatpush.msra.mxu0 %v2791
        %v2793 = vand.u32 %v1769, 4294901760
        %2794 = vmatpush.msra.mxu0 %v2793
        %v2795 = vand.u32 %v1768, 4294901760
        %2796 = vmatpush.msra.mxu0 %v2795
        %v2797 = vand.u32 %v1767, 4294901760
        %2798 = vmatpush.msra.mxu0 %v2797
        %v2799 = vand.u32 %v1766, 4294901760
        %2800 = vmatpush.msra.mxu0 %v2799
        %v2801 = vand.u32 %v1765, 4294901760
        %2802 = vmatpush.msra.mxu0 %v2801
        %v2803 = vand.u32 %v1764, 4294901760
        %2804 = vmatpush.msra.mxu0 %v2803
        %v2805 = vand.u32 %v1763, 4294901760
        %2806 = vmatpush.msra.mxu0 %v2805
        %v2807 = vand.u32 %v1762, 4294901760
        %2808 = vmatpush.msra.mxu0 %v2807
        %v2809 = vand.u32 %v1761, 4294901760
        %2810 = vmatpush.msra.mxu0 %v2809
        %v2811 = vand.u32 %v1727, 4294901760
        %2812 = vmatmul.f32.gmra.mxu0 %v2811
        %v2813 = vpop.f32.mrf.mxu0
        %v2814 = vadd.f32 %v2777, %v2813
        %2815 = vdwg.mxu0
        %v2816 = vand.u32 %v1792, 4294901760
        %2817 = vmatpush.msra.mxu0 %v2816
        %v2818 = vand.u32 %v1791, 4294901760
        %2819 = vmatpush.msra.mxu0 %v2818
        %v2820 = vand.u32 %v1790, 4294901760
        %2821 = vmatpush.msra.mxu0 %v2820
        %v2822 = vand.u32 %v1789, 4294901760
        %2823 = vmatpush.msra.mxu0 %v2822
        %v2824 = vand.u32 %v1788, 4294901760
        %2825 = vmatpush.msra.mxu0 %v2824
        %v2826 = vand.u32 %v1787, 4294901760
        %2827 = vmatpush.msra.mxu0 %v2826
        %v2828 = vand.u32 %v1786, 4294901760
        %2829 = vmatpush.msra.mxu0 %v2828
        %v2830 = vand.u32 %v1785, 4294901760
        %2831 = vmatpush.msra.mxu0 %v2830
        %v2832 = vand.u32 %v1784, 4294901760
        %2833 = vmatpush.msra.mxu0 %v2832
        %v2834 = vand.u32 %v1783, 4294901760
        %2835 = vmatpush.msra.mxu0 %v2834
        %v2836 = vand.u32 %v1782, 4294901760
        %2837 = vmatpush.msra.mxu0 %v2836
        %v2838 = vand.u32 %v1781, 4294901760
        %2839 = vmatpush.msra.mxu0 %v2838
        %v2840 = vand.u32 %v1780, 4294901760
        %2841 = vmatpush.msra.mxu0 %v2840
        %v2842 = vand.u32 %v1779, 4294901760
        %2843 = vmatpush.msra.mxu0 %v2842
        %v2844 = vand.u32 %v1778, 4294901760
        %2845 = vmatpush.msra.mxu0 %v2844
        %v2846 = vand.u32 %v1777, 4294901760
        %2847 = vmatpush.msra.mxu0 %v2846
        %v2848 = vand.u32 %v1728, 4294901760
        %v2849 = vsub.f32 %v1728, %v2848
        %v2850 = vand.u32 %v2849, 4294901760
        %v2851 = vsub.f32 %v2849, %v2850
        %v2852 = vand.u32 %v2851, 4294901760
        %2853 = vmatmul.f32.gmra.mxu0 %v2852
        %v2854 = vpop.f32.mrf.mxu0
        %v2855 = vadd.f32 %v2814, %v2854
        %2856 = vdwg.mxu0
        %v2857 = vand.u32 %v1792, 4294901760
        %v2858 = vsub.f32 %v1792, %v2857
        %v2859 = vand.u32 %v2858, 4294901760
        %v2860 = vsub.f32 %v2858, %v2859
        %v2861 = vand.u32 %v2860, 4294901760
        %2862 = vmatpush.msra.mxu0 %v2861
        %v2863 = vand.u32 %v1791, 4294901760
        %v2864 = vsub.f32 %v1791, %v2863
        %v2865 = vand.u32 %v2864, 4294901760
        %v2866 = vsub.f32 %v2864, %v2865
        %v2867 = vand.u32 %v2866, 4294901760
        %2868 = vmatpush.msra.mxu0 %v2867
        %v2869 = vand.u32 %v1790, 4294901760
        %v2870 = vsub.f32 %v1790, %v2869
        %v2871 = vand.u32 %v2870, 4294901760
        %v2872 = vsub.f32 %v2870, %v2871
        %v2873 = vand.u32 %v2872, 4294901760
        %2874 = vmatpush.msra.mxu0 %v2873
        %v2875 = vand.u32 %v1789, 4294901760
        %v2876 = vsub.f32 %v1789, %v2875
        %v2877 = vand.u32 %v2876, 4294901760
        %v2878 = vsub.f32 %v2876, %v2877
        %v2879 = vand.u32 %v2878, 4294901760
        %2880 = vmatpush.msra.mxu0 %v2879
        %v2881 = vand.u32 %v1788, 4294901760
        %v2882 = vsub.f32 %v1788, %v2881
        %v2883 = vand.u32 %v2882, 4294901760
        %v2884 = vsub.f32 %v2882, %v2883
        %v2885 = vand.u32 %v2884, 4294901760
        %2886 = vmatpush.msra.mxu0 %v2885
        %v2887 = vand.u32 %v1787, 4294901760
        %v2888 = vsub.f32 %v1787, %v2887
        %v2889 = vand.u32 %v2888, 4294901760
        %v2890 = vsub.f32 %v2888, %v2889
        %v2891 = vand.u32 %v2890, 4294901760
        %2892 = vmatpush.msra.mxu0 %v2891
        %v2893 = vand.u32 %v1786, 4294901760
        %v2894 = vsub.f32 %v1786, %v2893
        %v2895 = vand.u32 %v2894, 4294901760
        %v2896 = vsub.f32 %v2894, %v2895
        %v2897 = vand.u32 %v2896, 4294901760
        %2898 = vmatpush.msra.mxu0 %v2897
        %v2899 = vand.u32 %v1785, 4294901760
        %v2900 = vsub.f32 %v1785, %v2899
        %v2901 = vand.u32 %v2900, 4294901760
        %v2902 = vsub.f32 %v2900, %v2901
        %v2903 = vand.u32 %v2902, 4294901760
        %2904 = vmatpush.msra.mxu0 %v2903
        %v2905 = vand.u32 %v1784, 4294901760
        %v2906 = vsub.f32 %v1784, %v2905
        %v2907 = vand.u32 %v2906, 4294901760
        %v2908 = vsub.f32 %v2906, %v2907
        %v2909 = vand.u32 %v2908, 4294901760
        %2910 = vmatpush.msra.mxu0 %v2909
        %v2911 = vand.u32 %v1783, 4294901760
        %v2912 = vsub.f32 %v1783, %v2911
        %v2913 = vand.u32 %v2912, 4294901760
        %v2914 = vsub.f32 %v2912, %v2913
        %v2915 = vand.u32 %v2914, 4294901760
        %2916 = vmatpush.msra.mxu0 %v2915
        %v2917 = vand.u32 %v1782, 4294901760
        %v2918 = vsub.f32 %v1782, %v2917
        %v2919 = vand.u32 %v2918, 4294901760
        %v2920 = vsub.f32 %v2918, %v2919
        %v2921 = vand.u32 %v2920, 4294901760
        %2922 = vmatpush.msra.mxu0 %v2921
        %v2923 = vand.u32 %v1781, 4294901760
        %v2924 = vsub.f32 %v1781, %v2923
        %v2925 = vand.u32 %v2924, 4294901760
        %v2926 = vsub.f32 %v2924, %v2925
        %v2927 = vand.u32 %v2926, 4294901760
        %2928 = vmatpush.msra.mxu0 %v2927
        %v2929 = vand.u32 %v1780, 4294901760
        %v2930 = vsub.f32 %v1780, %v2929
        %v2931 = vand.u32 %v2930, 4294901760
        %v2932 = vsub.f32 %v2930, %v2931
        %v2933 = vand.u32 %v2932, 4294901760
        %2934 = vmatpush.msra.mxu0 %v2933
        %v2935 = vand.u32 %v1779, 4294901760
        %v2936 = vsub.f32 %v1779, %v2935
        %v2937 = vand.u32 %v2936, 4294901760
        %v2938 = vsub.f32 %v2936, %v2937
        %v2939 = vand.u32 %v2938, 4294901760
        %2940 = vmatpush.msra.mxu0 %v2939
        %v2941 = vand.u32 %v1778, 4294901760
        %v2942 = vsub.f32 %v1778, %v2941
        %v2943 = vand.u32 %v2942, 4294901760
        %v2944 = vsub.f32 %v2942, %v2943
        %v2945 = vand.u32 %v2944, 4294901760
        %2946 = vmatpush.msra.mxu0 %v2945
        %v2947 = vand.u32 %v1777, 4294901760
        %v2948 = vsub.f32 %v1777, %v2947
        %v2949 = vand.u32 %v2948, 4294901760
        %v2950 = vsub.f32 %v2948, %v2949
        %v2951 = vand.u32 %v2950, 4294901760
        %2952 = vmatpush.msra.mxu0 %v2951
        %v2953 = vand.u32 %v1728, 4294901760
        %2954 = vmatmul.f32.gmra.mxu0 %v2953
        %v2955 = vpop.f32.mrf.mxu0
        %v2956 = vadd.f32 %v2855, %v2955
        %2957 = vdwg.mxu0
        %v2958 = vand.u32 %v1792, 4294901760
        %v2959 = vsub.f32 %v1792, %v2958
        %2960 = vmatpush.msra.mxu0 %v2959
        %v2961 = vand.u32 %v1791, 4294901760
        %v2962 = vsub.f32 %v1791, %v2961
        %2963 = vmatpush.msra.mxu0 %v2962
        %v2964 = vand.u32 %v1790, 4294901760
        %v2965 = vsub.f32 %v1790, %v2964
        %2966 = vmatpush.msra.mxu0 %v2965
        %v2967 = vand.u32 %v1789, 4294901760
        %v2968 = vsub.f32 %v1789, %v2967
        %2969 = vmatpush.msra.mxu0 %v2968
        %v2970 = vand.u32 %v1788, 4294901760
        %v2971 = vsub.f32 %v1788, %v2970
        %2972 = vmatpush.msra.mxu0 %v2971
        %v2973 = vand.u32 %v1787, 4294901760
        %v2974 = vsub.f32 %v1787, %v2973
        %2975 = vmatpush.msra.mxu0 %v2974
        %v2976 = vand.u32 %v1786, 4294901760
        %v2977 = vsub.f32 %v1786, %v2976
        %2978 = vmatpush.msra.mxu0 %v2977
        %v2979 = vand.u32 %v1785, 4294901760
        %v2980 = vsub.f32 %v1785, %v2979
        %2981 = vmatpush.msra.mxu0 %v2980
        %v2982 = vand.u32 %v1784, 4294901760
        %v2983 = vsub.f32 %v1784, %v2982
        %2984 = vmatpush.msra.mxu0 %v2983
        %v2985 = vand.u32 %v1783, 4294901760
        %v2986 = vsub.f32 %v1783, %v2985
        %2987 = vmatpush.msra.mxu0 %v2986
        %v2988 = vand.u32 %v1782, 4294901760
        %v2989 = vsub.f32 %v1782, %v2988
        %2990 = vmatpush.msra.mxu0 %v2989
        %v2991 = vand.u32 %v1781, 4294901760
        %v2992 = vsub.f32 %v1781, %v2991
        %2993 = vmatpush.msra.mxu0 %v2992
        %v2994 = vand.u32 %v1780, 4294901760
        %v2995 = vsub.f32 %v1780, %v2994
        %2996 = vmatpush.msra.mxu0 %v2995
        %v2997 = vand.u32 %v1779, 4294901760
        %v2998 = vsub.f32 %v1779, %v2997
        %2999 = vmatpush.msra.mxu0 %v2998
        %v3000 = vand.u32 %v1778, 4294901760
        %v3001 = vsub.f32 %v1778, %v3000
        %3002 = vmatpush.msra.mxu0 %v3001
        %v3003 = vand.u32 %v1777, 4294901760
        %v3004 = vsub.f32 %v1777, %v3003
        %3005 = vmatpush.msra.mxu0 %v3004
        %v3006 = vand.u32 %v1728, 4294901760
        %v3007 = vsub.f32 %v1728, %v3006
        %3008 = vmatmul.f32.gmra.mxu0 %v3007
        %v3009 = vpop.f32.mrf.mxu0
        %v3010 = vadd.f32 %v2956, %v3009
        %3011 = vdwg.mxu0
        %v3012 = vand.u32 %v1792, 4294901760
        %3013 = vmatpush.msra.mxu0 %v3012
        %v3014 = vand.u32 %v1791, 4294901760
        %3015 = vmatpush.msra.mxu0 %v3014
        %v3016 = vand.u32 %v1790, 4294901760
        %3017 = vmatpush.msra.mxu0 %v3016
        %v3018 = vand.u32 %v1789, 4294901760
        %3019 = vmatpush.msra.mxu0 %v3018
        %v3020 = vand.u32 %v1788, 4294901760
        %3021 = vmatpush.msra.mxu0 %v3020
        %v3022 = vand.u32 %v1787, 4294901760
        %3023 = vmatpush.msra.mxu0 %v3022
        %v3024 = vand.u32 %v1786, 4294901760
        %3025 = vmatpush.msra.mxu0 %v3024
        %v3026 = vand.u32 %v1785, 4294901760
        %3027 = vmatpush.msra.mxu0 %v3026
        %v3028 = vand.u32 %v1784, 4294901760
        %3029 = vmatpush.msra.mxu0 %v3028
        %v3030 = vand.u32 %v1783, 4294901760
        %3031 = vmatpush.msra.mxu0 %v3030
        %v3032 = vand.u32 %v1782, 4294901760
        %3033 = vmatpush.msra.mxu0 %v3032
        %v3034 = vand.u32 %v1781, 4294901760
        %3035 = vmatpush.msra.mxu0 %v3034
        %v3036 = vand.u32 %v1780, 4294901760
        %3037 = vmatpush.msra.mxu0 %v3036
        %v3038 = vand.u32 %v1779, 4294901760
        %3039 = vmatpush.msra.mxu0 %v3038
        %v3040 = vand.u32 %v1778, 4294901760
        %3041 = vmatpush.msra.mxu0 %v3040
        %v3042 = vand.u32 %v1777, 4294901760
        %3043 = vmatpush.msra.mxu0 %v3042
        %v3044 = vand.u32 %v1728, 4294901760
        %v3045 = vsub.f32 %v1728, %v3044
        %v3046 = vand.u32 %v3045, 4294901760
        %3047 = vmatmul.f32.gmra.mxu0 %v3046
        %v3048 = vpop.f32.mrf.mxu0
        %v3049 = vadd.f32 %v3010, %v3048
        %3050 = vdwg.mxu0
        %v3051 = vand.u32 %v1792, 4294901760
        %v3052 = vsub.f32 %v1792, %v3051
        %v3053 = vand.u32 %v3052, 4294901760
        %3054 = vmatpush.msra.mxu0 %v3053
        %v3055 = vand.u32 %v1791, 4294901760
        %v3056 = vsub.f32 %v1791, %v3055
        %v3057 = vand.u32 %v3056, 4294901760
        %3058 = vmatpush.msra.mxu0 %v3057
        %v3059 = vand.u32 %v1790, 4294901760
        %v3060 = vsub.f32 %v1790, %v3059
        %v3061 = vand.u32 %v3060, 4294901760
        %3062 = vmatpush.msra.mxu0 %v3061
        %v3063 = vand.u32 %v1789, 4294901760
        %v3064 = vsub.f32 %v1789, %v3063
        %v3065 = vand.u32 %v3064, 4294901760
        %3066 = vmatpush.msra.mxu0 %v3065
        %v3067 = vand.u32 %v1788, 4294901760
        %v3068 = vsub.f32 %v1788, %v3067
        %v3069 = vand.u32 %v3068, 4294901760
        %3070 = vmatpush.msra.mxu0 %v3069
        %v3071 = vand.u32 %v1787, 4294901760
        %v3072 = vsub.f32 %v1787, %v3071
        %v3073 = vand.u32 %v3072, 4294901760
        %3074 = vmatpush.msra.mxu0 %v3073
        %v3075 = vand.u32 %v1786, 4294901760
        %v3076 = vsub.f32 %v1786, %v3075
        %v3077 = vand.u32 %v3076, 4294901760
        %3078 = vmatpush.msra.mxu0 %v3077
        %v3079 = vand.u32 %v1785, 4294901760
        %v3080 = vsub.f32 %v1785, %v3079
        %v3081 = vand.u32 %v3080, 4294901760
        %3082 = vmatpush.msra.mxu0 %v3081
        %v3083 = vand.u32 %v1784, 4294901760
        %v3084 = vsub.f32 %v1784, %v3083
        %v3085 = vand.u32 %v3084, 4294901760
        %3086 = vmatpush.msra.mxu0 %v3085
        %v3087 = vand.u32 %v1783, 4294901760
        %v3088 = vsub.f32 %v1783, %v3087
        %v3089 = vand.u32 %v3088, 4294901760
        %3090 = vmatpush.msra.mxu0 %v3089
        %v3091 = vand.u32 %v1782, 4294901760
        %v3092 = vsub.f32 %v1782, %v3091
        %v3093 = vand.u32 %v3092, 4294901760
        %3094 = vmatpush.msra.mxu0 %v3093
        %v3095 = vand.u32 %v1781, 4294901760
        %v3096 = vsub.f32 %v1781, %v3095
        %v3097 = vand.u32 %v3096, 4294901760
        %3098 = vmatpush.msra.mxu0 %v3097
        %v3099 = vand.u32 %v1780, 4294901760
        %v3100 = vsub.f32 %v1780, %v3099
        %v3101 = vand.u32 %v3100, 4294901760
        %3102 = vmatpush.msra.mxu0 %v3101
        %v3103 = vand.u32 %v1779, 4294901760
        %v3104 = vsub.f32 %v1779, %v3103
        %v3105 = vand.u32 %v3104, 4294901760
        %3106 = vmatpush.msra.mxu0 %v3105
        %v3107 = vand.u32 %v1778, 4294901760
        %v3108 = vsub.f32 %v1778, %v3107
        %v3109 = vand.u32 %v3108, 4294901760
        %3110 = vmatpush.msra.mxu0 %v3109
        %v3111 = vand.u32 %v1777, 4294901760
        %v3112 = vsub.f32 %v1777, %v3111
        %v3113 = vand.u32 %v3112, 4294901760
        %3114 = vmatpush.msra.mxu0 %v3113
        %v3115 = vand.u32 %v1728, 4294901760
        %3116 = vmatmul.f32.gmra.mxu0 %v3115
        %v3117 = vpop.f32.mrf.mxu0
        %v3118 = vadd.f32 %v3049, %v3117
        %3119 = vdwg.mxu0
        %v3120 = vand.u32 %v1792, 4294901760
        %3121 = vmatpush.msra.mxu0 %v3120
        %v3122 = vand.u32 %v1791, 4294901760
        %3123 = vmatpush.msra.mxu0 %v3122
        %v3124 = vand.u32 %v1790, 4294901760
        %3125 = vmatpush.msra.mxu0 %v3124
        %v3126 = vand.u32 %v1789, 4294901760
        %3127 = vmatpush.msra.mxu0 %v3126
        %v3128 = vand.u32 %v1788, 4294901760
        %3129 = vmatpush.msra.mxu0 %v3128
        %v3130 = vand.u32 %v1787, 4294901760
        %3131 = vmatpush.msra.mxu0 %v3130
        %v3132 = vand.u32 %v1786, 4294901760
        %3133 = vmatpush.msra.mxu0 %v3132
        %v3134 = vand.u32 %v1785, 4294901760
        %3135 = vmatpush.msra.mxu0 %v3134
        %v3136 = vand.u32 %v1784, 4294901760
        %3137 = vmatpush.msra.mxu0 %v3136
        %v3138 = vand.u32 %v1783, 4294901760
        %3139 = vmatpush.msra.mxu0 %v3138
        %v3140 = vand.u32 %v1782, 4294901760
        %3141 = vmatpush.msra.mxu0 %v3140
        %v3142 = vand.u32 %v1781, 4294901760
        %3143 = vmatpush.msra.mxu0 %v3142
        %v3144 = vand.u32 %v1780, 4294901760
        %3145 = vmatpush.msra.mxu0 %v3144
        %v3146 = vand.u32 %v1779, 4294901760
        %3147 = vmatpush.msra.mxu0 %v3146
        %v3148 = vand.u32 %v1778, 4294901760
        %3149 = vmatpush.msra.mxu0 %v3148
        %v3150 = vand.u32 %v1777, 4294901760
        %3151 = vmatpush.msra.mxu0 %v3150
        %v3152 = vand.u32 %v1728, 4294901760
        %3153 = vmatmul.f32.gmra.mxu0 %v3152
        %v3154 = vpop.f32.mrf.mxu0
        %v3155 = vadd.f32 %v3118, %v3154
        %3156 = vdwg.mxu0
        %v3157 = vsel %vm1614, %v3155, -inf
        %3158 = vmax.xlane.f32.xlu0 %v3157
        %v3159 = vpop.xlane.xlu0 %3158
        %v3160 = vsub.f32 %v3155, %v3159
        %v3161 = vmul.f32 %v3160, 1.442695
        %v3162 = vpow.pop %v3161
        %v3163 = vld [vmem:[%s5] sm:$0xff]
        %v3164 = vld [vmem:[%s5 + $0x8] sm:$0xff]
        %v3165 = vld [vmem:[%s5 + $0x10] sm:$0xff]
        %v3166 = vld [vmem:[%s5 + $0x18] sm:$0xff]
        %v3167 = vld [vmem:[%s5 + $0x20] sm:$0xff]
        %v3168 = vld [vmem:[%s5 + $0x28] sm:$0xff]
        %v3169 = vld [vmem:[%s5 + $0x30] sm:$0xff]
        %v3170 = vld [vmem:[%s5 + $0x38] sm:$0xff]
        %v3172 = vsel %vm1614, %v3162, 0
        %3174 = vmatpush.msra.mxu0 0.0
        %3175 = vmatpush.msra.mxu0 0.0
        %3176 = vmatpush.msra.mxu0 0.0
        %3177 = vmatpush.msra.mxu0 0.0
        %3178 = vmatpush.msra.mxu0 0.0
        %3179 = vmatpush.msra.mxu0 0.0
        %3180 = vmatpush.msra.mxu0 0.0
        %3181 = vmatpush.msra.mxu0 0.0
        %v3182 = vand.u32 %v3170, 4294901760
        %3183 = vmatpush.msra.mxu0 %v3182
        %v3184 = vand.u32 %v3169, 4294901760
        %3185 = vmatpush.msra.mxu0 %v3184
        %v3186 = vand.u32 %v3168, 4294901760
        %3187 = vmatpush.msra.mxu0 %v3186
        %v3188 = vand.u32 %v3167, 4294901760
        %3189 = vmatpush.msra.mxu0 %v3188
        %v3190 = vand.u32 %v3166, 4294901760
        %3191 = vmatpush.msra.mxu0 %v3190
        %v3192 = vand.u32 %v3165, 4294901760
        %3193 = vmatpush.msra.mxu0 %v3192
        %v3194 = vand.u32 %v3164, 4294901760
        %3195 = vmatpush.msra.mxu0 %v3194
        %v3196 = vand.u32 %v3163, 4294901760
        %3197 = vmatpush.msra.mxu0 %v3196
        %v3198 = vand.u32 %v3172, 4294901760
        %v3199 = vsub.f32 %v3172, %v3198
        %v3200 = vand.u32 %v3199, 4294901760
        %v3201 = vsub.f32 %v3199, %v3200
        %v3202 = vand.u32 %v3201, 4294901760
        %3203 = vmatmul.f32.gmra.mxu0 %v3202
        %v3204 = vpop.f32.mrf.mxu0
        %v3205 = vadd.f32 0.0, %v3204
        %3206 = vdwg.mxu0
        %3207 = vmatpush.msra.mxu0 0.0
        %3208 = vmatpush.msra.mxu0 0.0
        %3209 = vmatpush.msra.mxu0 0.0
        %3210 = vmatpush.msra.mxu0 0.0
        %3211 = vmatpush.msra.mxu0 0.0
        %3212 = vmatpush.msra.mxu0 0.0
        %3213 = vmatpush.msra.mxu0 0.0
        %3214 = vmatpush.msra.mxu0 0.0
        %v3215 = vand.u32 %v3170, 4294901760
        %v3216 = vsub.f32 %v3170, %v3215
        %v3217 = vand.u32 %v3216, 4294901760
        %v3218 = vsub.f32 %v3216, %v3217
        %v3219 = vand.u32 %v3218, 4294901760
        %3220 = vmatpush.msra.mxu0 %v3219
        %v3221 = vand.u32 %v3169, 4294901760
        %v3222 = vsub.f32 %v3169, %v3221
        %v3223 = vand.u32 %v3222, 4294901760
        %v3224 = vsub.f32 %v3222, %v3223
        %v3225 = vand.u32 %v3224, 4294901760
        %3226 = vmatpush.msra.mxu0 %v3225
        %v3227 = vand.u32 %v3168, 4294901760
        %v3228 = vsub.f32 %v3168, %v3227
        %v3229 = vand.u32 %v3228, 4294901760
        %v3230 = vsub.f32 %v3228, %v3229
        %v3231 = vand.u32 %v3230, 4294901760
        %3232 = vmatpush.msra.mxu0 %v3231
        %v3233 = vand.u32 %v3167, 4294901760
        %v3234 = vsub.f32 %v3167, %v3233
        %v3235 = vand.u32 %v3234, 4294901760
        %v3236 = vsub.f32 %v3234, %v3235
        %v3237 = vand.u32 %v3236, 4294901760
        %3238 = vmatpush.msra.mxu0 %v3237
        %v3239 = vand.u32 %v3166, 4294901760
        %v3240 = vsub.f32 %v3166, %v3239
        %v3241 = vand.u32 %v3240, 4294901760
        %v3242 = vsub.f32 %v3240, %v3241
        %v3243 = vand.u32 %v3242, 4294901760
        %3244 = vmatpush.msra.mxu0 %v3243
        %v3245 = vand.u32 %v3165, 4294901760
        %v3246 = vsub.f32 %v3165, %v3245
        %v3247 = vand.u32 %v3246, 4294901760
        %v3248 = vsub.f32 %v3246, %v3247
        %v3249 = vand.u32 %v3248, 4294901760
        %3250 = vmatpush.msra.mxu0 %v3249
        %v3251 = vand.u32 %v3164, 4294901760
        %v3252 = vsub.f32 %v3164, %v3251
        %v3253 = vand.u32 %v3252, 4294901760
        %v3254 = vsub.f32 %v3252, %v3253
        %v3255 = vand.u32 %v3254, 4294901760
        %3256 = vmatpush.msra.mxu0 %v3255
        %v3257 = vand.u32 %v3163, 4294901760
        %v3258 = vsub.f32 %v3163, %v3257
        %v3259 = vand.u32 %v3258, 4294901760
        %v3260 = vsub.f32 %v3258, %v3259
        %v3261 = vand.u32 %v3260, 4294901760
        %3262 = vmatpush.msra.mxu0 %v3261
        %v3263 = vand.u32 %v3172, 4294901760
        %3264 = vmatmul.f32.gmra.mxu0 %v3263
        %v3265 = vpop.f32.mrf.mxu0
        %v3266 = vadd.f32 %v3205, %v3265
        %3267 = vdwg.mxu0
        %3268 = vmatpush.msra.mxu0 0.0
        %3269 = vmatpush.msra.mxu0 0.0
        %3270 = vmatpush.msra.mxu0 0.0
        %3271 = vmatpush.msra.mxu0 0.0
        %3272 = vmatpush.msra.mxu0 0.0
        %3273 = vmatpush.msra.mxu0 0.0
        %3274 = vmatpush.msra.mxu0 0.0
        %3275 = vmatpush.msra.mxu0 0.0
        %v3276 = vand.u32 %v3170, 4294901760
        %v3277 = vsub.f32 %v3170, %v3276
        %3278 = vmatpush.msra.mxu0 %v3277
        %v3279 = vand.u32 %v3169, 4294901760
        %v3280 = vsub.f32 %v3169, %v3279
        %3281 = vmatpush.msra.mxu0 %v3280
        %v3282 = vand.u32 %v3168, 4294901760
        %v3283 = vsub.f32 %v3168, %v3282
        %3284 = vmatpush.msra.mxu0 %v3283
        %v3285 = vand.u32 %v3167, 4294901760
        %v3286 = vsub.f32 %v3167, %v3285
        %3287 = vmatpush.msra.mxu0 %v3286
        %v3288 = vand.u32 %v3166, 4294901760
        %v3289 = vsub.f32 %v3166, %v3288
        %3290 = vmatpush.msra.mxu0 %v3289
        %v3291 = vand.u32 %v3165, 4294901760
        %v3292 = vsub.f32 %v3165, %v3291
        %3293 = vmatpush.msra.mxu0 %v3292
        %v3294 = vand.u32 %v3164, 4294901760
        %v3295 = vsub.f32 %v3164, %v3294
        %3296 = vmatpush.msra.mxu0 %v3295
        %v3297 = vand.u32 %v3163, 4294901760
        %v3298 = vsub.f32 %v3163, %v3297
        %3299 = vmatpush.msra.mxu0 %v3298
        %v3300 = vand.u32 %v3172, 4294901760
        %v3301 = vsub.f32 %v3172, %v3300
        %3302 = vmatmul.f32.gmra.mxu0 %v3301
        %v3303 = vpop.f32.mrf.mxu0
        %v3304 = vadd.f32 %v3266, %v3303
        %3305 = vdwg.mxu0
        %3306 = vmatpush.msra.mxu0 0.0
        %3307 = vmatpush.msra.mxu0 0.0
        %3308 = vmatpush.msra.mxu0 0.0
        %3309 = vmatpush.msra.mxu0 0.0
        %3310 = vmatpush.msra.mxu0 0.0
        %3311 = vmatpush.msra.mxu0 0.0
        %3312 = vmatpush.msra.mxu0 0.0
        %3313 = vmatpush.msra.mxu0 0.0
        %v3314 = vand.u32 %v3170, 4294901760
        %3315 = vmatpush.msra.mxu0 %v3314
        %v3316 = vand.u32 %v3169, 4294901760
        %3317 = vmatpush.msra.mxu0 %v3316
        %v3318 = vand.u32 %v3168, 4294901760
        %3319 = vmatpush.msra.mxu0 %v3318
        %v3320 = vand.u32 %v3167, 4294901760
        %3321 = vmatpush.msra.mxu0 %v3320
        %v3322 = vand.u32 %v3166, 4294901760
        %3323 = vmatpush.msra.mxu0 %v3322
        %v3324 = vand.u32 %v3165, 4294901760
        %3325 = vmatpush.msra.mxu0 %v3324
        %v3326 = vand.u32 %v3164, 4294901760
        %3327 = vmatpush.msra.mxu0 %v3326
        %v3328 = vand.u32 %v3163, 4294901760
        %3329 = vmatpush.msra.mxu0 %v3328
        %v3330 = vand.u32 %v3172, 4294901760
        %v3331 = vsub.f32 %v3172, %v3330
        %v3332 = vand.u32 %v3331, 4294901760
        %3333 = vmatmul.f32.gmra.mxu0 %v3332
        %v3334 = vpop.f32.mrf.mxu0
        %v3335 = vadd.f32 %v3304, %v3334
        %3336 = vdwg.mxu0
        %3337 = vmatpush.msra.mxu0 0.0
        %3338 = vmatpush.msra.mxu0 0.0
        %3339 = vmatpush.msra.mxu0 0.0
        %3340 = vmatpush.msra.mxu0 0.0
        %3341 = vmatpush.msra.mxu0 0.0
        %3342 = vmatpush.msra.mxu0 0.0
        %3343 = vmatpush.msra.mxu0 0.0
        %3344 = vmatpush.msra.mxu0 0.0
        %v3345 = vand.u32 %v3170, 4294901760
        %v3346 = vsub.f32 %v3170, %v3345
        %v3347 = vand.u32 %v3346, 4294901760
        %3348 = vmatpush.msra.mxu0 %v3347
        %v3349 = vand.u32 %v3169, 4294901760
        %v3350 = vsub.f32 %v3169, %v3349
        %v3351 = vand.u32 %v3350, 4294901760
        %3352 = vmatpush.msra.mxu0 %v3351
        %v3353 = vand.u32 %v3168, 4294901760
        %v3354 = vsub.f32 %v3168, %v3353
        %v3355 = vand.u32 %v3354, 4294901760
        %3356 = vmatpush.msra.mxu0 %v3355
        %v3357 = vand.u32 %v3167, 4294901760
        %v3358 = vsub.f32 %v3167, %v3357
        %v3359 = vand.u32 %v3358, 4294901760
        %3360 = vmatpush.msra.mxu0 %v3359
        %v3361 = vand.u32 %v3166, 4294901760
        %v3362 = vsub.f32 %v3166, %v3361
        %v3363 = vand.u32 %v3362, 4294901760
        %3364 = vmatpush.msra.mxu0 %v3363
        %v3365 = vand.u32 %v3165, 4294901760
        %v3366 = vsub.f32 %v3165, %v3365
        %v3367 = vand.u32 %v3366, 4294901760
        %3368 = vmatpush.msra.mxu0 %v3367
        %v3369 = vand.u32 %v3164, 4294901760
        %v3370 = vsub.f32 %v3164, %v3369
        %v3371 = vand.u32 %v3370, 4294901760
        %3372 = vmatpush.msra.mxu0 %v3371
        %v3373 = vand.u32 %v3163, 4294901760
        %v3374 = vsub.f32 %v3163, %v3373
        %v3375 = vand.u32 %v3374, 4294901760
        %3376 = vmatpush.msra.mxu0 %v3375
        %v3377 = vand.u32 %v3172, 4294901760
        %3378 = vmatmul.f32.gmra.mxu0 %v3377
        %v3379 = vpop.f32.mrf.mxu0
        %v3380 = vadd.f32 %v3335, %v3379
        %3381 = vdwg.mxu0
        %3382 = vmatpush.msra.mxu0 0.0
        %3383 = vmatpush.msra.mxu0 0.0
        %3384 = vmatpush.msra.mxu0 0.0
        %3385 = vmatpush.msra.mxu0 0.0
        %3386 = vmatpush.msra.mxu0 0.0
        %3387 = vmatpush.msra.mxu0 0.0
        %3388 = vmatpush.msra.mxu0 0.0
        %3389 = vmatpush.msra.mxu0 0.0
        %v3390 = vand.u32 %v3170, 4294901760
        %3391 = vmatpush.msra.mxu0 %v3390
        %v3392 = vand.u32 %v3169, 4294901760
        %3393 = vmatpush.msra.mxu0 %v3392
        %v3394 = vand.u32 %v3168, 4294901760
        %3395 = vmatpush.msra.mxu0 %v3394
        %v3396 = vand.u32 %v3167, 4294901760
        %3397 = vmatpush.msra.mxu0 %v3396
        %v3398 = vand.u32 %v3166, 4294901760
        %3399 = vmatpush.msra.mxu0 %v3398
        %v3400 = vand.u32 %v3165, 4294901760
        %3401 = vmatpush.msra.mxu0 %v3400
        %v3402 = vand.u32 %v3164, 4294901760
        %3403 = vmatpush.msra.mxu0 %v3402
        %v3404 = vand.u32 %v3163, 4294901760
        %3405 = vmatpush.msra.mxu0 %v3404
        %v3406 = vand.u32 %v3172, 4294901760
        %3407 = vmatmul.f32.gmra.mxu0 %v3406
        %v3408 = vpop.f32.mrf.mxu0
        %v3409 = vadd.f32 %v3380, %v3408
        %3410 = vdwg.mxu0
        %v3411 = vrcp.pop %v3409
        %v3412 = vmul.f32 %v3409, %v3411
        %v3413 = vsub.f32 1.0, %v3412
        %v3414 = vmul.f32 %v3411, %v3413
        %v3415 = vadd.f32 %v3411, %v3414
        %vm3416 = vweird.f32 %v3409
        %vm3417 = vweird.f32 %v3411
        %vm3418 = vmor %vm3416, %vm3417
        %v3419 = vsel %vm3418, %v3411, %v3415
        %v3420 = vand.u32 2147483647, %v3409
        %vm3421 = vcmp.eq.f32.partialorder %v3420, 8.507059e+37
        %v3422 = vand.u32 %v3409, 2147483648
        %v3423 = vor.u32 1.1754944e-38, %v3422
        %v3424 = vsel %vm3421, %v3423, %v3419
        %v3425 = vmul.f32 %v3162, %v3424
        %v3426 = vld [vmem:[%s6] sm:$0xff]
        %v3427 = vld [vmem:[%s6 + $0x8] sm:$0xff]
        %v3428 = vld [vmem:[%s6 + $0x10] sm:$0xff]
        %v3429 = vld [vmem:[%s6 + $0x18] sm:$0xff]
        %v3430 = vld [vmem:[%s6 + $0x20] sm:$0xff]
        %v3431 = vld [vmem:[%s6 + $0x28] sm:$0xff]
        %v3432 = vld [vmem:[%s6 + $0x30] sm:$0xff]
        %v3433 = vld [vmem:[%s6 + $0x38] sm:$0xff]
        %v3434 = vld [vmem:[%s6 + $0x40] sm:$0xff]
        %v3435 = vld [vmem:[%s6 + $0x48] sm:$0xff]
        %v3436 = vld [vmem:[%s6 + $0x50] sm:$0xff]
        %v3437 = vld [vmem:[%s6 + $0x58] sm:$0xff]
        %v3438 = vld [vmem:[%s6 + $0x60] sm:$0xff]
        %v3439 = vld [vmem:[%s6 + $0x68] sm:$0xff]
        %v3440 = vld [vmem:[%s6 + $0x70] sm:$0xff]
        %v3441 = vld [vmem:[%s6 + $0x78] sm:$0xff]
        %v3442 = vld [vmem:[%s6 + $0x80] sm:$0xff]
        %v3443 = vld [vmem:[%s6 + $0x88] sm:$0xff]
        %v3444 = vld [vmem:[%s6 + $0x90] sm:$0xff]
        %v3445 = vld [vmem:[%s6 + $0x98] sm:$0xff]
        %v3446 = vld [vmem:[%s6 + $0xa0] sm:$0xff]
        %v3447 = vld [vmem:[%s6 + $0xa8] sm:$0xff]
        %v3448 = vld [vmem:[%s6 + $0xb0] sm:$0xff]
        %v3449 = vld [vmem:[%s6 + $0xb8] sm:$0xff]
        %v3450 = vld [vmem:[%s6 + $0xc0] sm:$0xff]
        %v3451 = vld [vmem:[%s6 + $0xc8] sm:$0xff]
        %v3452 = vld [vmem:[%s6 + $0xd0] sm:$0xff]
        %v3453 = vld [vmem:[%s6 + $0xd8] sm:$0xff]
        %v3454 = vld [vmem:[%s6 + $0xe0] sm:$0xff]
        %v3455 = vld [vmem:[%s6 + $0xe8] sm:$0xff]
        %v3456 = vld [vmem:[%s6 + $0xf0] sm:$0xff]
        %v3457 = vld [vmem:[%s6 + $0xf8] sm:$0xff]
        %v3459 = vsel %vm1614, %v3425, 0
        %3461 = vmatpush.msra.mxu0 0.0
        %3462 = vmatpush.msra.mxu0 0.0
        %3463 = vmatpush.msra.mxu0 0.0
        %3464 = vmatpush.msra.mxu0 0.0
        %3465 = vmatpush.msra.mxu0 0.0
        %3466 = vmatpush.msra.mxu0 0.0
        %3467 = vmatpush.msra.mxu0 0.0
        %3468 = vmatpush.msra.mxu0 0.0
        %v3469 = vand.u32 %v3454, 4294901760
        %3470 = vmatpush.msra.mxu0 %v3469
        %v3471 = vand.u32 %v3450, 4294901760
        %3472 = vmatpush.msra.mxu0 %v3471
        %v3473 = vand.u32 %v3446, 4294901760
        %3474 = vmatpush.msra.mxu0 %v3473
        %v3475 = vand.u32 %v3442, 4294901760
        %3476 = vmatpush.msra.mxu0 %v3475
        %v3477 = vand.u32 %v3438, 4294901760
        %3478 = vmatpush.msra.mxu0 %v3477
        %v3479 = vand.u32 %v3434, 4294901760
        %3480 = vmatpush.msra.mxu0 %v3479
        %v3481 = vand.u32 %v3430, 4294901760
        %3482 = vmatpush.msra.mxu0 %v3481
        %v3483 = vand.u32 %v3426, 4294901760
        %3484 = vmatpush.msra.mxu0 %v3483
        %v3485 = vand.u32 %v3459, 4294901760
        %v3486 = vsub.f32 %v3459, %v3485
        %v3487 = vand.u32 %v3486, 4294901760
        %v3488 = vsub.f32 %v3486, %v3487
        %v3489 = vand.u32 %v3488, 4294901760
        %3490 = vmatmul.f32.gmra.mxu0 %v3489
        %v3491 = vpop.f32.mrf.mxu0
        %v3492 = vadd.f32 0.0, %v3491
        %3493 = vdwg.mxu0
        %3494 = vmatpush.msra.mxu0 0.0
        %3495 = vmatpush.msra.mxu0 0.0
        %3496 = vmatpush.msra.mxu0 0.0
        %3497 = vmatpush.msra.mxu0 0.0
        %3498 = vmatpush.msra.mxu0 0.0
        %3499 = vmatpush.msra.mxu0 0.0
        %3500 = vmatpush.msra.mxu0 0.0
        %3501 = vmatpush.msra.mxu0 0.0
        %v3502 = vand.u32 %v3454, 4294901760
        %v3503 = vsub.f32 %v3454, %v3502
        %v3504 = vand.u32 %v3503, 4294901760
        %v3505 = vsub.f32 %v3503, %v3504
        %v3506 = vand.u32 %v3505, 4294901760
        %3507 = vmatpush.msra.mxu0 %v3506
        %v3508 = vand.u32 %v3450, 4294901760
        %v3509 = vsub.f32 %v3450, %v3508
        %v3510 = vand.u32 %v3509, 4294901760
        %v3511 = vsub.f32 %v3509, %v3510
        %v3512 = vand.u32 %v3511, 4294901760
        %3513 = vmatpush.msra.mxu0 %v3512
        %v3514 = vand.u32 %v3446, 4294901760
        %v3515 = vsub.f32 %v3446, %v3514
        %v3516 = vand.u32 %v3515, 4294901760
        %v3517 = vsub.f32 %v3515, %v3516
        %v3518 = vand.u32 %v3517, 4294901760
        %3519 = vmatpush.msra.mxu0 %v3518
        %v3520 = vand.u32 %v3442, 4294901760
        %v3521 = vsub.f32 %v3442, %v3520
        %v3522 = vand.u32 %v3521, 4294901760
        %v3523 = vsub.f32 %v3521, %v3522
        %v3524 = vand.u32 %v3523, 4294901760
        %3525 = vmatpush.msra.mxu0 %v3524
        %v3526 = vand.u32 %v3438, 4294901760
        %v3527 = vsub.f32 %v3438, %v3526
        %v3528 = vand.u32 %v3527, 4294901760
        %v3529 = vsub.f32 %v3527, %v3528
        %v3530 = vand.u32 %v3529, 4294901760
        %3531 = vmatpush.msra.mxu0 %v3530
        %v3532 = vand.u32 %v3434, 4294901760
        %v3533 = vsub.f32 %v3434, %v3532
        %v3534 = vand.u32 %v3533, 4294901760
        %v3535 = vsub.f32 %v3533, %v3534
        %v3536 = vand.u32 %v3535, 4294901760
        %3537 = vmatpush.msra.mxu0 %v3536
        %v3538 = vand.u32 %v3430, 4294901760
        %v3539 = vsub.f32 %v3430, %v3538
        %v3540 = vand.u32 %v3539, 4294901760
        %v3541 = vsub.f32 %v3539, %v3540
        %v3542 = vand.u32 %v3541, 4294901760
        %3543 = vmatpush.msra.mxu0 %v3542
        %v3544 = vand.u32 %v3426, 4294901760
        %v3545 = vsub.f32 %v3426, %v3544
        %v3546 = vand.u32 %v3545, 4294901760
        %v3547 = vsub.f32 %v3545, %v3546
        %v3548 = vand.u32 %v3547, 4294901760
        %3549 = vmatpush.msra.mxu0 %v3548
        %v3550 = vand.u32 %v3459, 4294901760
        %3551 = vmatmul.f32.gmra.mxu0 %v3550
        %v3552 = vpop.f32.mrf.mxu0
        %v3553 = vadd.f32 %v3492, %v3552
        %3554 = vdwg.mxu0
        %3555 = vmatpush.msra.mxu0 0.0
        %3556 = vmatpush.msra.mxu0 0.0
        %3557 = vmatpush.msra.mxu0 0.0
        %3558 = vmatpush.msra.mxu0 0.0
        %3559 = vmatpush.msra.mxu0 0.0
        %3560 = vmatpush.msra.mxu0 0.0
        %3561 = vmatpush.msra.mxu0 0.0
        %3562 = vmatpush.msra.mxu0 0.0
        %v3563 = vand.u32 %v3454, 4294901760
        %v3564 = vsub.f32 %v3454, %v3563
        %3565 = vmatpush.msra.mxu0 %v3564
        %v3566 = vand.u32 %v3450, 4294901760
        %v3567 = vsub.f32 %v3450, %v3566
        %3568 = vmatpush.msra.mxu0 %v3567
        %v3569 = vand.u32 %v3446, 4294901760
        %v3570 = vsub.f32 %v3446, %v3569
        %3571 = vmatpush.msra.mxu0 %v3570
        %v3572 = vand.u32 %v3442, 4294901760
        %v3573 = vsub.f32 %v3442, %v3572
        %3574 = vmatpush.msra.mxu0 %v3573
        %v3575 = vand.u32 %v3438, 4294901760
        %v3576 = vsub.f32 %v3438, %v3575
        %3577 = vmatpush.msra.mxu0 %v3576
        %v3578 = vand.u32 %v3434, 4294901760
        %v3579 = vsub.f32 %v3434, %v3578
        %3580 = vmatpush.msra.mxu0 %v3579
        %v3581 = vand.u32 %v3430, 4294901760
        %v3582 = vsub.f32 %v3430, %v3581
        %3583 = vmatpush.msra.mxu0 %v3582
        %v3584 = vand.u32 %v3426, 4294901760
        %v3585 = vsub.f32 %v3426, %v3584
        %3586 = vmatpush.msra.mxu0 %v3585
        %v3587 = vand.u32 %v3459, 4294901760
        %v3588 = vsub.f32 %v3459, %v3587
        %3589 = vmatmul.f32.gmra.mxu0 %v3588
        %v3590 = vpop.f32.mrf.mxu0
        %v3591 = vadd.f32 %v3553, %v3590
        %3592 = vdwg.mxu0
        %3593 = vmatpush.msra.mxu0 0.0
        %3594 = vmatpush.msra.mxu0 0.0
        %3595 = vmatpush.msra.mxu0 0.0
        %3596 = vmatpush.msra.mxu0 0.0
        %3597 = vmatpush.msra.mxu0 0.0
        %3598 = vmatpush.msra.mxu0 0.0
        %3599 = vmatpush.msra.mxu0 0.0
        %3600 = vmatpush.msra.mxu0 0.0
        %v3601 = vand.u32 %v3454, 4294901760
        %3602 = vmatpush.msra.mxu0 %v3601
        %v3603 = vand.u32 %v3450, 4294901760
        %3604 = vmatpush.msra.mxu0 %v3603
        %v3605 = vand.u32 %v3446, 4294901760
        %3606 = vmatpush.msra.mxu0 %v3605
        %v3607 = vand.u32 %v3442, 4294901760
        %3608 = vmatpush.msra.mxu0 %v3607
        %v3609 = vand.u32 %v3438, 4294901760
        %3610 = vmatpush.msra.mxu0 %v3609
        %v3611 = vand.u32 %v3434, 4294901760
        %3612 = vmatpush.msra.mxu0 %v3611
        %v3613 = vand.u32 %v3430, 4294901760
        %3614 = vmatpush.msra.mxu0 %v3613
        %v3615 = vand.u32 %v3426, 4294901760
        %3616 = vmatpush.msra.mxu0 %v3615
        %v3617 = vand.u32 %v3459, 4294901760
        %v3618 = vsub.f32 %v3459, %v3617
        %v3619 = vand.u32 %v3618, 4294901760
        %3620 = vmatmul.f32.gmra.mxu0 %v3619
        %v3621 = vpop.f32.mrf.mxu0
        %v3622 = vadd.f32 %v3591, %v3621
        %3623 = vdwg.mxu0
        %3624 = vmatpush.msra.mxu0 0.0
        %3625 = vmatpush.msra.mxu0 0.0
        %3626 = vmatpush.msra.mxu0 0.0
        %3627 = vmatpush.msra.mxu0 0.0
        %3628 = vmatpush.msra.mxu0 0.0
        %3629 = vmatpush.msra.mxu0 0.0
        %3630 = vmatpush.msra.mxu0 0.0
        %3631 = vmatpush.msra.mxu0 0.0
        %v3632 = vand.u32 %v3454, 4294901760
        %v3633 = vsub.f32 %v3454, %v3632
        %v3634 = vand.u32 %v3633, 4294901760
        %3635 = vmatpush.msra.mxu0 %v3634
        %v3636 = vand.u32 %v3450, 4294901760
        %v3637 = vsub.f32 %v3450, %v3636
        %v3638 = vand.u32 %v3637, 4294901760
        %3639 = vmatpush.msra.mxu0 %v3638
        %v3640 = vand.u32 %v3446, 4294901760
        %v3641 = vsub.f32 %v3446, %v3640
        %v3642 = vand.u32 %v3641, 4294901760
        %3643 = vmatpush.msra.mxu0 %v3642
        %v3644 = vand.u32 %v3442, 4294901760
        %v3645 = vsub.f32 %v3442, %v3644
        %v3646 = vand.u32 %v3645, 4294901760
        %3647 = vmatpush.msra.mxu0 %v3646
        %v3648 = vand.u32 %v3438, 4294901760
        %v3649 = vsub.f32 %v3438, %v3648
        %v3650 = vand.u32 %v3649, 4294901760
        %3651 = vmatpush.msra.mxu0 %v3650
        %v3652 = vand.u32 %v3434, 4294901760
        %v3653 = vsub.f32 %v3434, %v3652
        %v3654 = vand.u32 %v3653, 4294901760
        %3655 = vmatpush.msra.mxu0 %v3654
        %v3656 = vand.u32 %v3430, 4294901760
        %v3657 = vsub.f32 %v3430, %v3656
        %v3658 = vand.u32 %v3657, 4294901760
        %3659 = vmatpush.msra.mxu0 %v3658
        %v3660 = vand.u32 %v3426, 4294901760
        %v3661 = vsub.f32 %v3426, %v3660
        %v3662 = vand.u32 %v3661, 4294901760
        %3663 = vmatpush.msra.mxu0 %v3662
        %v3664 = vand.u32 %v3459, 4294901760
        %3665 = vmatmul.f32.gmra.mxu0 %v3664
        %v3666 = vpop.f32.mrf.mxu0
        %v3667 = vadd.f32 %v3622, %v3666
        %3668 = vdwg.mxu0
        %3669 = vmatpush.msra.mxu0 0.0
        %3670 = vmatpush.msra.mxu0 0.0
        %3671 = vmatpush.msra.mxu0 0.0
        %3672 = vmatpush.msra.mxu0 0.0
        %3673 = vmatpush.msra.mxu0 0.0
        %3674 = vmatpush.msra.mxu0 0.0
        %3675 = vmatpush.msra.mxu0 0.0
        %3676 = vmatpush.msra.mxu0 0.0
        %v3677 = vand.u32 %v3454, 4294901760
        %3678 = vmatpush.msra.mxu0 %v3677
        %v3679 = vand.u32 %v3450, 4294901760
        %3680 = vmatpush.msra.mxu0 %v3679
        %v3681 = vand.u32 %v3446, 4294901760
        %3682 = vmatpush.msra.mxu0 %v3681
        %v3683 = vand.u32 %v3442, 4294901760
        %3684 = vmatpush.msra.mxu0 %v3683
        %v3685 = vand.u32 %v3438, 4294901760
        %3686 = vmatpush.msra.mxu0 %v3685
        %v3687 = vand.u32 %v3434, 4294901760
        %3688 = vmatpush.msra.mxu0 %v3687
        %v3689 = vand.u32 %v3430, 4294901760
        %3690 = vmatpush.msra.mxu0 %v3689
        %v3691 = vand.u32 %v3426, 4294901760
        %3692 = vmatpush.msra.mxu0 %v3691
        %v3693 = vand.u32 %v3459, 4294901760
        %3694 = vmatmul.f32.gmra.mxu0 %v3693
        %v3695 = vpop.f32.mrf.mxu0
        %v3696 = vadd.f32 %v3667, %v3695
        %3697 = vdwg.mxu0
        %3698 = vmatpush.msra.mxu0 0.0
        %3699 = vmatpush.msra.mxu0 0.0
        %3700 = vmatpush.msra.mxu0 0.0
        %3701 = vmatpush.msra.mxu0 0.0
        %3702 = vmatpush.msra.mxu0 0.0
        %3703 = vmatpush.msra.mxu0 0.0
        %3704 = vmatpush.msra.mxu0 0.0
        %3705 = vmatpush.msra.mxu0 0.0
        %v3706 = vand.u32 %v3455, 4294901760
        %3707 = vmatpush.msra.mxu0 %v3706
        %v3708 = vand.u32 %v3451, 4294901760
        %3709 = vmatpush.msra.mxu0 %v3708
        %v3710 = vand.u32 %v3447, 4294901760
        %3711 = vmatpush.msra.mxu0 %v3710
        %v3712 = vand.u32 %v3443, 4294901760
        %3713 = vmatpush.msra.mxu0 %v3712
        %v3714 = vand.u32 %v3439, 4294901760
        %3715 = vmatpush.msra.mxu0 %v3714
        %v3716 = vand.u32 %v3435, 4294901760
        %3717 = vmatpush.msra.mxu0 %v3716
        %v3718 = vand.u32 %v3431, 4294901760
        %3719 = vmatpush.msra.mxu0 %v3718
        %v3720 = vand.u32 %v3427, 4294901760
        %3721 = vmatpush.msra.mxu0 %v3720
        %v3722 = vand.u32 %v3459, 4294901760
        %v3723 = vsub.f32 %v3459, %v3722
        %v3724 = vand.u32 %v3723, 4294901760
        %v3725 = vsub.f32 %v3723, %v3724
        %v3726 = vand.u32 %v3725, 4294901760
        %3727 = vmatmul.f32.gmra.mxu0 %v3726
        %v3728 = vpop.f32.mrf.mxu0
        %v3729 = vadd.f32 0.0, %v3728
        %3730 = vdwg.mxu0
        %3731 = vmatpush.msra.mxu0 0.0
        %3732 = vmatpush.msra.mxu0 0.0
        %3733 = vmatpush.msra.mxu0 0.0
        %3734 = vmatpush.msra.mxu0 0.0
        %3735 = vmatpush.msra.mxu0 0.0
        %3736 = vmatpush.msra.mxu0 0.0
        %3737 = vmatpush.msra.mxu0 0.0
        %3738 = vmatpush.msra.mxu0 0.0
        %v3739 = vand.u32 %v3455, 4294901760
        %v3740 = vsub.f32 %v3455, %v3739
        %v3741 = vand.u32 %v3740, 4294901760
        %v3742 = vsub.f32 %v3740, %v3741
        %v3743 = vand.u32 %v3742, 4294901760
        %3744 = vmatpush.msra.mxu0 %v3743
        %v3745 = vand.u32 %v3451, 4294901760
        %v3746 = vsub.f32 %v3451, %v3745
        %v3747 = vand.u32 %v3746, 4294901760
        %v3748 = vsub.f32 %v3746, %v3747
        %v3749 = vand.u32 %v3748, 4294901760
        %3750 = vmatpush.msra.mxu0 %v3749
        %v3751 = vand.u32 %v3447, 4294901760
        %v3752 = vsub.f32 %v3447, %v3751
        %v3753 = vand.u32 %v3752, 4294901760
        %v3754 = vsub.f32 %v3752, %v3753
        %v3755 = vand.u32 %v3754, 4294901760
        %3756 = vmatpush.msra.mxu0 %v3755
        %v3757 = vand.u32 %v3443, 4294901760
        %v3758 = vsub.f32 %v3443, %v3757
        %v3759 = vand.u32 %v3758, 4294901760
        %v3760 = vsub.f32 %v3758, %v3759
        %v3761 = vand.u32 %v3760, 4294901760
        %3762 = vmatpush.msra.mxu0 %v3761
        %v3763 = vand.u32 %v3439, 4294901760
        %v3764 = vsub.f32 %v3439, %v3763
        %v3765 = vand.u32 %v3764, 4294901760
        %v3766 = vsub.f32 %v3764, %v3765
        %v3767 = vand.u32 %v3766, 4294901760
        %3768 = vmatpush.msra.mxu0 %v3767
        %v3769 = vand.u32 %v3435, 4294901760
        %v3770 = vsub.f32 %v3435, %v3769
        %v3771 = vand.u32 %v3770, 4294901760
        %v3772 = vsub.f32 %v3770, %v3771
        %v3773 = vand.u32 %v3772, 4294901760
        %3774 = vmatpush.msra.mxu0 %v3773
        %v3775 = vand.u32 %v3431, 4294901760
        %v3776 = vsub.f32 %v3431, %v3775
        %v3777 = vand.u32 %v3776, 4294901760
        %v3778 = vsub.f32 %v3776, %v3777
        %v3779 = vand.u32 %v3778, 4294901760
        %3780 = vmatpush.msra.mxu0 %v3779
        %v3781 = vand.u32 %v3427, 4294901760
        %v3782 = vsub.f32 %v3427, %v3781
        %v3783 = vand.u32 %v3782, 4294901760
        %v3784 = vsub.f32 %v3782, %v3783
        %v3785 = vand.u32 %v3784, 4294901760
        %3786 = vmatpush.msra.mxu0 %v3785
        %v3787 = vand.u32 %v3459, 4294901760
        %3788 = vmatmul.f32.gmra.mxu0 %v3787
        %v3789 = vpop.f32.mrf.mxu0
        %v3790 = vadd.f32 %v3729, %v3789
        %3791 = vdwg.mxu0
        %3792 = vmatpush.msra.mxu0 0.0
        %3793 = vmatpush.msra.mxu0 0.0
        %3794 = vmatpush.msra.mxu0 0.0
        %3795 = vmatpush.msra.mxu0 0.0
        %3796 = vmatpush.msra.mxu0 0.0
        %3797 = vmatpush.msra.mxu0 0.0
        %3798 = vmatpush.msra.mxu0 0.0
        %3799 = vmatpush.msra.mxu0 0.0
        %v3800 = vand.u32 %v3455, 4294901760
        %v3801 = vsub.f32 %v3455, %v3800
        %3802 = vmatpush.msra.mxu0 %v3801
        %v3803 = vand.u32 %v3451, 4294901760
        %v3804 = vsub.f32 %v3451, %v3803
        %3805 = vmatpush.msra.mxu0 %v3804
        %v3806 = vand.u32 %v3447, 4294901760
        %v3807 = vsub.f32 %v3447, %v3806
        %3808 = vmatpush.msra.mxu0 %v3807
        %v3809 = vand.u32 %v3443, 4294901760
        %v3810 = vsub.f32 %v3443, %v3809
        %3811 = vmatpush.msra.mxu0 %v3810
        %v3812 = vand.u32 %v3439, 4294901760
        %v3813 = vsub.f32 %v3439, %v3812
        %3814 = vmatpush.msra.mxu0 %v3813
        %v3815 = vand.u32 %v3435, 4294901760
        %v3816 = vsub.f32 %v3435, %v3815
        %3817 = vmatpush.msra.mxu0 %v3816
        %v3818 = vand.u32 %v3431, 4294901760
        %v3819 = vsub.f32 %v3431, %v3818
        %3820 = vmatpush.msra.mxu0 %v3819
        %v3821 = vand.u32 %v3427, 4294901760
        %v3822 = vsub.f32 %v3427, %v3821
        %3823 = vmatpush.msra.mxu0 %v3822
        %v3824 = vand.u32 %v3459, 4294901760
        %v3825 = vsub.f32 %v3459, %v3824
        %3826 = vmatmul.f32.gmra.mxu0 %v3825
        %v3827 = vpop.f32.mrf.mxu0
        %v3828 = vadd.f32 %v3790, %v3827
        %3829 = vdwg.mxu0
        %3830 = vmatpush.msra.mxu0 0.0
        %3831 = vmatpush.msra.mxu0 0.0
        %3832 = vmatpush.msra.mxu0 0.0
        %3833 = vmatpush.msra.mxu0 0.0
        %3834 = vmatpush.msra.mxu0 0.0
        %3835 = vmatpush.msra.mxu0 0.0
        %3836 = vmatpush.msra.mxu0 0.0
        %3837 = vmatpush.msra.mxu0 0.0
        %v3838 = vand.u32 %v3455, 4294901760
        %3839 = vmatpush.msra.mxu0 %v3838
        %v3840 = vand.u32 %v3451, 4294901760
        %3841 = vmatpush.msra.mxu0 %v3840
        %v3842 = vand.u32 %v3447, 4294901760
        %3843 = vmatpush.msra.mxu0 %v3842
        %v3844 = vand.u32 %v3443, 4294901760
        %3845 = vmatpush.msra.mxu0 %v3844
        %v3846 = vand.u32 %v3439, 4294901760
        %3847 = vmatpush.msra.mxu0 %v3846
        %v3848 = vand.u32 %v3435, 4294901760
        %3849 = vmatpush.msra.mxu0 %v3848
        %v3850 = vand.u32 %v3431, 4294901760
        %3851 = vmatpush.msra.mxu0 %v3850
        %v3852 = vand.u32 %v3427, 4294901760
        %3853 = vmatpush.msra.mxu0 %v3852
        %v3854 = vand.u32 %v3459, 4294901760
        %v3855 = vsub.f32 %v3459, %v3854
        %v3856 = vand.u32 %v3855, 4294901760
        %3857 = vmatmul.f32.gmra.mxu0 %v3856
        %v3858 = vpop.f32.mrf.mxu0
        %v3859 = vadd.f32 %v3828, %v3858
        %3860 = vdwg.mxu0
        %3861 = vmatpush.msra.mxu0 0.0
        %3862 = vmatpush.msra.mxu0 0.0
        %3863 = vmatpush.msra.mxu0 0.0
        %3864 = vmatpush.msra.mxu0 0.0
        %3865 = vmatpush.msra.mxu0 0.0
        %3866 = vmatpush.msra.mxu0 0.0
        %3867 = vmatpush.msra.mxu0 0.0
        %3868 = vmatpush.msra.mxu0 0.0
        %v3869 = vand.u32 %v3455, 4294901760
        %v3870 = vsub.f32 %v3455, %v3869
        %v3871 = vand.u32 %v3870, 4294901760
        %3872 = vmatpush.msra.mxu0 %v3871
        %v3873 = vand.u32 %v3451, 4294901760
        %v3874 = vsub.f32 %v3451, %v3873
        %v3875 = vand.u32 %v3874, 4294901760
        %3876 = vmatpush.msra.mxu0 %v3875
        %v3877 = vand.u32 %v3447, 4294901760
        %v3878 = vsub.f32 %v3447, %v3877
        %v3879 = vand.u32 %v3878, 4294901760
        %3880 = vmatpush.msra.mxu0 %v3879
        %v3881 = vand.u32 %v3443, 4294901760
        %v3882 = vsub.f32 %v3443, %v3881
        %v3883 = vand.u32 %v3882, 4294901760
        %3884 = vmatpush.msra.mxu0 %v3883
        %v3885 = vand.u32 %v3439, 4294901760
        %v3886 = vsub.f32 %v3439, %v3885
        %v3887 = vand.u32 %v3886, 4294901760
        %3888 = vmatpush.msra.mxu0 %v3887
        %v3889 = vand.u32 %v3435, 4294901760
        %v3890 = vsub.f32 %v3435, %v3889
        %v3891 = vand.u32 %v3890, 4294901760
        %3892 = vmatpush.msra.mxu0 %v3891
        %v3893 = vand.u32 %v3431, 4294901760
        %v3894 = vsub.f32 %v3431, %v3893
        %v3895 = vand.u32 %v3894, 4294901760
        %3896 = vmatpush.msra.mxu0 %v3895
        %v3897 = vand.u32 %v3427, 4294901760
        %v3898 = vsub.f32 %v3427, %v3897
        %v3899 = vand.u32 %v3898, 4294901760
        %3900 = vmatpush.msra.mxu0 %v3899
        %v3901 = vand.u32 %v3459, 4294901760
        %3902 = vmatmul.f32.gmra.mxu0 %v3901
        %v3903 = vpop.f32.mrf.mxu0
        %v3904 = vadd.f32 %v3859, %v3903
        %3905 = vdwg.mxu0
        %3906 = vmatpush.msra.mxu0 0.0
        %3907 = vmatpush.msra.mxu0 0.0
        %3908 = vmatpush.msra.mxu0 0.0
        %3909 = vmatpush.msra.mxu0 0.0
        %3910 = vmatpush.msra.mxu0 0.0
        %3911 = vmatpush.msra.mxu0 0.0
        %3912 = vmatpush.msra.mxu0 0.0
        %3913 = vmatpush.msra.mxu0 0.0
        %v3914 = vand.u32 %v3455, 4294901760
        %3915 = vmatpush.msra.mxu0 %v3914
        %v3916 = vand.u32 %v3451, 4294901760
        %3917 = vmatpush.msra.mxu0 %v3916
        %v3918 = vand.u32 %v3447, 4294901760
        %3919 = vmatpush.msra.mxu0 %v3918
        %v3920 = vand.u32 %v3443, 4294901760
        %3921 = vmatpush.msra.mxu0 %v3920
        %v3922 = vand.u32 %v3439, 4294901760
        %3923 = vmatpush.msra.mxu0 %v3922
        %v3924 = vand.u32 %v3435, 4294901760
        %3925 = vmatpush.msra.mxu0 %v3924
        %v3926 = vand.u32 %v3431, 4294901760
        %3927 = vmatpush.msra.mxu0 %v3926
        %v3928 = vand.u32 %v3427, 4294901760
        %3929 = vmatpush.msra.mxu0 %v3928
        %v3930 = vand.u32 %v3459, 4294901760
        %3931 = vmatmul.f32.gmra.mxu0 %v3930
        %v3932 = vpop.f32.mrf.mxu0
        %v3933 = vadd.f32 %v3904, %v3932
        %3934 = vdwg.mxu0
        %3935 = vmatpush.msra.mxu0 0.0
        %3936 = vmatpush.msra.mxu0 0.0
        %3937 = vmatpush.msra.mxu0 0.0
        %3938 = vmatpush.msra.mxu0 0.0
        %3939 = vmatpush.msra.mxu0 0.0
        %3940 = vmatpush.msra.mxu0 0.0
        %3941 = vmatpush.msra.mxu0 0.0
        %3942 = vmatpush.msra.mxu0 0.0
        %v3943 = vand.u32 %v3456, 4294901760
        %3944 = vmatpush.msra.mxu0 %v3943
        %v3945 = vand.u32 %v3452, 4294901760
        %3946 = vmatpush.msra.mxu0 %v3945
        %v3947 = vand.u32 %v3448, 4294901760
        %3948 = vmatpush.msra.mxu0 %v3947
        %v3949 = vand.u32 %v3444, 4294901760
        %3950 = vmatpush.msra.mxu0 %v3949
        %v3951 = vand.u32 %v3440, 4294901760
        %3952 = vmatpush.msra.mxu0 %v3951
        %v3953 = vand.u32 %v3436, 4294901760
        %3954 = vmatpush.msra.mxu0 %v3953
        %v3955 = vand.u32 %v3432, 4294901760
        %3956 = vmatpush.msra.mxu0 %v3955
        %v3957 = vand.u32 %v3428, 4294901760
        %3958 = vmatpush.msra.mxu0 %v3957
        %v3959 = vand.u32 %v3459, 4294901760
        %v3960 = vsub.f32 %v3459, %v3959
        %v3961 = vand.u32 %v3960, 4294901760
        %v3962 = vsub.f32 %v3960, %v3961
        %v3963 = vand.u32 %v3962, 4294901760
        %3964 = vmatmul.f32.gmra.mxu0 %v3963
        %v3965 = vpop.f32.mrf.mxu0
        %v3966 = vadd.f32 0.0, %v3965
        %3967 = vdwg.mxu0
        %3968 = vmatpush.msra.mxu0 0.0
        %3969 = vmatpush.msra.mxu0 0.0
        %3970 = vmatpush.msra.mxu0 0.0
        %3971 = vmatpush.msra.mxu0 0.0
        %3972 = vmatpush.msra.mxu0 0.0
        %3973 = vmatpush.msra.mxu0 0.0
        %3974 = vmatpush.msra.mxu0 0.0
        %3975 = vmatpush.msra.mxu0 0.0
        %v3976 = vand.u32 %v3456, 4294901760
        %v3977 = vsub.f32 %v3456, %v3976
        %v3978 = vand.u32 %v3977, 4294901760
        %v3979 = vsub.f32 %v3977, %v3978
        %v3980 = vand.u32 %v3979, 4294901760
        %3981 = vmatpush.msra.mxu0 %v3980
        %v3982 = vand.u32 %v3452, 4294901760
        %v3983 = vsub.f32 %v3452, %v3982
        %v3984 = vand.u32 %v3983, 4294901760
        %v3985 = vsub.f32 %v3983, %v3984
        %v3986 = vand.u32 %v3985, 4294901760
        %3987 = vmatpush.msra.mxu0 %v3986
        %v3988 = vand.u32 %v3448, 4294901760
        %v3989 = vsub.f32 %v3448, %v3988
        %v3990 = vand.u32 %v3989, 4294901760
        %v3991 = vsub.f32 %v3989, %v3990
        %v3992 = vand.u32 %v3991, 4294901760
        %3993 = vmatpush.msra.mxu0 %v3992
        %v3994 = vand.u32 %v3444, 4294901760
        %v3995 = vsub.f32 %v3444, %v3994
        %v3996 = vand.u32 %v3995, 4294901760
        %v3997 = vsub.f32 %v3995, %v3996
        %v3998 = vand.u32 %v3997, 4294901760
        %3999 = vmatpush.msra.mxu0 %v3998
        %v4000 = vand.u32 %v3440, 4294901760
        %v4001 = vsub.f32 %v3440, %v4000
        %v4002 = vand.u32 %v4001, 4294901760
        %v4003 = vsub.f32 %v4001, %v4002
        %v4004 = vand.u32 %v4003, 4294901760
        %4005 = vmatpush.msra.mxu0 %v4004
        %v4006 = vand.u32 %v3436, 4294901760
        %v4007 = vsub.f32 %v3436, %v4006
        %v4008 = vand.u32 %v4007, 4294901760
        %v4009 = vsub.f32 %v4007, %v4008
        %v4010 = vand.u32 %v4009, 4294901760
        %4011 = vmatpush.msra.mxu0 %v4010
        %v4012 = vand.u32 %v3432, 4294901760
        %v4013 = vsub.f32 %v3432, %v4012
        %v4014 = vand.u32 %v4013, 4294901760
        %v4015 = vsub.f32 %v4013, %v4014
        %v4016 = vand.u32 %v4015, 4294901760
        %4017 = vmatpush.msra.mxu0 %v4016
        %v4018 = vand.u32 %v3428, 4294901760
        %v4019 = vsub.f32 %v3428, %v4018
        %v4020 = vand.u32 %v4019, 4294901760
        %v4021 = vsub.f32 %v4019, %v4020
        %v4022 = vand.u32 %v4021, 4294901760
        %4023 = vmatpush.msra.mxu0 %v4022
        %v4024 = vand.u32 %v3459, 4294901760
        %4025 = vmatmul.f32.gmra.mxu0 %v4024
        %v4026 = vpop.f32.mrf.mxu0
        %v4027 = vadd.f32 %v3966, %v4026
        %4028 = vdwg.mxu0
        %4029 = vmatpush.msra.mxu0 0.0
        %4030 = vmatpush.msra.mxu0 0.0
        %4031 = vmatpush.msra.mxu0 0.0
        %4032 = vmatpush.msra.mxu0 0.0
        %4033 = vmatpush.msra.mxu0 0.0
        %4034 = vmatpush.msra.mxu0 0.0
        %4035 = vmatpush.msra.mxu0 0.0
        %4036 = vmatpush.msra.mxu0 0.0
        %v4037 = vand.u32 %v3456, 4294901760
        %v4038 = vsub.f32 %v3456, %v4037
        %4039 = vmatpush.msra.mxu0 %v4038
        %v4040 = vand.u32 %v3452, 4294901760
        %v4041 = vsub.f32 %v3452, %v4040
        %4042 = vmatpush.msra.mxu0 %v4041
        %v4043 = vand.u32 %v3448, 4294901760
        %v4044 = vsub.f32 %v3448, %v4043
        %4045 = vmatpush.msra.mxu0 %v4044
        %v4046 = vand.u32 %v3444, 4294901760
        %v4047 = vsub.f32 %v3444, %v4046
        %4048 = vmatpush.msra.mxu0 %v4047
        %v4049 = vand.u32 %v3440, 4294901760
        %v4050 = vsub.f32 %v3440, %v4049
        %4051 = vmatpush.msra.mxu0 %v4050
        %v4052 = vand.u32 %v3436, 4294901760
        %v4053 = vsub.f32 %v3436, %v4052
        %4054 = vmatpush.msra.mxu0 %v4053
        %v4055 = vand.u32 %v3432, 4294901760
        %v4056 = vsub.f32 %v3432, %v4055
        %4057 = vmatpush.msra.mxu0 %v4056
        %v4058 = vand.u32 %v3428, 4294901760
        %v4059 = vsub.f32 %v3428, %v4058
        %4060 = vmatpush.msra.mxu0 %v4059
        %v4061 = vand.u32 %v3459, 4294901760
        %v4062 = vsub.f32 %v3459, %v4061
        %4063 = vmatmul.f32.gmra.mxu0 %v4062
        %v4064 = vpop.f32.mrf.mxu0
        %v4065 = vadd.f32 %v4027, %v4064
        %4066 = vdwg.mxu0
        %4067 = vmatpush.msra.mxu0 0.0
        %4068 = vmatpush.msra.mxu0 0.0
        %4069 = vmatpush.msra.mxu0 0.0
        %4070 = vmatpush.msra.mxu0 0.0
        %4071 = vmatpush.msra.mxu0 0.0
        %4072 = vmatpush.msra.mxu0 0.0
        %4073 = vmatpush.msra.mxu0 0.0
        %4074 = vmatpush.msra.mxu0 0.0
        %v4075 = vand.u32 %v3456, 4294901760
        %4076 = vmatpush.msra.mxu0 %v4075
        %v4077 = vand.u32 %v3452, 4294901760
        %4078 = vmatpush.msra.mxu0 %v4077
        %v4079 = vand.u32 %v3448, 4294901760
        %4080 = vmatpush.msra.mxu0 %v4079
        %v4081 = vand.u32 %v3444, 4294901760
        %4082 = vmatpush.msra.mxu0 %v4081
        %v4083 = vand.u32 %v3440, 4294901760
        %4084 = vmatpush.msra.mxu0 %v4083
        %v4085 = vand.u32 %v3436, 4294901760
        %4086 = vmatpush.msra.mxu0 %v4085
        %v4087 = vand.u32 %v3432, 4294901760
        %4088 = vmatpush.msra.mxu0 %v4087
        %v4089 = vand.u32 %v3428, 4294901760
        %4090 = vmatpush.msra.mxu0 %v4089
        %v4091 = vand.u32 %v3459, 4294901760
        %v4092 = vsub.f32 %v3459, %v4091
        %v4093 = vand.u32 %v4092, 4294901760
        %4094 = vmatmul.f32.gmra.mxu0 %v4093
        %v4095 = vpop.f32.mrf.mxu0
        %v4096 = vadd.f32 %v4065, %v4095
        %4097 = vdwg.mxu0
        %4098 = vmatpush.msra.mxu0 0.0
        %4099 = vmatpush.msra.mxu0 0.0
        %4100 = vmatpush.msra.mxu0 0.0
        %4101 = vmatpush.msra.mxu0 0.0
        %4102 = vmatpush.msra.mxu0 0.0
        %4103 = vmatpush.msra.mxu0 0.0
        %4104 = vmatpush.msra.mxu0 0.0
        %4105 = vmatpush.msra.mxu0 0.0
        %v4106 = vand.u32 %v3456, 4294901760
        %v4107 = vsub.f32 %v3456, %v4106
        %v4108 = vand.u32 %v4107, 4294901760
        %4109 = vmatpush.msra.mxu0 %v4108
        %v4110 = vand.u32 %v3452, 4294901760
        %v4111 = vsub.f32 %v3452, %v4110
        %v4112 = vand.u32 %v4111, 4294901760
        %4113 = vmatpush.msra.mxu0 %v4112
        %v4114 = vand.u32 %v3448, 4294901760
        %v4115 = vsub.f32 %v3448, %v4114
        %v4116 = vand.u32 %v4115, 4294901760
        %4117 = vmatpush.msra.mxu0 %v4116
        %v4118 = vand.u32 %v3444, 4294901760
        %v4119 = vsub.f32 %v3444, %v4118
        %v4120 = vand.u32 %v4119, 4294901760
        %4121 = vmatpush.msra.mxu0 %v4120
        %v4122 = vand.u32 %v3440, 4294901760
        %v4123 = vsub.f32 %v3440, %v4122
        %v4124 = vand.u32 %v4123, 4294901760
        %4125 = vmatpush.msra.mxu0 %v4124
        %v4126 = vand.u32 %v3436, 4294901760
        %v4127 = vsub.f32 %v3436, %v4126
        %v4128 = vand.u32 %v4127, 4294901760
        %4129 = vmatpush.msra.mxu0 %v4128
        %v4130 = vand.u32 %v3432, 4294901760
        %v4131 = vsub.f32 %v3432, %v4130
        %v4132 = vand.u32 %v4131, 4294901760
        %4133 = vmatpush.msra.mxu0 %v4132
        %v4134 = vand.u32 %v3428, 4294901760
        %v4135 = vsub.f32 %v3428, %v4134
        %v4136 = vand.u32 %v4135, 4294901760
        %4137 = vmatpush.msra.mxu0 %v4136
        %v4138 = vand.u32 %v3459, 4294901760
        %4139 = vmatmul.f32.gmra.mxu0 %v4138
        %v4140 = vpop.f32.mrf.mxu0
        %v4141 = vadd.f32 %v4096, %v4140
        %4142 = vdwg.mxu0
        %4143 = vmatpush.msra.mxu0 0.0
        %4144 = vmatpush.msra.mxu0 0.0
        %4145 = vmatpush.msra.mxu0 0.0
        %4146 = vmatpush.msra.mxu0 0.0
        %4147 = vmatpush.msra.mxu0 0.0
        %4148 = vmatpush.msra.mxu0 0.0
        %4149 = vmatpush.msra.mxu0 0.0
        %4150 = vmatpush.msra.mxu0 0.0
        %v4151 = vand.u32 %v3456, 4294901760
        %4152 = vmatpush.msra.mxu0 %v4151
        %v4153 = vand.u32 %v3452, 4294901760
        %4154 = vmatpush.msra.mxu0 %v4153
        %v4155 = vand.u32 %v3448, 4294901760
        %4156 = vmatpush.msra.mxu0 %v4155
        %v4157 = vand.u32 %v3444, 4294901760
        %4158 = vmatpush.msra.mxu0 %v4157
        %v4159 = vand.u32 %v3440, 4294901760
        %4160 = vmatpush.msra.mxu0 %v4159
        %v4161 = vand.u32 %v3436, 4294901760
        %4162 = vmatpush.msra.mxu0 %v4161
        %v4163 = vand.u32 %v3432, 4294901760
        %4164 = vmatpush.msra.mxu0 %v4163
        %v4165 = vand.u32 %v3428, 4294901760
        %4166 = vmatpush.msra.mxu0 %v4165
        %v4167 = vand.u32 %v3459, 4294901760
        %4168 = vmatmul.f32.gmra.mxu0 %v4167
        %v4169 = vpop.f32.mrf.mxu0
        %v4170 = vadd.f32 %v4141, %v4169
        %4171 = vdwg.mxu0
        %4172 = vmatpush.msra.mxu0 0.0
        %4173 = vmatpush.msra.mxu0 0.0
        %4174 = vmatpush.msra.mxu0 0.0
        %4175 = vmatpush.msra.mxu0 0.0
        %4176 = vmatpush.msra.mxu0 0.0
        %4177 = vmatpush.msra.mxu0 0.0
        %4178 = vmatpush.msra.mxu0 0.0
        %4179 = vmatpush.msra.mxu0 0.0
        %v4180 = vand.u32 %v3457, 4294901760
        %4181 = vmatpush.msra.mxu0 %v4180
        %v4182 = vand.u32 %v3453, 4294901760
        %4183 = vmatpush.msra.mxu0 %v4182
        %v4184 = vand.u32 %v3449, 4294901760
        %4185 = vmatpush.msra.mxu0 %v4184
        %v4186 = vand.u32 %v3445, 4294901760
        %4187 = vmatpush.msra.mxu0 %v4186
        %v4188 = vand.u32 %v3441, 4294901760
        %4189 = vmatpush.msra.mxu0 %v4188
        %v4190 = vand.u32 %v3437, 4294901760
        %4191 = vmatpush.msra.mxu0 %v4190
        %v4192 = vand.u32 %v3433, 4294901760
        %4193 = vmatpush.msra.mxu0 %v4192
        %v4194 = vand.u32 %v3429, 4294901760
        %4195 = vmatpush.msra.mxu0 %v4194
        %v4196 = vand.u32 %v3459, 4294901760
        %v4197 = vsub.f32 %v3459, %v4196
        %v4198 = vand.u32 %v4197, 4294901760
        %v4199 = vsub.f32 %v4197, %v4198
        %v4200 = vand.u32 %v4199, 4294901760
        %4201 = vmatmul.f32.gmra.mxu0 %v4200
        %v4202 = vpop.f32.mrf.mxu0
        %v4203 = vadd.f32 0.0, %v4202
        %4204 = vdwg.mxu0
        %4205 = vmatpush.msra.mxu0 0.0
        %4206 = vmatpush.msra.mxu0 0.0
        %4207 = vmatpush.msra.mxu0 0.0
        %4208 = vmatpush.msra.mxu0 0.0
        %4209 = vmatpush.msra.mxu0 0.0
        %4210 = vmatpush.msra.mxu0 0.0
        %4211 = vmatpush.msra.mxu0 0.0
        %4212 = vmatpush.msra.mxu0 0.0
        %v4213 = vand.u32 %v3457, 4294901760
        %v4214 = vsub.f32 %v3457, %v4213
        %v4215 = vand.u32 %v4214, 4294901760
        %v4216 = vsub.f32 %v4214, %v4215
        %v4217 = vand.u32 %v4216, 4294901760
        %4218 = vmatpush.msra.mxu0 %v4217
        %v4219 = vand.u32 %v3453, 4294901760
        %v4220 = vsub.f32 %v3453, %v4219
        %v4221 = vand.u32 %v4220, 4294901760
        %v4222 = vsub.f32 %v4220, %v4221
        %v4223 = vand.u32 %v4222, 4294901760
        %4224 = vmatpush.msra.mxu0 %v4223
        %v4225 = vand.u32 %v3449, 4294901760
        %v4226 = vsub.f32 %v3449, %v4225
        %v4227 = vand.u32 %v4226, 4294901760
        %v4228 = vsub.f32 %v4226, %v4227
        %v4229 = vand.u32 %v4228, 4294901760
        %4230 = vmatpush.msra.mxu0 %v4229
        %v4231 = vand.u32 %v3445, 4294901760
        %v4232 = vsub.f32 %v3445, %v4231
        %v4233 = vand.u32 %v4232, 4294901760
        %v4234 = vsub.f32 %v4232, %v4233
        %v4235 = vand.u32 %v4234, 4294901760
        %4236 = vmatpush.msra.mxu0 %v4235
        %v4237 = vand.u32 %v3441, 4294901760
        %v4238 = vsub.f32 %v3441, %v4237
        %v4239 = vand.u32 %v4238, 4294901760
        %v4240 = vsub.f32 %v4238, %v4239
        %v4241 = vand.u32 %v4240, 4294901760
        %4242 = vmatpush.msra.mxu0 %v4241
        %v4243 = vand.u32 %v3437, 4294901760
        %v4244 = vsub.f32 %v3437, %v4243
        %v4245 = vand.u32 %v4244, 4294901760
        %v4246 = vsub.f32 %v4244, %v4245
        %v4247 = vand.u32 %v4246, 4294901760
        %4248 = vmatpush.msra.mxu0 %v4247
        %v4249 = vand.u32 %v3433, 4294901760
        %v4250 = vsub.f32 %v3433, %v4249
        %v4251 = vand.u32 %v4250, 4294901760
        %v4252 = vsub.f32 %v4250, %v4251
        %v4253 = vand.u32 %v4252, 4294901760
        %4254 = vmatpush.msra.mxu0 %v4253
        %v4255 = vand.u32 %v3429, 4294901760
        %v4256 = vsub.f32 %v3429, %v4255
        %v4257 = vand.u32 %v4256, 4294901760
        %v4258 = vsub.f32 %v4256, %v4257
        %v4259 = vand.u32 %v4258, 4294901760
        %4260 = vmatpush.msra.mxu0 %v4259
        %v4261 = vand.u32 %v3459, 4294901760
        %4262 = vmatmul.f32.gmra.mxu0 %v4261
        %v4263 = vpop.f32.mrf.mxu0
        %v4264 = vadd.f32 %v4203, %v4263
        %4265 = vdwg.mxu0
        %4266 = vmatpush.msra.mxu0 0.0
        %4267 = vmatpush.msra.mxu0 0.0
        %4268 = vmatpush.msra.mxu0 0.0
        %4269 = vmatpush.msra.mxu0 0.0
        %4270 = vmatpush.msra.mxu0 0.0
        %4271 = vmatpush.msra.mxu0 0.0
        %4272 = vmatpush.msra.mxu0 0.0
        %4273 = vmatpush.msra.mxu0 0.0
        %v4274 = vand.u32 %v3457, 4294901760
        %v4275 = vsub.f32 %v3457, %v4274
        %4276 = vmatpush.msra.mxu0 %v4275
        %v4277 = vand.u32 %v3453, 4294901760
        %v4278 = vsub.f32 %v3453, %v4277
        %4279 = vmatpush.msra.mxu0 %v4278
        %v4280 = vand.u32 %v3449, 4294901760
        %v4281 = vsub.f32 %v3449, %v4280
        %4282 = vmatpush.msra.mxu0 %v4281
        %v4283 = vand.u32 %v3445, 4294901760
        %v4284 = vsub.f32 %v3445, %v4283
        %4285 = vmatpush.msra.mxu0 %v4284
        %v4286 = vand.u32 %v3441, 4294901760
        %v4287 = vsub.f32 %v3441, %v4286
        %4288 = vmatpush.msra.mxu0 %v4287
        %v4289 = vand.u32 %v3437, 4294901760
        %v4290 = vsub.f32 %v3437, %v4289
        %4291 = vmatpush.msra.mxu0 %v4290
        %v4292 = vand.u32 %v3433, 4294901760
        %v4293 = vsub.f32 %v3433, %v4292
        %4294 = vmatpush.msra.mxu0 %v4293
        %v4295 = vand.u32 %v3429, 4294901760
        %v4296 = vsub.f32 %v3429, %v4295
        %4297 = vmatpush.msra.mxu0 %v4296
        %v4298 = vand.u32 %v3459, 4294901760
        %v4299 = vsub.f32 %v3459, %v4298
        %4300 = vmatmul.f32.gmra.mxu0 %v4299
        %v4301 = vpop.f32.mrf.mxu0
        %v4302 = vadd.f32 %v4264, %v4301
        %4303 = vdwg.mxu0
        %4304 = vmatpush.msra.mxu0 0.0
        %4305 = vmatpush.msra.mxu0 0.0
        %4306 = vmatpush.msra.mxu0 0.0
        %4307 = vmatpush.msra.mxu0 0.0
        %4308 = vmatpush.msra.mxu0 0.0
        %4309 = vmatpush.msra.mxu0 0.0
        %4310 = vmatpush.msra.mxu0 0.0
        %4311 = vmatpush.msra.mxu0 0.0
        %v4312 = vand.u32 %v3457, 4294901760
        %4313 = vmatpush.msra.mxu0 %v4312
        %v4314 = vand.u32 %v3453, 4294901760
        %4315 = vmatpush.msra.mxu0 %v4314
        %v4316 = vand.u32 %v3449, 4294901760
        %4317 = vmatpush.msra.mxu0 %v4316
        %v4318 = vand.u32 %v3445, 4294901760
        %4319 = vmatpush.msra.mxu0 %v4318
        %v4320 = vand.u32 %v3441, 4294901760
        %4321 = vmatpush.msra.mxu0 %v4320
        %v4322 = vand.u32 %v3437, 4294901760
        %4323 = vmatpush.msra.mxu0 %v4322
        %v4324 = vand.u32 %v3433, 4294901760
        %4325 = vmatpush.msra.mxu0 %v4324
        %v4326 = vand.u32 %v3429, 4294901760
        %4327 = vmatpush.msra.mxu0 %v4326
        %v4328 = vand.u32 %v3459, 4294901760
        %v4329 = vsub.f32 %v3459, %v4328
        %v4330 = vand.u32 %v4329, 4294901760
        %4331 = vmatmul.f32.gmra.mxu0 %v4330
        %v4332 = vpop.f32.mrf.mxu0
        %v4333 = vadd.f32 %v4302, %v4332
        %4334 = vdwg.mxu0
        %4335 = vmatpush.msra.mxu0 0.0
        %4336 = vmatpush.msra.mxu0 0.0
        %4337 = vmatpush.msra.mxu0 0.0
        %4338 = vmatpush.msra.mxu0 0.0
        %4339 = vmatpush.msra.mxu0 0.0
        %4340 = vmatpush.msra.mxu0 0.0
        %4341 = vmatpush.msra.mxu0 0.0
        %4342 = vmatpush.msra.mxu0 0.0
        %v4343 = vand.u32 %v3457, 4294901760
        %v4344 = vsub.f32 %v3457, %v4343
        %v4345 = vand.u32 %v4344, 4294901760
        %4346 = vmatpush.msra.mxu0 %v4345
        %v4347 = vand.u32 %v3453, 4294901760
        %v4348 = vsub.f32 %v3453, %v4347
        %v4349 = vand.u32 %v4348, 4294901760
        %4350 = vmatpush.msra.mxu0 %v4349
        %v4351 = vand.u32 %v3449, 4294901760
        %v4352 = vsub.f32 %v3449, %v4351
        %v4353 = vand.u32 %v4352, 4294901760
        %4354 = vmatpush.msra.mxu0 %v4353
        %v4355 = vand.u32 %v3445, 4294901760
        %v4356 = vsub.f32 %v3445, %v4355
        %v4357 = vand.u32 %v4356, 4294901760
        %4358 = vmatpush.msra.mxu0 %v4357
        %v4359 = vand.u32 %v3441, 4294901760
        %v4360 = vsub.f32 %v3441, %v4359
        %v4361 = vand.u32 %v4360, 4294901760
        %4362 = vmatpush.msra.mxu0 %v4361
        %v4363 = vand.u32 %v3437, 4294901760
        %v4364 = vsub.f32 %v3437, %v4363
        %v4365 = vand.u32 %v4364, 4294901760
        %4366 = vmatpush.msra.mxu0 %v4365
        %v4367 = vand.u32 %v3433, 4294901760
        %v4368 = vsub.f32 %v3433, %v4367
        %v4369 = vand.u32 %v4368, 4294901760
        %4370 = vmatpush.msra.mxu0 %v4369
        %v4371 = vand.u32 %v3429, 4294901760
        %v4372 = vsub.f32 %v3429, %v4371
        %v4373 = vand.u32 %v4372, 4294901760
        %4374 = vmatpush.msra.mxu0 %v4373
        %v4375 = vand.u32 %v3459, 4294901760
        %4376 = vmatmul.f32.gmra.mxu0 %v4375
        %v4377 = vpop.f32.mrf.mxu0
        %v4378 = vadd.f32 %v4333, %v4377
        %4379 = vdwg.mxu0
        %4380 = vmatpush.msra.mxu0 0.0
        %4381 = vmatpush.msra.mxu0 0.0
        %4382 = vmatpush.msra.mxu0 0.0
        %4383 = vmatpush.msra.mxu0 0.0
        %4384 = vmatpush.msra.mxu0 0.0
        %4385 = vmatpush.msra.mxu0 0.0
        %4386 = vmatpush.msra.mxu0 0.0
        %4387 = vmatpush.msra.mxu0 0.0
        %v4388 = vand.u32 %v3457, 4294901760
        %4389 = vmatpush.msra.mxu0 %v4388
        %v4390 = vand.u32 %v3453, 4294901760
        %4391 = vmatpush.msra.mxu0 %v4390
        %v4392 = vand.u32 %v3449, 4294901760
        %4393 = vmatpush.msra.mxu0 %v4392
        %v4394 = vand.u32 %v3445, 4294901760
        %4395 = vmatpush.msra.mxu0 %v4394
        %v4396 = vand.u32 %v3441, 4294901760
        %4397 = vmatpush.msra.mxu0 %v4396
        %v4398 = vand.u32 %v3437, 4294901760
        %4399 = vmatpush.msra.mxu0 %v4398
        %v4400 = vand.u32 %v3433, 4294901760
        %4401 = vmatpush.msra.mxu0 %v4400
        %v4402 = vand.u32 %v3429, 4294901760
        %4403 = vmatpush.msra.mxu0 %v4402
        %v4404 = vand.u32 %v3459, 4294901760
        %4405 = vmatmul.f32.gmra.mxu0 %v4404
        %v4406 = vpop.f32.mrf.mxu0
        %v4407 = vadd.f32 %v4378, %v4406
        %4408 = vdwg.mxu0
        %v4409 = vmul.f32 %v3696, %v1716
        %v4410 = vmul.f32 %v3933, %v1717
        %v4411 = vmul.f32 %v4170, %v1718
        %v4412 = vmul.f32 %v4407, %v1719
        %v4413 = vld [vmem:[%s7] sm:$0xff]
        %v4414 = vld [vmem:[%s7 + $0x8] sm:$0xff]
        %v4415 = vld [vmem:[%s7 + $0x10] sm:$0xff]
        %v4416 = vld [vmem:[%s7 + $0x18] sm:$0xff]
        %v4417 = vld [vmem:[%s7 + $0x20] sm:$0xff]
        %v4418 = vld [vmem:[%s7 + $0x28] sm:$0xff]
        %v4419 = vld [vmem:[%s7 + $0x30] sm:$0xff]
        %v4420 = vld [vmem:[%s7 + $0x38] sm:$0xff]
        %v4421 = vld [vmem:[%s7 + $0x40] sm:$0xff]
        %v4422 = vld [vmem:[%s7 + $0x48] sm:$0xff]
        %v4423 = vld [vmem:[%s7 + $0x50] sm:$0xff]
        %v4424 = vld [vmem:[%s7 + $0x58] sm:$0xff]
        %v4425 = vld [vmem:[%s7 + $0x60] sm:$0xff]
        %v4426 = vld [vmem:[%s7 + $0x68] sm:$0xff]
        %v4427 = vld [vmem:[%s7 + $0x70] sm:$0xff]
        %v4428 = vld [vmem:[%s7 + $0x78] sm:$0xff]
        %v4429 = vld [vmem:[%s7 + $0x80] sm:$0xff]
        %v4430 = vld [vmem:[%s7 + $0x88] sm:$0xff]
        %v4431 = vld [vmem:[%s7 + $0x90] sm:$0xff]
        %v4432 = vld [vmem:[%s7 + $0x98] sm:$0xff]
        %v4433 = vld [vmem:[%s7 + $0xa0] sm:$0xff]
        %v4434 = vld [vmem:[%s7 + $0xa8] sm:$0xff]
        %v4435 = vld [vmem:[%s7 + $0xb0] sm:$0xff]
        %v4436 = vld [vmem:[%s7 + $0xb8] sm:$0xff]
        %v4437 = vld [vmem:[%s7 + $0xc0] sm:$0xff]
        %v4438 = vld [vmem:[%s7 + $0xc8] sm:$0xff]
        %v4439 = vld [vmem:[%s7 + $0xd0] sm:$0xff]
        %v4440 = vld [vmem:[%s7 + $0xd8] sm:$0xff]
        %v4441 = vld [vmem:[%s7 + $0xe0] sm:$0xff]
        %v4442 = vld [vmem:[%s7 + $0xe8] sm:$0xff]
        %v4443 = vld [vmem:[%s7 + $0xf0] sm:$0xff]
        %v4444 = vld [vmem:[%s7 + $0xf8] sm:$0xff]
        %v4445 = vld [vmem:[%s7 + $0x100] sm:$0xff]
        %v4446 = vld [vmem:[%s7 + $0x108] sm:$0xff]
        %v4447 = vld [vmem:[%s7 + $0x110] sm:$0xff]
        %v4448 = vld [vmem:[%s7 + $0x118] sm:$0xff]
        %v4449 = vld [vmem:[%s7 + $0x120] sm:$0xff]
        %v4450 = vld [vmem:[%s7 + $0x128] sm:$0xff]
        %v4451 = vld [vmem:[%s7 + $0x130] sm:$0xff]
        %v4452 = vld [vmem:[%s7 + $0x138] sm:$0xff]
        %v4453 = vld [vmem:[%s7 + $0x140] sm:$0xff]
        %v4454 = vld [vmem:[%s7 + $0x148] sm:$0xff]
        %v4455 = vld [vmem:[%s7 + $0x150] sm:$0xff]
        %v4456 = vld [vmem:[%s7 + $0x158] sm:$0xff]
        %v4457 = vld [vmem:[%s7 + $0x160] sm:$0xff]
        %v4458 = vld [vmem:[%s7 + $0x168] sm:$0xff]
        %v4459 = vld [vmem:[%s7 + $0x170] sm:$0xff]
        %v4460 = vld [vmem:[%s7 + $0x178] sm:$0xff]
        %v4461 = vld [vmem:[%s7 + $0x180] sm:$0xff]
        %v4462 = vld [vmem:[%s7 + $0x188] sm:$0xff]
        %v4463 = vld [vmem:[%s7 + $0x190] sm:$0xff]
        %v4464 = vld [vmem:[%s7 + $0x198] sm:$0xff]
        %v4465 = vld [vmem:[%s7 + $0x1a0] sm:$0xff]
        %v4466 = vld [vmem:[%s7 + $0x1a8] sm:$0xff]
        %v4467 = vld [vmem:[%s7 + $0x1b0] sm:$0xff]
        %v4468 = vld [vmem:[%s7 + $0x1b8] sm:$0xff]
        %v4469 = vld [vmem:[%s7 + $0x1c0] sm:$0xff]
        %v4470 = vld [vmem:[%s7 + $0x1c8] sm:$0xff]
        %v4471 = vld [vmem:[%s7 + $0x1d0] sm:$0xff]
        %v4472 = vld [vmem:[%s7 + $0x1d8] sm:$0xff]
        %v4473 = vld [vmem:[%s7 + $0x1e0] sm:$0xff]
        %v4474 = vld [vmem:[%s7 + $0x1e8] sm:$0xff]
        %v4475 = vld [vmem:[%s7 + $0x1f0] sm:$0xff]
        %v4476 = vld [vmem:[%s7 + $0x1f8] sm:$0xff]
        %v4477 = vld [vmem:[%s8] sm:$0x1]
        %v4479 = vperm.slane %v4477, 0
        %v4481 = vand.u32 %v4428, 4294901760
        %4482 = vmatpush.msra.mxu0 %v4481
        %v4483 = vand.u32 %v4427, 4294901760
        %4484 = vmatpush.msra.mxu0 %v4483
        %v4485 = vand.u32 %v4426, 4294901760
        %4486 = vmatpush.msra.mxu0 %v4485
        %v4487 = vand.u32 %v4425, 4294901760
        %4488 = vmatpush.msra.mxu0 %v4487
        %v4489 = vand.u32 %v4424, 4294901760
        %4490 = vmatpush.msra.mxu0 %v4489
        %v4491 = vand.u32 %v4423, 4294901760
        %4492 = vmatpush.msra.mxu0 %v4491
        %v4493 = vand.u32 %v4422, 4294901760
        %4494 = vmatpush.msra.mxu0 %v4493
        %v4495 = vand.u32 %v4421, 4294901760
        %4496 = vmatpush.msra.mxu0 %v4495
        %v4497 = vand.u32 %v4420, 4294901760
        %4498 = vmatpush.msra.mxu0 %v4497
        %v4499 = vand.u32 %v4419, 4294901760
        %4500 = vmatpush.msra.mxu0 %v4499
        %v4501 = vand.u32 %v4418, 4294901760
        %4502 = vmatpush.msra.mxu0 %v4501
        %v4503 = vand.u32 %v4417, 4294901760
        %4504 = vmatpush.msra.mxu0 %v4503
        %v4505 = vand.u32 %v4416, 4294901760
        %4506 = vmatpush.msra.mxu0 %v4505
        %v4507 = vand.u32 %v4415, 4294901760
        %4508 = vmatpush.msra.mxu0 %v4507
        %v4509 = vand.u32 %v4414, 4294901760
        %4510 = vmatpush.msra.mxu0 %v4509
        %v4511 = vand.u32 %v4413, 4294901760
        %4512 = vmatpush.msra.mxu0 %v4511
        %v4513 = vand.u32 %v4409, 4294901760
        %v4514 = vsub.f32 %v4409, %v4513
        %v4515 = vand.u32 %v4514, 4294901760
        %v4516 = vsub.f32 %v4514, %v4515
        %v4517 = vand.u32 %v4516, 4294901760
        %4518 = vmatmul.f32.gmra.mxu0 %v4517
        %v4519 = vpop.f32.mrf.mxu0
        %v4520 = vadd.f32 %v4479, %v4519
        %4521 = vdwg.mxu0
        %v4522 = vand.u32 %v4428, 4294901760
        %v4523 = vsub.f32 %v4428, %v4522
        %v4524 = vand.u32 %v4523, 4294901760
        %v4525 = vsub.f32 %v4523, %v4524
        %v4526 = vand.u32 %v4525, 4294901760
        %4527 = vmatpush.msra.mxu0 %v4526
        %v4528 = vand.u32 %v4427, 4294901760
        %v4529 = vsub.f32 %v4427, %v4528
        %v4530 = vand.u32 %v4529, 4294901760
        %v4531 = vsub.f32 %v4529, %v4530
        %v4532 = vand.u32 %v4531, 4294901760
        %4533 = vmatpush.msra.mxu0 %v4532
        %v4534 = vand.u32 %v4426, 4294901760
        %v4535 = vsub.f32 %v4426, %v4534
        %v4536 = vand.u32 %v4535, 4294901760
        %v4537 = vsub.f32 %v4535, %v4536
        %v4538 = vand.u32 %v4537, 4294901760
        %4539 = vmatpush.msra.mxu0 %v4538
        %v4540 = vand.u32 %v4425, 4294901760
        %v4541 = vsub.f32 %v4425, %v4540
        %v4542 = vand.u32 %v4541, 4294901760
        %v4543 = vsub.f32 %v4541, %v4542
        %v4544 = vand.u32 %v4543, 4294901760
        %4545 = vmatpush.msra.mxu0 %v4544
        %v4546 = vand.u32 %v4424, 4294901760
        %v4547 = vsub.f32 %v4424, %v4546
        %v4548 = vand.u32 %v4547, 4294901760
        %v4549 = vsub.f32 %v4547, %v4548
        %v4550 = vand.u32 %v4549, 4294901760
        %4551 = vmatpush.msra.mxu0 %v4550
        %v4552 = vand.u32 %v4423, 4294901760
        %v4553 = vsub.f32 %v4423, %v4552
        %v4554 = vand.u32 %v4553, 4294901760
        %v4555 = vsub.f32 %v4553, %v4554
        %v4556 = vand.u32 %v4555, 4294901760
        %4557 = vmatpush.msra.mxu0 %v4556
        %v4558 = vand.u32 %v4422, 4294901760
        %v4559 = vsub.f32 %v4422, %v4558
        %v4560 = vand.u32 %v4559, 4294901760
        %v4561 = vsub.f32 %v4559, %v4560
        %v4562 = vand.u32 %v4561, 4294901760
        %4563 = vmatpush.msra.mxu0 %v4562
        %v4564 = vand.u32 %v4421, 4294901760
        %v4565 = vsub.f32 %v4421, %v4564
        %v4566 = vand.u32 %v4565, 4294901760
        %v4567 = vsub.f32 %v4565, %v4566
        %v4568 = vand.u32 %v4567, 4294901760
        %4569 = vmatpush.msra.mxu0 %v4568
        %v4570 = vand.u32 %v4420, 4294901760
        %v4571 = vsub.f32 %v4420, %v4570
        %v4572 = vand.u32 %v4571, 4294901760
        %v4573 = vsub.f32 %v4571, %v4572
        %v4574 = vand.u32 %v4573, 4294901760
        %4575 = vmatpush.msra.mxu0 %v4574
        %v4576 = vand.u32 %v4419, 4294901760
        %v4577 = vsub.f32 %v4419, %v4576
        %v4578 = vand.u32 %v4577, 4294901760
        %v4579 = vsub.f32 %v4577, %v4578
        %v4580 = vand.u32 %v4579, 4294901760
        %4581 = vmatpush.msra.mxu0 %v4580
        %v4582 = vand.u32 %v4418, 4294901760
        %v4583 = vsub.f32 %v4418, %v4582
        %v4584 = vand.u32 %v4583, 4294901760
        %v4585 = vsub.f32 %v4583, %v4584
        %v4586 = vand.u32 %v4585, 4294901760
        %4587 = vmatpush.msra.mxu0 %v4586
        %v4588 = vand.u32 %v4417, 4294901760
        %v4589 = vsub.f32 %v4417, %v4588
        %v4590 = vand.u32 %v4589, 4294901760
        %v4591 = vsub.f32 %v4589, %v4590
        %v4592 = vand.u32 %v4591, 4294901760
        %4593 = vmatpush.msra.mxu0 %v4592
        %v4594 = vand.u32 %v4416, 4294901760
        %v4595 = vsub.f32 %v4416, %v4594
        %v4596 = vand.u32 %v4595, 4294901760
        %v4597 = vsub.f32 %v4595, %v4596
        %v4598 = vand.u32 %v4597, 4294901760
        %4599 = vmatpush.msra.mxu0 %v4598
        %v4600 = vand.u32 %v4415, 4294901760
        %v4601 = vsub.f32 %v4415, %v4600
        %v4602 = vand.u32 %v4601, 4294901760
        %v4603 = vsub.f32 %v4601, %v4602
        %v4604 = vand.u32 %v4603, 4294901760
        %4605 = vmatpush.msra.mxu0 %v4604
        %v4606 = vand.u32 %v4414, 4294901760
        %v4607 = vsub.f32 %v4414, %v4606
        %v4608 = vand.u32 %v4607, 4294901760
        %v4609 = vsub.f32 %v4607, %v4608
        %v4610 = vand.u32 %v4609, 4294901760
        %4611 = vmatpush.msra.mxu0 %v4610
        %v4612 = vand.u32 %v4413, 4294901760
        %v4613 = vsub.f32 %v4413, %v4612
        %v4614 = vand.u32 %v4613, 4294901760
        %v4615 = vsub.f32 %v4613, %v4614
        %v4616 = vand.u32 %v4615, 4294901760
        %4617 = vmatpush.msra.mxu0 %v4616
        %v4618 = vand.u32 %v4409, 4294901760
        %4619 = vmatmul.f32.gmra.mxu0 %v4618
        %v4620 = vpop.f32.mrf.mxu0
        %v4621 = vadd.f32 %v4520, %v4620
        %4622 = vdwg.mxu0
        %v4623 = vand.u32 %v4428, 4294901760
        %v4624 = vsub.f32 %v4428, %v4623
        %4625 = vmatpush.msra.mxu0 %v4624
        %v4626 = vand.u32 %v4427, 4294901760
        %v4627 = vsub.f32 %v4427, %v4626
        %4628 = vmatpush.msra.mxu0 %v4627
        %v4629 = vand.u32 %v4426, 4294901760
        %v4630 = vsub.f32 %v4426, %v4629
        %4631 = vmatpush.msra.mxu0 %v4630
        %v4632 = vand.u32 %v4425, 4294901760
        %v4633 = vsub.f32 %v4425, %v4632
        %4634 = vmatpush.msra.mxu0 %v4633
        %v4635 = vand.u32 %v4424, 4294901760
        %v4636 = vsub.f32 %v4424, %v4635
        %4637 = vmatpush.msra.mxu0 %v4636
        %v4638 = vand.u32 %v4423, 4294901760
        %v4639 = vsub.f32 %v4423, %v4638
        %4640 = vmatpush.msra.mxu0 %v4639
        %v4641 = vand.u32 %v4422, 4294901760
        %v4642 = vsub.f32 %v4422, %v4641
        %4643 = vmatpush.msra.mxu0 %v4642
        %v4644 = vand.u32 %v4421, 4294901760
        %v4645 = vsub.f32 %v4421, %v4644
        %4646 = vmatpush.msra.mxu0 %v4645
        %v4647 = vand.u32 %v4420, 4294901760
        %v4648 = vsub.f32 %v4420, %v4647
        %4649 = vmatpush.msra.mxu0 %v4648
        %v4650 = vand.u32 %v4419, 4294901760
        %v4651 = vsub.f32 %v4419, %v4650
        %4652 = vmatpush.msra.mxu0 %v4651
        %v4653 = vand.u32 %v4418, 4294901760
        %v4654 = vsub.f32 %v4418, %v4653
        %4655 = vmatpush.msra.mxu0 %v4654
        %v4656 = vand.u32 %v4417, 4294901760
        %v4657 = vsub.f32 %v4417, %v4656
        %4658 = vmatpush.msra.mxu0 %v4657
        %v4659 = vand.u32 %v4416, 4294901760
        %v4660 = vsub.f32 %v4416, %v4659
        %4661 = vmatpush.msra.mxu0 %v4660
        %v4662 = vand.u32 %v4415, 4294901760
        %v4663 = vsub.f32 %v4415, %v4662
        %4664 = vmatpush.msra.mxu0 %v4663
        %v4665 = vand.u32 %v4414, 4294901760
        %v4666 = vsub.f32 %v4414, %v4665
        %4667 = vmatpush.msra.mxu0 %v4666
        %v4668 = vand.u32 %v4413, 4294901760
        %v4669 = vsub.f32 %v4413, %v4668
        %4670 = vmatpush.msra.mxu0 %v4669
        %v4671 = vand.u32 %v4409, 4294901760
        %v4672 = vsub.f32 %v4409, %v4671
        %4673 = vmatmul.f32.gmra.mxu0 %v4672
        %v4674 = vpop.f32.mrf.mxu0
        %v4675 = vadd.f32 %v4621, %v4674
        %4676 = vdwg.mxu0
        %v4677 = vand.u32 %v4428, 4294901760
        %4678 = vmatpush.msra.mxu0 %v4677
        %v4679 = vand.u32 %v4427, 4294901760
        %4680 = vmatpush.msra.mxu0 %v4679
        %v4681 = vand.u32 %v4426, 4294901760
        %4682 = vmatpush.msra.mxu0 %v4681
        %v4683 = vand.u32 %v4425, 4294901760
        %4684 = vmatpush.msra.mxu0 %v4683
        %v4685 = vand.u32 %v4424, 4294901760
        %4686 = vmatpush.msra.mxu0 %v4685
        %v4687 = vand.u32 %v4423, 4294901760
        %4688 = vmatpush.msra.mxu0 %v4687
        %v4689 = vand.u32 %v4422, 4294901760
        %4690 = vmatpush.msra.mxu0 %v4689
        %v4691 = vand.u32 %v4421, 4294901760
        %4692 = vmatpush.msra.mxu0 %v4691
        %v4693 = vand.u32 %v4420, 4294901760
        %4694 = vmatpush.msra.mxu0 %v4693
        %v4695 = vand.u32 %v4419, 4294901760
        %4696 = vmatpush.msra.mxu0 %v4695
        %v4697 = vand.u32 %v4418, 4294901760
        %4698 = vmatpush.msra.mxu0 %v4697
        %v4699 = vand.u32 %v4417, 4294901760
        %4700 = vmatpush.msra.mxu0 %v4699
        %v4701 = vand.u32 %v4416, 4294901760
        %4702 = vmatpush.msra.mxu0 %v4701
        %v4703 = vand.u32 %v4415, 4294901760
        %4704 = vmatpush.msra.mxu0 %v4703
        %v4705 = vand.u32 %v4414, 4294901760
        %4706 = vmatpush.msra.mxu0 %v4705
        %v4707 = vand.u32 %v4413, 4294901760
        %4708 = vmatpush.msra.mxu0 %v4707
        %v4709 = vand.u32 %v4409, 4294901760
        %v4710 = vsub.f32 %v4409, %v4709
        %v4711 = vand.u32 %v4710, 4294901760
        %4712 = vmatmul.f32.gmra.mxu0 %v4711
        %v4713 = vpop.f32.mrf.mxu0
        %v4714 = vadd.f32 %v4675, %v4713
        %4715 = vdwg.mxu0
        %v4716 = vand.u32 %v4428, 4294901760
        %v4717 = vsub.f32 %v4428, %v4716
        %v4718 = vand.u32 %v4717, 4294901760
        %4719 = vmatpush.msra.mxu0 %v4718
        %v4720 = vand.u32 %v4427, 4294901760
        %v4721 = vsub.f32 %v4427, %v4720
        %v4722 = vand.u32 %v4721, 4294901760
        %4723 = vmatpush.msra.mxu0 %v4722
        %v4724 = vand.u32 %v4426, 4294901760
        %v4725 = vsub.f32 %v4426, %v4724
        %v4726 = vand.u32 %v4725, 4294901760
        %4727 = vmatpush.msra.mxu0 %v4726
        %v4728 = vand.u32 %v4425, 4294901760
        %v4729 = vsub.f32 %v4425, %v4728
        %v4730 = vand.u32 %v4729, 4294901760
        %4731 = vmatpush.msra.mxu0 %v4730
        %v4732 = vand.u32 %v4424, 4294901760
        %v4733 = vsub.f32 %v4424, %v4732
        %v4734 = vand.u32 %v4733, 4294901760
        %4735 = vmatpush.msra.mxu0 %v4734
        %v4736 = vand.u32 %v4423, 4294901760
        %v4737 = vsub.f32 %v4423, %v4736
        %v4738 = vand.u32 %v4737, 4294901760
        %4739 = vmatpush.msra.mxu0 %v4738
        %v4740 = vand.u32 %v4422, 4294901760
        %v4741 = vsub.f32 %v4422, %v4740
        %v4742 = vand.u32 %v4741, 4294901760
        %4743 = vmatpush.msra.mxu0 %v4742
        %v4744 = vand.u32 %v4421, 4294901760
        %v4745 = vsub.f32 %v4421, %v4744
        %v4746 = vand.u32 %v4745, 4294901760
        %4747 = vmatpush.msra.mxu0 %v4746
        %v4748 = vand.u32 %v4420, 4294901760
        %v4749 = vsub.f32 %v4420, %v4748
        %v4750 = vand.u32 %v4749, 4294901760
        %4751 = vmatpush.msra.mxu0 %v4750
        %v4752 = vand.u32 %v4419, 4294901760
        %v4753 = vsub.f32 %v4419, %v4752
        %v4754 = vand.u32 %v4753, 4294901760
        %4755 = vmatpush.msra.mxu0 %v4754
        %v4756 = vand.u32 %v4418, 4294901760
        %v4757 = vsub.f32 %v4418, %v4756
        %v4758 = vand.u32 %v4757, 4294901760
        %4759 = vmatpush.msra.mxu0 %v4758
        %v4760 = vand.u32 %v4417, 4294901760
        %v4761 = vsub.f32 %v4417, %v4760
        %v4762 = vand.u32 %v4761, 4294901760
        %4763 = vmatpush.msra.mxu0 %v4762
        %v4764 = vand.u32 %v4416, 4294901760
        %v4765 = vsub.f32 %v4416, %v4764
        %v4766 = vand.u32 %v4765, 4294901760
        %4767 = vmatpush.msra.mxu0 %v4766
        %v4768 = vand.u32 %v4415, 4294901760
        %v4769 = vsub.f32 %v4415, %v4768
        %v4770 = vand.u32 %v4769, 4294901760
        %4771 = vmatpush.msra.mxu0 %v4770
        %v4772 = vand.u32 %v4414, 4294901760
        %v4773 = vsub.f32 %v4414, %v4772
        %v4774 = vand.u32 %v4773, 4294901760
        %4775 = vmatpush.msra.mxu0 %v4774
        %v4776 = vand.u32 %v4413, 4294901760
        %v4777 = vsub.f32 %v4413, %v4776
        %v4778 = vand.u32 %v4777, 4294901760
        %4779 = vmatpush.msra.mxu0 %v4778
        %v4780 = vand.u32 %v4409, 4294901760
        %4781 = vmatmul.f32.gmra.mxu0 %v4780
        %v4782 = vpop.f32.mrf.mxu0
        %v4783 = vadd.f32 %v4714, %v4782
        %4784 = vdwg.mxu0
        %v4785 = vand.u32 %v4428, 4294901760
        %4786 = vmatpush.msra.mxu0 %v4785
        %v4787 = vand.u32 %v4427, 4294901760
        %4788 = vmatpush.msra.mxu0 %v4787
        %v4789 = vand.u32 %v4426, 4294901760
        %4790 = vmatpush.msra.mxu0 %v4789
        %v4791 = vand.u32 %v4425, 4294901760
        %4792 = vmatpush.msra.mxu0 %v4791
        %v4793 = vand.u32 %v4424, 4294901760
        %4794 = vmatpush.msra.mxu0 %v4793
        %v4795 = vand.u32 %v4423, 4294901760
        %4796 = vmatpush.msra.mxu0 %v4795
        %v4797 = vand.u32 %v4422, 4294901760
        %4798 = vmatpush.msra.mxu0 %v4797
        %v4799 = vand.u32 %v4421, 4294901760
        %4800 = vmatpush.msra.mxu0 %v4799
        %v4801 = vand.u32 %v4420, 4294901760
        %4802 = vmatpush.msra.mxu0 %v4801
        %v4803 = vand.u32 %v4419, 4294901760
        %4804 = vmatpush.msra.mxu0 %v4803
        %v4805 = vand.u32 %v4418, 4294901760
        %4806 = vmatpush.msra.mxu0 %v4805
        %v4807 = vand.u32 %v4417, 4294901760
        %4808 = vmatpush.msra.mxu0 %v4807
        %v4809 = vand.u32 %v4416, 4294901760
        %4810 = vmatpush.msra.mxu0 %v4809
        %v4811 = vand.u32 %v4415, 4294901760
        %4812 = vmatpush.msra.mxu0 %v4811
        %v4813 = vand.u32 %v4414, 4294901760
        %4814 = vmatpush.msra.mxu0 %v4813
        %v4815 = vand.u32 %v4413, 4294901760
        %4816 = vmatpush.msra.mxu0 %v4815
        %v4817 = vand.u32 %v4409, 4294901760
        %4818 = vmatmul.f32.gmra.mxu0 %v4817
        %v4819 = vpop.f32.mrf.mxu0
        %v4820 = vadd.f32 %v4783, %v4819
        %4821 = vdwg.mxu0
        %v4822 = vand.u32 %v4444, 4294901760
        %4823 = vmatpush.msra.mxu0 %v4822
        %v4824 = vand.u32 %v4443, 4294901760
        %4825 = vmatpush.msra.mxu0 %v4824
        %v4826 = vand.u32 %v4442, 4294901760
        %4827 = vmatpush.msra.mxu0 %v4826
        %v4828 = vand.u32 %v4441, 4294901760
        %4829 = vmatpush.msra.mxu0 %v4828
        %v4830 = vand.u32 %v4440, 4294901760
        %4831 = vmatpush.msra.mxu0 %v4830
        %v4832 = vand.u32 %v4439, 4294901760
        %4833 = vmatpush.msra.mxu0 %v4832
        %v4834 = vand.u32 %v4438, 4294901760
        %4835 = vmatpush.msra.mxu0 %v4834
        %v4836 = vand.u32 %v4437, 4294901760
        %4837 = vmatpush.msra.mxu0 %v4836
        %v4838 = vand.u32 %v4436, 4294901760
        %4839 = vmatpush.msra.mxu0 %v4838
        %v4840 = vand.u32 %v4435, 4294901760
        %4841 = vmatpush.msra.mxu0 %v4840
        %v4842 = vand.u32 %v4434, 4294901760
        %4843 = vmatpush.msra.mxu0 %v4842
        %v4844 = vand.u32 %v4433, 4294901760
        %4845 = vmatpush.msra.mxu0 %v4844
        %v4846 = vand.u32 %v4432, 4294901760
        %4847 = vmatpush.msra.mxu0 %v4846
        %v4848 = vand.u32 %v4431, 4294901760
        %4849 = vmatpush.msra.mxu0 %v4848
        %v4850 = vand.u32 %v4430, 4294901760
        %4851 = vmatpush.msra.mxu0 %v4850
        %v4852 = vand.u32 %v4429, 4294901760
        %4853 = vmatpush.msra.mxu0 %v4852
        %v4854 = vand.u32 %v4410, 4294901760
        %v4855 = vsub.f32 %v4410, %v4854
        %v4856 = vand.u32 %v4855, 4294901760
        %v4857 = vsub.f32 %v4855, %v4856
        %v4858 = vand.u32 %v4857, 4294901760
        %4859 = vmatmul.f32.gmra.mxu0 %v4858
        %v4860 = vpop.f32.mrf.mxu0
        %v4861 = vadd.f32 %v4820, %v4860
        %4862 = vdwg.mxu0
        %v4863 = vand.u32 %v4444, 4294901760
        %v4864 = vsub.f32 %v4444, %v4863
        %v4865 = vand.u32 %v4864, 4294901760
        %v4866 = vsub.f32 %v4864, %v4865
        %v4867 = vand.u32 %v4866, 4294901760
        %4868 = vmatpush.msra.mxu0 %v4867
        %v4869 = vand.u32 %v4443, 4294901760
        %v4870 = vsub.f32 %v4443, %v4869
        %v4871 = vand.u32 %v4870, 4294901760
        %v4872 = vsub.f32 %v4870, %v4871
        %v4873 = vand.u32 %v4872, 4294901760
        %4874 = vmatpush.msra.mxu0 %v4873
        %v4875 = vand.u32 %v4442, 4294901760
        %v4876 = vsub.f32 %v4442, %v4875
        %v4877 = vand.u32 %v4876, 4294901760
        %v4878 = vsub.f32 %v4876, %v4877
        %v4879 = vand.u32 %v4878, 4294901760
        %4880 = vmatpush.msra.mxu0 %v4879
        %v4881 = vand.u32 %v4441, 4294901760
        %v4882 = vsub.f32 %v4441, %v4881
        %v4883 = vand.u32 %v4882, 4294901760
        %v4884 = vsub.f32 %v4882, %v4883
        %v4885 = vand.u32 %v4884, 4294901760
        %4886 = vmatpush.msra.mxu0 %v4885
        %v4887 = vand.u32 %v4440, 4294901760
        %v4888 = vsub.f32 %v4440, %v4887
        %v4889 = vand.u32 %v4888, 4294901760
        %v4890 = vsub.f32 %v4888, %v4889
        %v4891 = vand.u32 %v4890, 4294901760
        %4892 = vmatpush.msra.mxu0 %v4891
        %v4893 = vand.u32 %v4439, 4294901760
        %v4894 = vsub.f32 %v4439, %v4893
        %v4895 = vand.u32 %v4894, 4294901760
        %v4896 = vsub.f32 %v4894, %v4895
        %v4897 = vand.u32 %v4896, 4294901760
        %4898 = vmatpush.msra.mxu0 %v4897
        %v4899 = vand.u32 %v4438, 4294901760
        %v4900 = vsub.f32 %v4438, %v4899
        %v4901 = vand.u32 %v4900, 4294901760
        %v4902 = vsub.f32 %v4900, %v4901
        %v4903 = vand.u32 %v4902, 4294901760
        %4904 = vmatpush.msra.mxu0 %v4903
        %v4905 = vand.u32 %v4437, 4294901760
        %v4906 = vsub.f32 %v4437, %v4905
        %v4907 = vand.u32 %v4906, 4294901760
        %v4908 = vsub.f32 %v4906, %v4907
        %v4909 = vand.u32 %v4908, 4294901760
        %4910 = vmatpush.msra.mxu0 %v4909
        %v4911 = vand.u32 %v4436, 4294901760
        %v4912 = vsub.f32 %v4436, %v4911
        %v4913 = vand.u32 %v4912, 4294901760
        %v4914 = vsub.f32 %v4912, %v4913
        %v4915 = vand.u32 %v4914, 4294901760
        %4916 = vmatpush.msra.mxu0 %v4915
        %v4917 = vand.u32 %v4435, 4294901760
        %v4918 = vsub.f32 %v4435, %v4917
        %v4919 = vand.u32 %v4918, 4294901760
        %v4920 = vsub.f32 %v4918, %v4919
        %v4921 = vand.u32 %v4920, 4294901760
        %4922 = vmatpush.msra.mxu0 %v4921
        %v4923 = vand.u32 %v4434, 4294901760
        %v4924 = vsub.f32 %v4434, %v4923
        %v4925 = vand.u32 %v4924, 4294901760
        %v4926 = vsub.f32 %v4924, %v4925
        %v4927 = vand.u32 %v4926, 4294901760
        %4928 = vmatpush.msra.mxu0 %v4927
        %v4929 = vand.u32 %v4433, 4294901760
        %v4930 = vsub.f32 %v4433, %v4929
        %v4931 = vand.u32 %v4930, 4294901760
        %v4932 = vsub.f32 %v4930, %v4931
        %v4933 = vand.u32 %v4932, 4294901760
        %4934 = vmatpush.msra.mxu0 %v4933
        %v4935 = vand.u32 %v4432, 4294901760
        %v4936 = vsub.f32 %v4432, %v4935
        %v4937 = vand.u32 %v4936, 4294901760
        %v4938 = vsub.f32 %v4936, %v4937
        %v4939 = vand.u32 %v4938, 4294901760
        %4940 = vmatpush.msra.mxu0 %v4939
        %v4941 = vand.u32 %v4431, 4294901760
        %v4942 = vsub.f32 %v4431, %v4941
        %v4943 = vand.u32 %v4942, 4294901760
        %v4944 = vsub.f32 %v4942, %v4943
        %v4945 = vand.u32 %v4944, 4294901760
        %4946 = vmatpush.msra.mxu0 %v4945
        %v4947 = vand.u32 %v4430, 4294901760
        %v4948 = vsub.f32 %v4430, %v4947
        %v4949 = vand.u32 %v4948, 4294901760
        %v4950 = vsub.f32 %v4948, %v4949
        %v4951 = vand.u32 %v4950, 4294901760
        %4952 = vmatpush.msra.mxu0 %v4951
        %v4953 = vand.u32 %v4429, 4294901760
        %v4954 = vsub.f32 %v4429, %v4953
        %v4955 = vand.u32 %v4954, 4294901760
        %v4956 = vsub.f32 %v4954, %v4955
        %v4957 = vand.u32 %v4956, 4294901760
        %4958 = vmatpush.msra.mxu0 %v4957
        %v4959 = vand.u32 %v4410, 4294901760
        %4960 = vmatmul.f32.gmra.mxu0 %v4959
        %v4961 = vpop.f32.mrf.mxu0
        %v4962 = vadd.f32 %v4861, %v4961
        %4963 = vdwg.mxu0
        %v4964 = vand.u32 %v4444, 4294901760
        %v4965 = vsub.f32 %v4444, %v4964
        %4966 = vmatpush.msra.mxu0 %v4965
        %v4967 = vand.u32 %v4443, 4294901760
        %v4968 = vsub.f32 %v4443, %v4967
        %4969 = vmatpush.msra.mxu0 %v4968
        %v4970 = vand.u32 %v4442, 4294901760
        %v4971 = vsub.f32 %v4442, %v4970
        %4972 = vmatpush.msra.mxu0 %v4971
        %v4973 = vand.u32 %v4441, 4294901760
        %v4974 = vsub.f32 %v4441, %v4973
        %4975 = vmatpush.msra.mxu0 %v4974
        %v4976 = vand.u32 %v4440, 4294901760
        %v4977 = vsub.f32 %v4440, %v4976
        %4978 = vmatpush.msra.mxu0 %v4977
        %v4979 = vand.u32 %v4439, 4294901760
        %v4980 = vsub.f32 %v4439, %v4979
        %4981 = vmatpush.msra.mxu0 %v4980
        %v4982 = vand.u32 %v4438, 4294901760
        %v4983 = vsub.f32 %v4438, %v4982
        %4984 = vmatpush.msra.mxu0 %v4983
        %v4985 = vand.u32 %v4437, 4294901760
        %v4986 = vsub.f32 %v4437, %v4985
        %4987 = vmatpush.msra.mxu0 %v4986
        %v4988 = vand.u32 %v4436, 4294901760
        %v4989 = vsub.f32 %v4436, %v4988
        %4990 = vmatpush.msra.mxu0 %v4989
        %v4991 = vand.u32 %v4435, 4294901760
        %v4992 = vsub.f32 %v4435, %v4991
        %4993 = vmatpush.msra.mxu0 %v4992
        %v4994 = vand.u32 %v4434, 4294901760
        %v4995 = vsub.f32 %v4434, %v4994
        %4996 = vmatpush.msra.mxu0 %v4995
        %v4997 = vand.u32 %v4433, 4294901760
        %v4998 = vsub.f32 %v4433, %v4997
        %4999 = vmatpush.msra.mxu0 %v4998
        %v5000 = vand.u32 %v4432, 4294901760
        %v5001 = vsub.f32 %v4432, %v5000
        %5002 = vmatpush.msra.mxu0 %v5001
        %v5003 = vand.u32 %v4431, 4294901760
        %v5004 = vsub.f32 %v4431, %v5003
        %5005 = vmatpush.msra.mxu0 %v5004
        %v5006 = vand.u32 %v4430, 4294901760
        %v5007 = vsub.f32 %v4430, %v5006
        %5008 = vmatpush.msra.mxu0 %v5007
        %v5009 = vand.u32 %v4429, 4294901760
        %v5010 = vsub.f32 %v4429, %v5009
        %5011 = vmatpush.msra.mxu0 %v5010
        %v5012 = vand.u32 %v4410, 4294901760
        %v5013 = vsub.f32 %v4410, %v5012
        %5014 = vmatmul.f32.gmra.mxu0 %v5013
        %v5015 = vpop.f32.mrf.mxu0
        %v5016 = vadd.f32 %v4962, %v5015
        %5017 = vdwg.mxu0
        %v5018 = vand.u32 %v4444, 4294901760
        %5019 = vmatpush.msra.mxu0 %v5018
        %v5020 = vand.u32 %v4443, 4294901760
        %5021 = vmatpush.msra.mxu0 %v5020
        %v5022 = vand.u32 %v4442, 4294901760
        %5023 = vmatpush.msra.mxu0 %v5022
        %v5024 = vand.u32 %v4441, 4294901760
        %5025 = vmatpush.msra.mxu0 %v5024
        %v5026 = vand.u32 %v4440, 4294901760
        %5027 = vmatpush.msra.mxu0 %v5026
        %v5028 = vand.u32 %v4439, 4294901760
        %5029 = vmatpush.msra.mxu0 %v5028
        %v5030 = vand.u32 %v4438, 4294901760
        %5031 = vmatpush.msra.mxu0 %v5030
        %v5032 = vand.u32 %v4437, 4294901760
        %5033 = vmatpush.msra.mxu0 %v5032
        %v5034 = vand.u32 %v4436, 4294901760
        %5035 = vmatpush.msra.mxu0 %v5034
        %v5036 = vand.u32 %v4435, 4294901760
        %5037 = vmatpush.msra.mxu0 %v5036
        %v5038 = vand.u32 %v4434, 4294901760
        %5039 = vmatpush.msra.mxu0 %v5038
        %v5040 = vand.u32 %v4433, 4294901760
        %5041 = vmatpush.msra.mxu0 %v5040
        %v5042 = vand.u32 %v4432, 4294901760
        %5043 = vmatpush.msra.mxu0 %v5042
        %v5044 = vand.u32 %v4431, 4294901760
        %5045 = vmatpush.msra.mxu0 %v5044
        %v5046 = vand.u32 %v4430, 4294901760
        %5047 = vmatpush.msra.mxu0 %v5046
        %v5048 = vand.u32 %v4429, 4294901760
        %5049 = vmatpush.msra.mxu0 %v5048
        %v5050 = vand.u32 %v4410, 4294901760
        %v5051 = vsub.f32 %v4410, %v5050
        %v5052 = vand.u32 %v5051, 4294901760
        %5053 = vmatmul.f32.gmra.mxu0 %v5052
        %v5054 = vpop.f32.mrf.mxu0
        %v5055 = vadd.f32 %v5016, %v5054
        %5056 = vdwg.mxu0
        %v5057 = vand.u32 %v4444, 4294901760
        %v5058 = vsub.f32 %v4444, %v5057
        %v5059 = vand.u32 %v5058, 4294901760
        %5060 = vmatpush.msra.mxu0 %v5059
        %v5061 = vand.u32 %v4443, 4294901760
        %v5062 = vsub.f32 %v4443, %v5061
        %v5063 = vand.u32 %v5062, 4294901760
        %5064 = vmatpush.msra.mxu0 %v5063
        %v5065 = vand.u32 %v4442, 4294901760
        %v5066 = vsub.f32 %v4442, %v5065
        %v5067 = vand.u32 %v5066, 4294901760
        %5068 = vmatpush.msra.mxu0 %v5067
        %v5069 = vand.u32 %v4441, 4294901760
        %v5070 = vsub.f32 %v4441, %v5069
        %v5071 = vand.u32 %v5070, 4294901760
        %5072 = vmatpush.msra.mxu0 %v5071
        %v5073 = vand.u32 %v4440, 4294901760
        %v5074 = vsub.f32 %v4440, %v5073
        %v5075 = vand.u32 %v5074, 4294901760
        %5076 = vmatpush.msra.mxu0 %v5075
        %v5077 = vand.u32 %v4439, 4294901760
        %v5078 = vsub.f32 %v4439, %v5077
        %v5079 = vand.u32 %v5078, 4294901760
        %5080 = vmatpush.msra.mxu0 %v5079
        %v5081 = vand.u32 %v4438, 4294901760
        %v5082 = vsub.f32 %v4438, %v5081
        %v5083 = vand.u32 %v5082, 4294901760
        %5084 = vmatpush.msra.mxu0 %v5083
        %v5085 = vand.u32 %v4437, 4294901760
        %v5086 = vsub.f32 %v4437, %v5085
        %v5087 = vand.u32 %v5086, 4294901760
        %5088 = vmatpush.msra.mxu0 %v5087
        %v5089 = vand.u32 %v4436, 4294901760
        %v5090 = vsub.f32 %v4436, %v5089
        %v5091 = vand.u32 %v5090, 4294901760
        %5092 = vmatpush.msra.mxu0 %v5091
        %v5093 = vand.u32 %v4435, 4294901760
        %v5094 = vsub.f32 %v4435, %v5093
        %v5095 = vand.u32 %v5094, 4294901760
        %5096 = vmatpush.msra.mxu0 %v5095
        %v5097 = vand.u32 %v4434, 4294901760
        %v5098 = vsub.f32 %v4434, %v5097
        %v5099 = vand.u32 %v5098, 4294901760
        %5100 = vmatpush.msra.mxu0 %v5099
        %v5101 = vand.u32 %v4433, 4294901760
        %v5102 = vsub.f32 %v4433, %v5101
        %v5103 = vand.u32 %v5102, 4294901760
        %5104 = vmatpush.msra.mxu0 %v5103
        %v5105 = vand.u32 %v4432, 4294901760
        %v5106 = vsub.f32 %v4432, %v5105
        %v5107 = vand.u32 %v5106, 4294901760
        %5108 = vmatpush.msra.mxu0 %v5107
        %v5109 = vand.u32 %v4431, 4294901760
        %v5110 = vsub.f32 %v4431, %v5109
        %v5111 = vand.u32 %v5110, 4294901760
        %5112 = vmatpush.msra.mxu0 %v5111
        %v5113 = vand.u32 %v4430, 4294901760
        %v5114 = vsub.f32 %v4430, %v5113
        %v5115 = vand.u32 %v5114, 4294901760
        %5116 = vmatpush.msra.mxu0 %v5115
        %v5117 = vand.u32 %v4429, 4294901760
        %v5118 = vsub.f32 %v4429, %v5117
        %v5119 = vand.u32 %v5118, 4294901760
        %5120 = vmatpush.msra.mxu0 %v5119
        %v5121 = vand.u32 %v4410, 4294901760
        %5122 = vmatmul.f32.gmra.mxu0 %v5121
        %v5123 = vpop.f32.mrf.mxu0
        %v5124 = vadd.f32 %v5055, %v5123
        %5125 = vdwg.mxu0
        %v5126 = vand.u32 %v4444, 4294901760
        %5127 = vmatpush.msra.mxu0 %v5126
        %v5128 = vand.u32 %v4443, 4294901760
        %5129 = vmatpush.msra.mxu0 %v5128
        %v5130 = vand.u32 %v4442, 4294901760
        %5131 = vmatpush.msra.mxu0 %v5130
        %v5132 = vand.u32 %v4441, 4294901760
        %5133 = vmatpush.msra.mxu0 %v5132
        %v5134 = vand.u32 %v4440, 4294901760
        %5135 = vmatpush.msra.mxu0 %v5134
        %v5136 = vand.u32 %v4439, 4294901760
        %5137 = vmatpush.msra.mxu0 %v5136
        %v5138 = vand.u32 %v4438, 4294901760
        %5139 = vmatpush.msra.mxu0 %v5138
        %v5140 = vand.u32 %v4437, 4294901760
        %5141 = vmatpush.msra.mxu0 %v5140
        %v5142 = vand.u32 %v4436, 4294901760
        %5143 = vmatpush.msra.mxu0 %v5142
        %v5144 = vand.u32 %v4435, 4294901760
        %5145 = vmatpush.msra.mxu0 %v5144
        %v5146 = vand.u32 %v4434, 4294901760
        %5147 = vmatpush.msra.mxu0 %v5146
        %v5148 = vand.u32 %v4433, 4294901760
        %5149 = vmatpush.msra.mxu0 %v5148
        %v5150 = vand.u32 %v4432, 4294901760
        %5151 = vmatpush.msra.mxu0 %v5150
        %v5152 = vand.u32 %v4431, 4294901760
        %5153 = vmatpush.msra.mxu0 %v5152
        %v5154 = vand.u32 %v4430, 4294901760
        %5155 = vmatpush.msra.mxu0 %v5154
        %v5156 = vand.u32 %v4429, 4294901760
        %5157 = vmatpush.msra.mxu0 %v5156
        %v5158 = vand.u32 %v4410, 4294901760
        %5159 = vmatmul.f32.gmra.mxu0 %v5158
        %v5160 = vpop.f32.mrf.mxu0
        %v5161 = vadd.f32 %v5124, %v5160
        %5162 = vdwg.mxu0
        %v5163 = vand.u32 %v4460, 4294901760
        %5164 = vmatpush.msra.mxu0 %v5163
        %v5165 = vand.u32 %v4459, 4294901760
        %5166 = vmatpush.msra.mxu0 %v5165
        %v5167 = vand.u32 %v4458, 4294901760
        %5168 = vmatpush.msra.mxu0 %v5167
        %v5169 = vand.u32 %v4457, 4294901760
        %5170 = vmatpush.msra.mxu0 %v5169
        %v5171 = vand.u32 %v4456, 4294901760
        %5172 = vmatpush.msra.mxu0 %v5171
        %v5173 = vand.u32 %v4455, 4294901760
        %5174 = vmatpush.msra.mxu0 %v5173
        %v5175 = vand.u32 %v4454, 4294901760
        %5176 = vmatpush.msra.mxu0 %v5175
        %v5177 = vand.u32 %v4453, 4294901760
        %5178 = vmatpush.msra.mxu0 %v5177
        %v5179 = vand.u32 %v4452, 4294901760
        %5180 = vmatpush.msra.mxu0 %v5179
        %v5181 = vand.u32 %v4451, 4294901760
        %5182 = vmatpush.msra.mxu0 %v5181
        %v5183 = vand.u32 %v4450, 4294901760
        %5184 = vmatpush.msra.mxu0 %v5183
        %v5185 = vand.u32 %v4449, 4294901760
        %5186 = vmatpush.msra.mxu0 %v5185
        %v5187 = vand.u32 %v4448, 4294901760
        %5188 = vmatpush.msra.mxu0 %v5187
        %v5189 = vand.u32 %v4447, 4294901760
        %5190 = vmatpush.msra.mxu0 %v5189
        %v5191 = vand.u32 %v4446, 4294901760
        %5192 = vmatpush.msra.mxu0 %v5191
        %v5193 = vand.u32 %v4445, 4294901760
        %5194 = vmatpush.msra.mxu0 %v5193
        %v5195 = vand.u32 %v4411, 4294901760
        %v5196 = vsub.f32 %v4411, %v5195
        %v5197 = vand.u32 %v5196, 4294901760
        %v5198 = vsub.f32 %v5196, %v5197
        %v5199 = vand.u32 %v5198, 4294901760
        %5200 = vmatmul.f32.gmra.mxu0 %v5199
        %v5201 = vpop.f32.mrf.mxu0
        %v5202 = vadd.f32 %v5161, %v5201
        %5203 = vdwg.mxu0
        %v5204 = vand.u32 %v4460, 4294901760
        %v5205 = vsub.f32 %v4460, %v5204
        %v5206 = vand.u32 %v5205, 4294901760
        %v5207 = vsub.f32 %v5205, %v5206
        %v5208 = vand.u32 %v5207, 4294901760
        %5209 = vmatpush.msra.mxu0 %v5208
        %v5210 = vand.u32 %v4459, 4294901760
        %v5211 = vsub.f32 %v4459, %v5210
        %v5212 = vand.u32 %v5211, 4294901760
        %v5213 = vsub.f32 %v5211, %v5212
        %v5214 = vand.u32 %v5213, 4294901760
        %5215 = vmatpush.msra.mxu0 %v5214
        %v5216 = vand.u32 %v4458, 4294901760
        %v5217 = vsub.f32 %v4458, %v5216
        %v5218 = vand.u32 %v5217, 4294901760
        %v5219 = vsub.f32 %v5217, %v5218
        %v5220 = vand.u32 %v5219, 4294901760
        %5221 = vmatpush.msra.mxu0 %v5220
        %v5222 = vand.u32 %v4457, 4294901760
        %v5223 = vsub.f32 %v4457, %v5222
        %v5224 = vand.u32 %v5223, 4294901760
        %v5225 = vsub.f32 %v5223, %v5224
        %v5226 = vand.u32 %v5225, 4294901760
        %5227 = vmatpush.msra.mxu0 %v5226
        %v5228 = vand.u32 %v4456, 4294901760
        %v5229 = vsub.f32 %v4456, %v5228
        %v5230 = vand.u32 %v5229, 4294901760
        %v5231 = vsub.f32 %v5229, %v5230
        %v5232 = vand.u32 %v5231, 4294901760
        %5233 = vmatpush.msra.mxu0 %v5232
        %v5234 = vand.u32 %v4455, 4294901760
        %v5235 = vsub.f32 %v4455, %v5234
        %v5236 = vand.u32 %v5235, 4294901760
        %v5237 = vsub.f32 %v5235, %v5236
        %v5238 = vand.u32 %v5237, 4294901760
        %5239 = vmatpush.msra.mxu0 %v5238
        %v5240 = vand.u32 %v4454, 4294901760
        %v5241 = vsub.f32 %v4454, %v5240
        %v5242 = vand.u32 %v5241, 4294901760
        %v5243 = vsub.f32 %v5241, %v5242
        %v5244 = vand.u32 %v5243, 4294901760
        %5245 = vmatpush.msra.mxu0 %v5244
        %v5246 = vand.u32 %v4453, 4294901760
        %v5247 = vsub.f32 %v4453, %v5246
        %v5248 = vand.u32 %v5247, 4294901760
        %v5249 = vsub.f32 %v5247, %v5248
        %v5250 = vand.u32 %v5249, 4294901760
        %5251 = vmatpush.msra.mxu0 %v5250
        %v5252 = vand.u32 %v4452, 4294901760
        %v5253 = vsub.f32 %v4452, %v5252
        %v5254 = vand.u32 %v5253, 4294901760
        %v5255 = vsub.f32 %v5253, %v5254
        %v5256 = vand.u32 %v5255, 4294901760
        %5257 = vmatpush.msra.mxu0 %v5256
        %v5258 = vand.u32 %v4451, 4294901760
        %v5259 = vsub.f32 %v4451, %v5258
        %v5260 = vand.u32 %v5259, 4294901760
        %v5261 = vsub.f32 %v5259, %v5260
        %v5262 = vand.u32 %v5261, 4294901760
        %5263 = vmatpush.msra.mxu0 %v5262
        %v5264 = vand.u32 %v4450, 4294901760
        %v5265 = vsub.f32 %v4450, %v5264
        %v5266 = vand.u32 %v5265, 4294901760
        %v5267 = vsub.f32 %v5265, %v5266
        %v5268 = vand.u32 %v5267, 4294901760
        %5269 = vmatpush.msra.mxu0 %v5268
        %v5270 = vand.u32 %v4449, 4294901760
        %v5271 = vsub.f32 %v4449, %v5270
        %v5272 = vand.u32 %v5271, 4294901760
        %v5273 = vsub.f32 %v5271, %v5272
        %v5274 = vand.u32 %v5273, 4294901760
        %5275 = vmatpush.msra.mxu0 %v5274
        %v5276 = vand.u32 %v4448, 4294901760
        %v5277 = vsub.f32 %v4448, %v5276
        %v5278 = vand.u32 %v5277, 4294901760
        %v5279 = vsub.f32 %v5277, %v5278
        %v5280 = vand.u32 %v5279, 4294901760
        %5281 = vmatpush.msra.mxu0 %v5280
        %v5282 = vand.u32 %v4447, 4294901760
        %v5283 = vsub.f32 %v4447, %v5282
        %v5284 = vand.u32 %v5283, 4294901760
        %v5285 = vsub.f32 %v5283, %v5284
        %v5286 = vand.u32 %v5285, 4294901760
        %5287 = vmatpush.msra.mxu0 %v5286
        %v5288 = vand.u32 %v4446, 4294901760
        %v5289 = vsub.f32 %v4446, %v5288
        %v5290 = vand.u32 %v5289, 4294901760
        %v5291 = vsub.f32 %v5289, %v5290
        %v5292 = vand.u32 %v5291, 4294901760
        %5293 = vmatpush.msra.mxu0 %v5292
        %v5294 = vand.u32 %v4445, 4294901760
        %v5295 = vsub.f32 %v4445, %v5294
        %v5296 = vand.u32 %v5295, 4294901760
        %v5297 = vsub.f32 %v5295, %v5296
        %v5298 = vand.u32 %v5297, 4294901760
        %5299 = vmatpush.msra.mxu0 %v5298
        %v5300 = vand.u32 %v4411, 4294901760
        %5301 = vmatmul.f32.gmra.mxu0 %v5300
        %v5302 = vpop.f32.mrf.mxu0
        %v5303 = vadd.f32 %v5202, %v5302
        %5304 = vdwg.mxu0
        %v5305 = vand.u32 %v4460, 4294901760
        %v5306 = vsub.f32 %v4460, %v5305
        %5307 = vmatpush.msra.mxu0 %v5306
        %v5308 = vand.u32 %v4459, 4294901760
        %v5309 = vsub.f32 %v4459, %v5308
        %5310 = vmatpush.msra.mxu0 %v5309
        %v5311 = vand.u32 %v4458, 4294901760
        %v5312 = vsub.f32 %v4458, %v5311
        %5313 = vmatpush.msra.mxu0 %v5312
        %v5314 = vand.u32 %v4457, 4294901760
        %v5315 = vsub.f32 %v4457, %v5314
        %5316 = vmatpush.msra.mxu0 %v5315
        %v5317 = vand.u32 %v4456, 4294901760
        %v5318 = vsub.f32 %v4456, %v5317
        %5319 = vmatpush.msra.mxu0 %v5318
        %v5320 = vand.u32 %v4455, 4294901760
        %v5321 = vsub.f32 %v4455, %v5320
        %5322 = vmatpush.msra.mxu0 %v5321
        %v5323 = vand.u32 %v4454, 4294901760
        %v5324 = vsub.f32 %v4454, %v5323
        %5325 = vmatpush.msra.mxu0 %v5324
        %v5326 = vand.u32 %v4453, 4294901760
        %v5327 = vsub.f32 %v4453, %v5326
        %5328 = vmatpush.msra.mxu0 %v5327
        %v5329 = vand.u32 %v4452, 4294901760
        %v5330 = vsub.f32 %v4452, %v5329
        %5331 = vmatpush.msra.mxu0 %v5330
        %v5332 = vand.u32 %v4451, 4294901760
        %v5333 = vsub.f32 %v4451, %v5332
        %5334 = vmatpush.msra.mxu0 %v5333
        %v5335 = vand.u32 %v4450, 4294901760
        %v5336 = vsub.f32 %v4450, %v5335
        %5337 = vmatpush.msra.mxu0 %v5336
        %v5338 = vand.u32 %v4449, 4294901760
        %v5339 = vsub.f32 %v4449, %v5338
        %5340 = vmatpush.msra.mxu0 %v5339
        %v5341 = vand.u32 %v4448, 4294901760
        %v5342 = vsub.f32 %v4448, %v5341
        %5343 = vmatpush.msra.mxu0 %v5342
        %v5344 = vand.u32 %v4447, 4294901760
        %v5345 = vsub.f32 %v4447, %v5344
        %5346 = vmatpush.msra.mxu0 %v5345
        %v5347 = vand.u32 %v4446, 4294901760
        %v5348 = vsub.f32 %v4446, %v5347
        %5349 = vmatpush.msra.mxu0 %v5348
        %v5350 = vand.u32 %v4445, 4294901760
        %v5351 = vsub.f32 %v4445, %v5350
        %5352 = vmatpush.msra.mxu0 %v5351
        %v5353 = vand.u32 %v4411, 4294901760
        %v5354 = vsub.f32 %v4411, %v5353
        %5355 = vmatmul.f32.gmra.mxu0 %v5354
        %v5356 = vpop.f32.mrf.mxu0
        %v5357 = vadd.f32 %v5303, %v5356
        %5358 = vdwg.mxu0
        %v5359 = vand.u32 %v4460, 4294901760
        %5360 = vmatpush.msra.mxu0 %v5359
        %v5361 = vand.u32 %v4459, 4294901760
        %5362 = vmatpush.msra.mxu0 %v5361
        %v5363 = vand.u32 %v4458, 4294901760
        %5364 = vmatpush.msra.mxu0 %v5363
        %v5365 = vand.u32 %v4457, 4294901760
        %5366 = vmatpush.msra.mxu0 %v5365
        %v5367 = vand.u32 %v4456, 4294901760
        %5368 = vmatpush.msra.mxu0 %v5367
        %v5369 = vand.u32 %v4455, 4294901760
        %5370 = vmatpush.msra.mxu0 %v5369
        %v5371 = vand.u32 %v4454, 4294901760
        %5372 = vmatpush.msra.mxu0 %v5371
        %v5373 = vand.u32 %v4453, 4294901760
        %5374 = vmatpush.msra.mxu0 %v5373
        %v5375 = vand.u32 %v4452, 4294901760
        %5376 = vmatpush.msra.mxu0 %v5375
        %v5377 = vand.u32 %v4451, 4294901760
        %5378 = vmatpush.msra.mxu0 %v5377
        %v5379 = vand.u32 %v4450, 4294901760
        %5380 = vmatpush.msra.mxu0 %v5379
        %v5381 = vand.u32 %v4449, 4294901760
        %5382 = vmatpush.msra.mxu0 %v5381
        %v5383 = vand.u32 %v4448, 4294901760
        %5384 = vmatpush.msra.mxu0 %v5383
        %v5385 = vand.u32 %v4447, 4294901760
        %5386 = vmatpush.msra.mxu0 %v5385
        %v5387 = vand.u32 %v4446, 4294901760
        %5388 = vmatpush.msra.mxu0 %v5387
        %v5389 = vand.u32 %v4445, 4294901760
        %5390 = vmatpush.msra.mxu0 %v5389
        %v5391 = vand.u32 %v4411, 4294901760
        %v5392 = vsub.f32 %v4411, %v5391
        %v5393 = vand.u32 %v5392, 4294901760
        %5394 = vmatmul.f32.gmra.mxu0 %v5393
        %v5395 = vpop.f32.mrf.mxu0
        %v5396 = vadd.f32 %v5357, %v5395
        %5397 = vdwg.mxu0
        %v5398 = vand.u32 %v4460, 4294901760
        %v5399 = vsub.f32 %v4460, %v5398
        %v5400 = vand.u32 %v5399, 4294901760
        %5401 = vmatpush.msra.mxu0 %v5400
        %v5402 = vand.u32 %v4459, 4294901760
        %v5403 = vsub.f32 %v4459, %v5402
        %v5404 = vand.u32 %v5403, 4294901760
        %5405 = vmatpush.msra.mxu0 %v5404
        %v5406 = vand.u32 %v4458, 4294901760
        %v5407 = vsub.f32 %v4458, %v5406
        %v5408 = vand.u32 %v5407, 4294901760
        %5409 = vmatpush.msra.mxu0 %v5408
        %v5410 = vand.u32 %v4457, 4294901760
        %v5411 = vsub.f32 %v4457, %v5410
        %v5412 = vand.u32 %v5411, 4294901760
        %5413 = vmatpush.msra.mxu0 %v5412
        %v5414 = vand.u32 %v4456, 4294901760
        %v5415 = vsub.f32 %v4456, %v5414
        %v5416 = vand.u32 %v5415, 4294901760
        %5417 = vmatpush.msra.mxu0 %v5416
        %v5418 = vand.u32 %v4455, 4294901760
        %v5419 = vsub.f32 %v4455, %v5418
        %v5420 = vand.u32 %v5419, 4294901760
        %5421 = vmatpush.msra.mxu0 %v5420
        %v5422 = vand.u32 %v4454, 4294901760
        %v5423 = vsub.f32 %v4454, %v5422
        %v5424 = vand.u32 %v5423, 4294901760
        %5425 = vmatpush.msra.mxu0 %v5424
        %v5426 = vand.u32 %v4453, 4294901760
        %v5427 = vsub.f32 %v4453, %v5426
        %v5428 = vand.u32 %v5427, 4294901760
        %5429 = vmatpush.msra.mxu0 %v5428
        %v5430 = vand.u32 %v4452, 4294901760
        %v5431 = vsub.f32 %v4452, %v5430
        %v5432 = vand.u32 %v5431, 4294901760
        %5433 = vmatpush.msra.mxu0 %v5432
        %v5434 = vand.u32 %v4451, 4294901760
        %v5435 = vsub.f32 %v4451, %v5434
        %v5436 = vand.u32 %v5435, 4294901760
        %5437 = vmatpush.msra.mxu0 %v5436
        %v5438 = vand.u32 %v4450, 4294901760
        %v5439 = vsub.f32 %v4450, %v5438
        %v5440 = vand.u32 %v5439, 4294901760
        %5441 = vmatpush.msra.mxu0 %v5440
        %v5442 = vand.u32 %v4449, 4294901760
        %v5443 = vsub.f32 %v4449, %v5442
        %v5444 = vand.u32 %v5443, 4294901760
        %5445 = vmatpush.msra.mxu0 %v5444
        %v5446 = vand.u32 %v4448, 4294901760
        %v5447 = vsub.f32 %v4448, %v5446
        %v5448 = vand.u32 %v5447, 4294901760
        %5449 = vmatpush.msra.mxu0 %v5448
        %v5450 = vand.u32 %v4447, 4294901760
        %v5451 = vsub.f32 %v4447, %v5450
        %v5452 = vand.u32 %v5451, 4294901760
        %5453 = vmatpush.msra.mxu0 %v5452
        %v5454 = vand.u32 %v4446, 4294901760
        %v5455 = vsub.f32 %v4446, %v5454
        %v5456 = vand.u32 %v5455, 4294901760
        %5457 = vmatpush.msra.mxu0 %v5456
        %v5458 = vand.u32 %v4445, 4294901760
        %v5459 = vsub.f32 %v4445, %v5458
        %v5460 = vand.u32 %v5459, 4294901760
        %5461 = vmatpush.msra.mxu0 %v5460
        %v5462 = vand.u32 %v4411, 4294901760
        %5463 = vmatmul.f32.gmra.mxu0 %v5462
        %v5464 = vpop.f32.mrf.mxu0
        %v5465 = vadd.f32 %v5396, %v5464
        %5466 = vdwg.mxu0
        %v5467 = vand.u32 %v4460, 4294901760
        %5468 = vmatpush.msra.mxu0 %v5467
        %v5469 = vand.u32 %v4459, 4294901760
        %5470 = vmatpush.msra.mxu0 %v5469
        %v5471 = vand.u32 %v4458, 4294901760
        %5472 = vmatpush.msra.mxu0 %v5471
        %v5473 = vand.u32 %v4457, 4294901760
        %5474 = vmatpush.msra.mxu0 %v5473
        %v5475 = vand.u32 %v4456, 4294901760
        %5476 = vmatpush.msra.mxu0 %v5475
        %v5477 = vand.u32 %v4455, 4294901760
        %5478 = vmatpush.msra.mxu0 %v5477
        %v5479 = vand.u32 %v4454, 4294901760
        %5480 = vmatpush.msra.mxu0 %v5479
        %v5481 = vand.u32 %v4453, 4294901760
        %5482 = vmatpush.msra.mxu0 %v5481
        %v5483 = vand.u32 %v4452, 4294901760
        %5484 = vmatpush.msra.mxu0 %v5483
        %v5485 = vand.u32 %v4451, 4294901760
        %5486 = vmatpush.msra.mxu0 %v5485
        %v5487 = vand.u32 %v4450, 4294901760
        %5488 = vmatpush.msra.mxu0 %v5487
        %v5489 = vand.u32 %v4449, 4294901760
        %5490 = vmatpush.msra.mxu0 %v5489
        %v5491 = vand.u32 %v4448, 4294901760
        %5492 = vmatpush.msra.mxu0 %v5491
        %v5493 = vand.u32 %v4447, 4294901760
        %5494 = vmatpush.msra.mxu0 %v5493
        %v5495 = vand.u32 %v4446, 4294901760
        %5496 = vmatpush.msra.mxu0 %v5495
        %v5497 = vand.u32 %v4445, 4294901760
        %5498 = vmatpush.msra.mxu0 %v5497
        %v5499 = vand.u32 %v4411, 4294901760
        %5500 = vmatmul.f32.gmra.mxu0 %v5499
        %v5501 = vpop.f32.mrf.mxu0
        %v5502 = vadd.f32 %v5465, %v5501
        %5503 = vdwg.mxu0
        %v5504 = vand.u32 %v4476, 4294901760
        %5505 = vmatpush.msra.mxu0 %v5504
        %v5506 = vand.u32 %v4475, 4294901760
        %5507 = vmatpush.msra.mxu0 %v5506
        %v5508 = vand.u32 %v4474, 4294901760
        %5509 = vmatpush.msra.mxu0 %v5508
        %v5510 = vand.u32 %v4473, 4294901760
        %5511 = vmatpush.msra.mxu0 %v5510
        %v5512 = vand.u32 %v4472, 4294901760
        %5513 = vmatpush.msra.mxu0 %v5512
        %v5514 = vand.u32 %v4471, 4294901760
        %5515 = vmatpush.msra.mxu0 %v5514
        %v5516 = vand.u32 %v4470, 4294901760
        %5517 = vmatpush.msra.mxu0 %v5516
        %v5518 = vand.u32 %v4469, 4294901760
        %5519 = vmatpush.msra.mxu0 %v5518
        %v5520 = vand.u32 %v4468, 4294901760
        %5521 = vmatpush.msra.mxu0 %v5520
        %v5522 = vand.u32 %v4467, 4294901760
        %5523 = vmatpush.msra.mxu0 %v5522
        %v5524 = vand.u32 %v4466, 4294901760
        %5525 = vmatpush.msra.mxu0 %v5524
        %v5526 = vand.u32 %v4465, 4294901760
        %5527 = vmatpush.msra.mxu0 %v5526
        %v5528 = vand.u32 %v4464, 4294901760
        %5529 = vmatpush.msra.mxu0 %v5528
        %v5530 = vand.u32 %v4463, 4294901760
        %5531 = vmatpush.msra.mxu0 %v5530
        %v5532 = vand.u32 %v4462, 4294901760
        %5533 = vmatpush.msra.mxu0 %v5532
        %v5534 = vand.u32 %v4461, 4294901760
        %5535 = vmatpush.msra.mxu0 %v5534
        %v5536 = vand.u32 %v4412, 4294901760
        %v5537 = vsub.f32 %v4412, %v5536
        %v5538 = vand.u32 %v5537, 4294901760
        %v5539 = vsub.f32 %v5537, %v5538
        %v5540 = vand.u32 %v5539, 4294901760
        %5541 = vmatmul.f32.gmra.mxu0 %v5540
        %v5542 = vpop.f32.mrf.mxu0
        %v5543 = vadd.f32 %v5502, %v5542
        %5544 = vdwg.mxu0
        %v5545 = vand.u32 %v4476, 4294901760
        %v5546 = vsub.f32 %v4476, %v5545
        %v5547 = vand.u32 %v5546, 4294901760
        %v5548 = vsub.f32 %v5546, %v5547
        %v5549 = vand.u32 %v5548, 4294901760
        %5550 = vmatpush.msra.mxu0 %v5549
        %v5551 = vand.u32 %v4475, 4294901760
        %v5552 = vsub.f32 %v4475, %v5551
        %v5553 = vand.u32 %v5552, 4294901760
        %v5554 = vsub.f32 %v5552, %v5553
        %v5555 = vand.u32 %v5554, 4294901760
        %5556 = vmatpush.msra.mxu0 %v5555
        %v5557 = vand.u32 %v4474, 4294901760
        %v5558 = vsub.f32 %v4474, %v5557
        %v5559 = vand.u32 %v5558, 4294901760
        %v5560 = vsub.f32 %v5558, %v5559
        %v5561 = vand.u32 %v5560, 4294901760
        %5562 = vmatpush.msra.mxu0 %v5561
        %v5563 = vand.u32 %v4473, 4294901760
        %v5564 = vsub.f32 %v4473, %v5563
        %v5565 = vand.u32 %v5564, 4294901760
        %v5566 = vsub.f32 %v5564, %v5565
        %v5567 = vand.u32 %v5566, 4294901760
        %5568 = vmatpush.msra.mxu0 %v5567
        %v5569 = vand.u32 %v4472, 4294901760
        %v5570 = vsub.f32 %v4472, %v5569
        %v5571 = vand.u32 %v5570, 4294901760
        %v5572 = vsub.f32 %v5570, %v5571
        %v5573 = vand.u32 %v5572, 4294901760
        %5574 = vmatpush.msra.mxu0 %v5573
        %v5575 = vand.u32 %v4471, 4294901760
        %v5576 = vsub.f32 %v4471, %v5575
        %v5577 = vand.u32 %v5576, 4294901760
        %v5578 = vsub.f32 %v5576, %v5577
        %v5579 = vand.u32 %v5578, 4294901760
        %5580 = vmatpush.msra.mxu0 %v5579
        %v5581 = vand.u32 %v4470, 4294901760
        %v5582 = vsub.f32 %v4470, %v5581
        %v5583 = vand.u32 %v5582, 4294901760
        %v5584 = vsub.f32 %v5582, %v5583
        %v5585 = vand.u32 %v5584, 4294901760
        %5586 = vmatpush.msra.mxu0 %v5585
        %v5587 = vand.u32 %v4469, 4294901760
        %v5588 = vsub.f32 %v4469, %v5587
        %v5589 = vand.u32 %v5588, 4294901760
        %v5590 = vsub.f32 %v5588, %v5589
        %v5591 = vand.u32 %v5590, 4294901760
        %5592 = vmatpush.msra.mxu0 %v5591
        %v5593 = vand.u32 %v4468, 4294901760
        %v5594 = vsub.f32 %v4468, %v5593
        %v5595 = vand.u32 %v5594, 4294901760
        %v5596 = vsub.f32 %v5594, %v5595
        %v5597 = vand.u32 %v5596, 4294901760
        %5598 = vmatpush.msra.mxu0 %v5597
        %v5599 = vand.u32 %v4467, 4294901760
        %v5600 = vsub.f32 %v4467, %v5599
        %v5601 = vand.u32 %v5600, 4294901760
        %v5602 = vsub.f32 %v5600, %v5601
        %v5603 = vand.u32 %v5602, 4294901760
        %5604 = vmatpush.msra.mxu0 %v5603
        %v5605 = vand.u32 %v4466, 4294901760
        %v5606 = vsub.f32 %v4466, %v5605
        %v5607 = vand.u32 %v5606, 4294901760
        %v5608 = vsub.f32 %v5606, %v5607
        %v5609 = vand.u32 %v5608, 4294901760
        %5610 = vmatpush.msra.mxu0 %v5609
        %v5611 = vand.u32 %v4465, 4294901760
        %v5612 = vsub.f32 %v4465, %v5611
        %v5613 = vand.u32 %v5612, 4294901760
        %v5614 = vsub.f32 %v5612, %v5613
        %v5615 = vand.u32 %v5614, 4294901760
        %5616 = vmatpush.msra.mxu0 %v5615
        %v5617 = vand.u32 %v4464, 4294901760
        %v5618 = vsub.f32 %v4464, %v5617
        %v5619 = vand.u32 %v5618, 4294901760
        %v5620 = vsub.f32 %v5618, %v5619
        %v5621 = vand.u32 %v5620, 4294901760
        %5622 = vmatpush.msra.mxu0 %v5621
        %v5623 = vand.u32 %v4463, 4294901760
        %v5624 = vsub.f32 %v4463, %v5623
        %v5625 = vand.u32 %v5624, 4294901760
        %v5626 = vsub.f32 %v5624, %v5625
        %v5627 = vand.u32 %v5626, 4294901760
        %5628 = vmatpush.msra.mxu0 %v5627
        %v5629 = vand.u32 %v4462, 4294901760
        %v5630 = vsub.f32 %v4462, %v5629
        %v5631 = vand.u32 %v5630, 4294901760
        %v5632 = vsub.f32 %v5630, %v5631
        %v5633 = vand.u32 %v5632, 4294901760
        %5634 = vmatpush.msra.mxu0 %v5633
        %v5635 = vand.u32 %v4461, 4294901760
        %v5636 = vsub.f32 %v4461, %v5635
        %v5637 = vand.u32 %v5636, 4294901760
        %v5638 = vsub.f32 %v5636, %v5637
        %v5639 = vand.u32 %v5638, 4294901760
        %5640 = vmatpush.msra.mxu0 %v5639
        %v5641 = vand.u32 %v4412, 4294901760
        %5642 = vmatmul.f32.gmra.mxu0 %v5641
        %v5643 = vpop.f32.mrf.mxu0
        %v5644 = vadd.f32 %v5543, %v5643
        %5645 = vdwg.mxu0
        %v5646 = vand.u32 %v4476, 4294901760
        %v5647 = vsub.f32 %v4476, %v5646
        %5648 = vmatpush.msra.mxu0 %v5647
        %v5649 = vand.u32 %v4475, 4294901760
        %v5650 = vsub.f32 %v4475, %v5649
        %5651 = vmatpush.msra.mxu0 %v5650
        %v5652 = vand.u32 %v4474, 4294901760
        %v5653 = vsub.f32 %v4474, %v5652
        %5654 = vmatpush.msra.mxu0 %v5653
        %v5655 = vand.u32 %v4473, 4294901760
        %v5656 = vsub.f32 %v4473, %v5655
        %5657 = vmatpush.msra.mxu0 %v5656
        %v5658 = vand.u32 %v4472, 4294901760
        %v5659 = vsub.f32 %v4472, %v5658
        %5660 = vmatpush.msra.mxu0 %v5659
        %v5661 = vand.u32 %v4471, 4294901760
        %v5662 = vsub.f32 %v4471, %v5661
        %5663 = vmatpush.msra.mxu0 %v5662
        %v5664 = vand.u32 %v4470, 4294901760
        %v5665 = vsub.f32 %v4470, %v5664
        %5666 = vmatpush.msra.mxu0 %v5665
        %v5667 = vand.u32 %v4469, 4294901760
        %v5668 = vsub.f32 %v4469, %v5667
        %5669 = vmatpush.msra.mxu0 %v5668
        %v5670 = vand.u32 %v4468, 4294901760
        %v5671 = vsub.f32 %v4468, %v5670
        %5672 = vmatpush.msra.mxu0 %v5671
        %v5673 = vand.u32 %v4467, 4294901760
        %v5674 = vsub.f32 %v4467, %v5673
        %5675 = vmatpush.msra.mxu0 %v5674
        %v5676 = vand.u32 %v4466, 4294901760
        %v5677 = vsub.f32 %v4466, %v5676
        %5678 = vmatpush.msra.mxu0 %v5677
        %v5679 = vand.u32 %v4465, 4294901760
        %v5680 = vsub.f32 %v4465, %v5679
        %5681 = vmatpush.msra.mxu0 %v5680
        %v5682 = vand.u32 %v4464, 4294901760
        %v5683 = vsub.f32 %v4464, %v5682
        %5684 = vmatpush.msra.mxu0 %v5683
        %v5685 = vand.u32 %v4463, 4294901760
        %v5686 = vsub.f32 %v4463, %v5685
        %5687 = vmatpush.msra.mxu0 %v5686
        %v5688 = vand.u32 %v4462, 4294901760
        %v5689 = vsub.f32 %v4462, %v5688
        %5690 = vmatpush.msra.mxu0 %v5689
        %v5691 = vand.u32 %v4461, 4294901760
        %v5692 = vsub.f32 %v4461, %v5691
        %5693 = vmatpush.msra.mxu0 %v5692
        %v5694 = vand.u32 %v4412, 4294901760
        %v5695 = vsub.f32 %v4412, %v5694
        %5696 = vmatmul.f32.gmra.mxu0 %v5695
        %v5697 = vpop.f32.mrf.mxu0
        %v5698 = vadd.f32 %v5644, %v5697
        %5699 = vdwg.mxu0
        %v5700 = vand.u32 %v4476, 4294901760
        %5701 = vmatpush.msra.mxu0 %v5700
        %v5702 = vand.u32 %v4475, 4294901760
        %5703 = vmatpush.msra.mxu0 %v5702
        %v5704 = vand.u32 %v4474, 4294901760
        %5705 = vmatpush.msra.mxu0 %v5704
        %v5706 = vand.u32 %v4473, 4294901760
        %5707 = vmatpush.msra.mxu0 %v5706
        %v5708 = vand.u32 %v4472, 4294901760
        %5709 = vmatpush.msra.mxu0 %v5708
        %v5710 = vand.u32 %v4471, 4294901760
        %5711 = vmatpush.msra.mxu0 %v5710
        %v5712 = vand.u32 %v4470, 4294901760
        %5713 = vmatpush.msra.mxu0 %v5712
        %v5714 = vand.u32 %v4469, 4294901760
        %5715 = vmatpush.msra.mxu0 %v5714
        %v5716 = vand.u32 %v4468, 4294901760
        %5717 = vmatpush.msra.mxu0 %v5716
        %v5718 = vand.u32 %v4467, 4294901760
        %5719 = vmatpush.msra.mxu0 %v5718
        %v5720 = vand.u32 %v4466, 4294901760
        %5721 = vmatpush.msra.mxu0 %v5720
        %v5722 = vand.u32 %v4465, 4294901760
        %5723 = vmatpush.msra.mxu0 %v5722
        %v5724 = vand.u32 %v4464, 4294901760
        %5725 = vmatpush.msra.mxu0 %v5724
        %v5726 = vand.u32 %v4463, 4294901760
        %5727 = vmatpush.msra.mxu0 %v5726
        %v5728 = vand.u32 %v4462, 4294901760
        %5729 = vmatpush.msra.mxu0 %v5728
        %v5730 = vand.u32 %v4461, 4294901760
        %5731 = vmatpush.msra.mxu0 %v5730
        %v5732 = vand.u32 %v4412, 4294901760
        %v5733 = vsub.f32 %v4412, %v5732
        %v5734 = vand.u32 %v5733, 4294901760
        %5735 = vmatmul.f32.gmra.mxu0 %v5734
        %v5736 = vpop.f32.mrf.mxu0
        %v5737 = vadd.f32 %v5698, %v5736
        %5738 = vdwg.mxu0
        %v5739 = vand.u32 %v4476, 4294901760
        %v5740 = vsub.f32 %v4476, %v5739
        %v5741 = vand.u32 %v5740, 4294901760
        %5742 = vmatpush.msra.mxu0 %v5741
        %v5743 = vand.u32 %v4475, 4294901760
        %v5744 = vsub.f32 %v4475, %v5743
        %v5745 = vand.u32 %v5744, 4294901760
        %5746 = vmatpush.msra.mxu0 %v5745
        %v5747 = vand.u32 %v4474, 4294901760
        %v5748 = vsub.f32 %v4474, %v5747
        %v5749 = vand.u32 %v5748, 4294901760
        %5750 = vmatpush.msra.mxu0 %v5749
        %v5751 = vand.u32 %v4473, 4294901760
        %v5752 = vsub.f32 %v4473, %v5751
        %v5753 = vand.u32 %v5752, 4294901760
        %5754 = vmatpush.msra.mxu0 %v5753
        %v5755 = vand.u32 %v4472, 4294901760
        %v5756 = vsub.f32 %v4472, %v5755
        %v5757 = vand.u32 %v5756, 4294901760
        %5758 = vmatpush.msra.mxu0 %v5757
        %v5759 = vand.u32 %v4471, 4294901760
        %v5760 = vsub.f32 %v4471, %v5759
        %v5761 = vand.u32 %v5760, 4294901760
        %5762 = vmatpush.msra.mxu0 %v5761
        %v5763 = vand.u32 %v4470, 4294901760
        %v5764 = vsub.f32 %v4470, %v5763
        %v5765 = vand.u32 %v5764, 4294901760
        %5766 = vmatpush.msra.mxu0 %v5765
        %v5767 = vand.u32 %v4469, 4294901760
        %v5768 = vsub.f32 %v4469, %v5767
        %v5769 = vand.u32 %v5768, 4294901760
        %5770 = vmatpush.msra.mxu0 %v5769
        %v5771 = vand.u32 %v4468, 4294901760
        %v5772 = vsub.f32 %v4468, %v5771
        %v5773 = vand.u32 %v5772, 4294901760
        %5774 = vmatpush.msra.mxu0 %v5773
        %v5775 = vand.u32 %v4467, 4294901760
        %v5776 = vsub.f32 %v4467, %v5775
        %v5777 = vand.u32 %v5776, 4294901760
        %5778 = vmatpush.msra.mxu0 %v5777
        %v5779 = vand.u32 %v4466, 4294901760
        %v5780 = vsub.f32 %v4466, %v5779
        %v5781 = vand.u32 %v5780, 4294901760
        %5782 = vmatpush.msra.mxu0 %v5781
        %v5783 = vand.u32 %v4465, 4294901760
        %v5784 = vsub.f32 %v4465, %v5783
        %v5785 = vand.u32 %v5784, 4294901760
        %5786 = vmatpush.msra.mxu0 %v5785
        %v5787 = vand.u32 %v4464, 4294901760
        %v5788 = vsub.f32 %v4464, %v5787
        %v5789 = vand.u32 %v5788, 4294901760
        %5790 = vmatpush.msra.mxu0 %v5789
        %v5791 = vand.u32 %v4463, 4294901760
        %v5792 = vsub.f32 %v4463, %v5791
        %v5793 = vand.u32 %v5792, 4294901760
        %5794 = vmatpush.msra.mxu0 %v5793
        %v5795 = vand.u32 %v4462, 4294901760
        %v5796 = vsub.f32 %v4462, %v5795
        %v5797 = vand.u32 %v5796, 4294901760
        %5798 = vmatpush.msra.mxu0 %v5797
        %v5799 = vand.u32 %v4461, 4294901760
        %v5800 = vsub.f32 %v4461, %v5799
        %v5801 = vand.u32 %v5800, 4294901760
        %5802 = vmatpush.msra.mxu0 %v5801
        %v5803 = vand.u32 %v4412, 4294901760
        %5804 = vmatmul.f32.gmra.mxu0 %v5803
        %v5805 = vpop.f32.mrf.mxu0
        %v5806 = vadd.f32 %v5737, %v5805
        %5807 = vdwg.mxu0
        %v5808 = vand.u32 %v4476, 4294901760
        %5809 = vmatpush.msra.mxu0 %v5808
        %v5810 = vand.u32 %v4475, 4294901760
        %5811 = vmatpush.msra.mxu0 %v5810
        %v5812 = vand.u32 %v4474, 4294901760
        %5813 = vmatpush.msra.mxu0 %v5812
        %v5814 = vand.u32 %v4473, 4294901760
        %5815 = vmatpush.msra.mxu0 %v5814
        %v5816 = vand.u32 %v4472, 4294901760
        %5817 = vmatpush.msra.mxu0 %v5816
        %v5818 = vand.u32 %v4471, 4294901760
        %5819 = vmatpush.msra.mxu0 %v5818
        %v5820 = vand.u32 %v4470, 4294901760
        %5821 = vmatpush.msra.mxu0 %v5820
        %v5822 = vand.u32 %v4469, 4294901760
        %5823 = vmatpush.msra.mxu0 %v5822
        %v5824 = vand.u32 %v4468, 4294901760
        %5825 = vmatpush.msra.mxu0 %v5824
        %v5826 = vand.u32 %v4467, 4294901760
        %5827 = vmatpush.msra.mxu0 %v5826
        %v5828 = vand.u32 %v4466, 4294901760
        %5829 = vmatpush.msra.mxu0 %v5828
        %v5830 = vand.u32 %v4465, 4294901760
        %5831 = vmatpush.msra.mxu0 %v5830
        %v5832 = vand.u32 %v4464, 4294901760
        %5833 = vmatpush.msra.mxu0 %v5832
        %v5834 = vand.u32 %v4463, 4294901760
        %5835 = vmatpush.msra.mxu0 %v5834
        %v5836 = vand.u32 %v4462, 4294901760
        %5837 = vmatpush.msra.mxu0 %v5836
        %v5838 = vand.u32 %v4461, 4294901760
        %5839 = vmatpush.msra.mxu0 %v5838
        %v5840 = vand.u32 %v4412, 4294901760
        %5841 = vmatmul.f32.gmra.mxu0 %v5840
        %v5842 = vpop.f32.mrf.mxu0
        %v5843 = vadd.f32 %v5806, %v5842
        %5844 = vdwg.mxu0
        %vm5845 = vcmask 261120
        %5846 = vst.msk [vmem:[%s326] sm:$0xff] %vm5845, %v5843
        %s5847 = sand.u32 %s225, 1
        %s5848 = scalar_lea.sflag [#allocation3], %s5847
        %s5849 = sand.u32 %s225, 1
        %s5850 = smul.addr %s5849, 8
        %s5851 = scalar_lea.vmem [#allocation2], %s5850
        // Predicated region
        $region57: #{tpu_custom_call.1} parent=55 // pred_check
          %p5852 = pneg %p235
        $region58: #{tpu_custom_call.1} parent=55 // pred_check_branch
          %5854 = sbr.rel (%p5852) target = $region60
        $region59: #{tpu_custom_call.1} parent=55 // pred_region
          %5856 = vsyncadd %s5848, 0
          %s5857 = smul.addr %s23, 8
          %s5858 = scalar_lea.hbm %s9, %s5857
          %s5860 = sshll.u32 %s5851, 4
          %s5861 = int_to_ptr.vmem [resolvable:$true] %s5860
          %s5862 = sshll.u32 %s5858, 4
          %s5863 = int_to_ptr.hbm [resolvable:$true] %s5862
          %5865 = dma.vmem_to_hbm [thread:$0]  %s5861, 128, %s5863, %s5848
        $region60: #{tpu_custom_call.1} parent=55 // pred_fallthru
          _
      $region56: #{tpu_custom_call.1} parent=5 // pred_fallthru
        _
      %p5866 = scmp.le.s32.totalorder 2, %s18
      // Predicated region
      $region61: #{tpu_custom_call.1} parent=5 // pred_check
        %p5867 = pneg %p5866
      $region62: #{tpu_custom_call.1} parent=5 // pred_check_branch
        %5869 = sbr.rel (%p5867) target = $region64
      $region63: #{tpu_custom_call.1} parent=5 // pred_region
        %s5870 = ssub.s32 %s18, 2
        // Predicated region
        $region65: #{tpu_custom_call.1} parent=63 // pred_check
          %p5871 = pneg %p241
        $region66: #{tpu_custom_call.1} parent=63 // pred_check_branch
          %5873 = sbr.rel (%p5871) target = $region68
        $region67: #{tpu_custom_call.1} parent=63 // pred_region
          %s5874 = sand.u32 %s226, 1
          %s5875 = scalar_lea.sflag [#allocation3], %s5874
          %s5876 = sand.u32 %s226, 1
          %s5877 = smul.addr %s5876, 8
          %s5878 = scalar_lea.vmem [#allocation2], %s5877
          %5880 = dma.done %s5875, 128
        $region68: #{tpu_custom_call.1} parent=63 // pred_fallthru
          _
      $region64: #{tpu_custom_call.1} parent=5 // pred_fallthru
        _
    $region6: #{tpu_custom_call.1} parent=1 // loop_footer
      %s22 = sadd.s32 1, %s18
    $region7: #{tpu_custom_call.1} parent=1 // loop_footer_branch
      %17 = sbr.rel target = $region3
    $region8: #{tpu_custom_call.1} parent=1 // loop_exit
      _
    %5881 = vsyncpa [#allocation3], 1
    %s5882 = scalar_lea.sflag [#allocation3], 1
    %5883 = vsyncpa %s5882, 1

</llo_original>
